<compile_context>
chip_gen: v7x
topology: tpu7x:2x2x1
jax: 0.10.0
libtpu: 0.0.40
codegen_flags: <defaults>
</compile_context>

<pallas_src>
import functools

import jax
import jax.numpy as jnp
from jax.experimental import pallas as pl
from jax.experimental.pallas import tpu as pltpu

INPUT_DIM = 2
OUTPUT_DIM = 1
HIDDEN_LAYERS = 8
NEURONS = 40
N_MID = HIDDEN_LAYERS - 1  # number of (40 -> 40) hidden-to-hidden layers


def _mlp_kernel(x_ref, w_in_ref, b_in_ref, w_mid_ref, b_mid_ref,
                w_out_ref, b_out_ref, o_ref, *, compute_dtype):
    # x_ref: (INPUT_DIM, tile_n) -- batch on lanes (dense).
    x = x_ref[...]
    w_in = w_in_ref[...]                       # (NEURONS, INPUT_DIM)

    # First layer: K=2 would waste the MXU (padded to 128/256 contraction),
    # so use two VPU broadcast-FMAs instead:
    #   h[j, n] = w_in[j,0]*x[0,n] + w_in[j,1]*x[1,n] + b_in[j]
    h = jnp.tanh(
        w_in[:, 0:1] * x[0:1, :]
        + w_in[:, 1:2] * x[1:2, :]
        + b_in_ref[...]                        # (NEURONS, 1) -> lane broadcast
    )                                          # (NEURONS, tile_n) f32

    # 7 hidden-to-hidden layers, statically unrolled (fixed small count).
    # MXU matmul: (40, 40) @ (40, tile_n) -> (40, tile_n), lane-dense.
    # Optional bf16 operands (f32 accumulate) to avoid multi-pass f32 MXU
    # lowering; cast the weight stack once, outside the layer loop.
    w_mid = w_mid_ref[...].astype(compute_dtype)   # no-op when compute_dtype=f32
    for l in range(N_MID):
        z = jnp.dot(w_mid[l], h.astype(compute_dtype),
                    preferred_element_type=jnp.float32)
        h = jnp.tanh(z + b_mid_ref[l])             # (NEURONS, 1) bias broadcast

    # Output layer: (1, 40) @ (40, tile_n) + (1, 1) -> (1, tile_n), no
    # activation.  Output block is lane-dense (tile_n lanes) -> full-width vst.
    o_ref[...] = (
        jnp.dot(w_out_ref[...].astype(compute_dtype), h.astype(compute_dtype),
                preferred_element_type=jnp.float32)
        + b_out_ref[...]
    ).astype(o_ref.dtype)


def _choose_tile_n(n, *, max_tile=8192):
    """Pick a batch tile for a (padded) batch of size n (n % 128 == 0).

    * n <= 1024: one big step (stage weights once; best on single-TC v5e/v6e,
      and too small to be worth splitting for v7x's second core).
    * otherwise: largest multiple of 128 that divides n, <= max_tile, PREFERRING
      an even step count so the "parallel" grid axis splits evenly across v7x's
      two TensorCores (the extra step is ~free on v5e/v6e at these tile sizes).
    """
    if n <= 1024:
        return n
    start = min(max_tile, n)
    start -= start % 128
    best_any = None
    for cand in range(start, 127, -128):
        if n % cand:
            continue
        if best_any is None:
            best_any = cand
        if (n // cand) % 2 == 0:
            return cand                     # largest tile with an even step count
    return best_any if best_any is not None else 128


@functools.partial(jax.jit, static_argnames=("tile_n", "use_bf16"))
def dnn_forward_t(x_t, params, *, tile_n=None, use_bf16=False):
    """Feature-major entry point. x_t: [INPUT_DIM, N] float32.

    Returns [N, OUTPUT_DIM] float32 (same semantics as PyTorch DNN.forward).
    Avoids any wrapper-side transpose of the input.
    """
    w_in, b_in, w_mid, b_mid, w_out, b_out = params
    assert x_t.shape[0] == INPUT_DIM
    n = x_t.shape[1]

    # Pad the batch up to a multiple of 128 (lane width); padded rows are zeros
    # and are sliced off the output (rows are independent, so this is exact).
    n_pad = ((n + 127) // 128) * 128
    if n_pad != n:
        x_t = jnp.pad(x_t, ((0, 0), (0, n_pad - n)))

    if tile_n is None:
        tile_n = _choose_tile_n(n_pad)
    assert tile_n % 128 == 0, "tile_n must be a multiple of 128 (lane width)"
    assert n_pad % tile_n == 0, "padded batch must be divisible by tile_n"

    grid = (n_pad // tile_n,)
    # Constant-index full blocks for the (tiny, VMEM-resident) weights/biases.
    full = lambda shape: pl.BlockSpec(shape, lambda i: (0,) * len(shape))

    kernel = functools.partial(
        _mlp_kernel,
        compute_dtype=jnp.bfloat16 if use_bf16 else jnp.float32)

    out_t = pl.pallas_call(
        kernel,
        out_shape=jax.ShapeDtypeStruct((OUTPUT_DIM, n_pad), jnp.float32),
        grid=grid,
        in_specs=[
            pl.BlockSpec((INPUT_DIM, tile_n), lambda i: (0, i)),  # x tile (lane-dense)
            full(w_in.shape),    # (40, 2)
            full(b_in.shape),    # (40, 1)
            full(w_mid.shape),   # (7, 40, 40)
            full(b_mid.shape),   # (7, 40, 1)
            full(w_out.shape),   # (1, 40)
            full(b_out.shape),   # (1, 1)
        ],
        out_specs=pl.BlockSpec((OUTPUT_DIM, tile_n), lambda i: (0, i)),
        compiler_params=pltpu.CompilerParams(
            dimension_semantics=("parallel",)),
    )(x_t, w_in, b_in, w_mid, b_mid, w_out, b_out)

    # (1, N) -> (N, 1): a cheap layout change on the tiny output.
    return out_t[:, :n].T


def dnn_forward(x, params, *, tile_n=None, use_bf16=False):
    """PyTorch-style interface: x [N, INPUT_DIM] -> [N, OUTPUT_DIM].

    Prefer `dnn_forward_t` (feature-major (2, N) input) when the caller can
    provide it: this wrapper's x.T is a standalone XLA transpose (a small
    serial HBM prologue; the kernel itself is strongly compute-bound).
    """
    return dnn_forward_t(x.T, params, tile_n=tile_n, use_bf16=use_bf16)


def init_params(key):
    """Deterministic init mimicking nn.Linear default (U(-1/sqrt(fan_in), +)).

    Weights in PyTorch layout [out_features, in_features]; biases as
    [out_features, 1] column vectors for the feature-major kernel layout.
    """
    def linear(key, fan_in, fan_out):
        kw, kb = jax.random.split(key)
        bound = 1.0 / jnp.sqrt(float(fan_in))
        w = jax.random.uniform(kw, (fan_out, fan_in), jnp.float32, -bound, bound)
        b = jax.random.uniform(kb, (fan_out, 1), jnp.float32, -bound, bound)
        return w, b

    keys = jax.random.split(key, HIDDEN_LAYERS + 1)
    w_in, b_in = linear(keys[0], INPUT_DIM, NEURONS)            # (40, 2), (40, 1)
    w_mid_list, b_mid_list = [], []
    for l in range(N_MID):
        w, b = linear(keys[1 + l], NEURONS, NEURONS)
        w_mid_list.append(w)
        b_mid_list.append(b)
    w_mid = jnp.stack(w_mid_list, axis=0)                       # (7, 40, 40)
    b_mid = jnp.stack(b_mid_list, axis=0)                       # (7, 40, 1)
    w_out, b_out = linear(keys[-1], NEURONS, OUTPUT_DIM)        # (1, 40), (1, 1)
    return (w_in, b_in, w_mid, b_mid, w_out, b_out)


def dnn_forward_ref(x, params):
    """Pure-JAX reference (standard batch-major math) for correctness check."""
    w_in, b_in, w_mid, b_mid, w_out, b_out = params
    h = jnp.tanh(x @ w_in.T + b_in.T)
    for l in range(N_MID):
        h = jnp.tanh(h @ w_mid[l].T + b_mid[l].T)
    return h @ w_out.T + b_out.T


if __name__ == "__main__":
    key = jax.random.PRNGKey(0)
    k_params, k_x = jax.random.split(key)

    params = init_params(k_params)

    # Small demo batch of 2-D input points (e.g. (x, t) coords for the PINN).
    # Built feature-major so the fast path needs no wrapper transpose.
    N = 2048
    x_t = jax.random.normal(k_x, (INPUT_DIM, N), dtype=jnp.float32)  # (2, N)
    x = x_t.T                                                        # (N, 2)

    ref = dnn_forward_ref(x, params)

    # Fast feature-major path; auto tile -> 2 parallel steps of 1024 here.
    out = jax.block_until_ready(dnn_forward_t(x_t, params))
    assert out.shape == (N, OUTPUT_DIM)
    assert jnp.allclose(out, ref, atol=1e-4, rtol=1e-4)

    # PyTorch-style (N, 2) interface (same compiled kernel; thin transpose).
    out_pt = jax.block_until_ready(dnn_forward(x, params))
    assert jnp.allclose(out_pt, ref, atol=1e-4, rtol=1e-4)

    # Non-multiple-of-128 batch exercises the zero-pad / slice path.
    x_small = x[:300]
    out_small = jax.block_until_ready(dnn_forward(x_small, params))
    assert out_small.shape == (300, OUTPUT_DIM)
    assert jnp.allclose(out_small, dnn_forward_ref(x_small, params),
                        atol=1e-4, rtol=1e-4)

    # Optional bf16-operand MXU path (f32 accumulate): faster matmul issue,
    # validated at a looser tolerance (use only if PINN accuracy allows).
    out_bf16 = jax.block_until_ready(dnn_forward_t(x_t, params, use_bf16=True))
    assert jnp.allclose(out_bf16, ref, atol=1e-1)

    print("KERNEL_OK")
</pallas_src>

<mosaic_0001>
module attributes {stable_mosaic.version = 11 : i64} {
  func.func @_mlp_kernel(%arg0: i32, %arg1: memref<2x1024xf32, #tpu.memory_space<vmem>>, %arg2: memref<40x2xf32, #tpu.memory_space<vmem>>, %arg3: memref<40x1xf32, #tpu.memory_space<vmem>>, %arg4: memref<7x40x40xf32, #tpu.memory_space<vmem>>, %arg5: memref<7x40x1xf32, #tpu.memory_space<vmem>>, %arg6: memref<1x40xf32, #tpu.memory_space<vmem>>, %arg7: memref<1x1xf32, #tpu.memory_space<vmem>>, %arg8: memref<1x1024xf32, #tpu.memory_space<vmem>>) attributes {dimension_semantics = [#tpu.dimension_semantics<parallel>], iteration_bounds = array<i64: 2>, scalar_prefetch = 0 : i64, scratch_operands = 0 : i64, tpu.core_type = #tpu.core_type<tc>, window_params = [{transform_indices = @transform_0, window_bounds = array<i64: 2, 1024>}, {pipeline_mode = #tpu.pipeline_mode<synchronous>, transform_indices = @transform_1, window_bounds = array<i64: 40, 2>}, {pipeline_mode = #tpu.pipeline_mode<synchronous>, transform_indices = @transform_2, window_bounds = array<i64: 40, 1>}, {pipeline_mode = #tpu.pipeline_mode<synchronous>, transform_indices = @transform_3, window_bounds = array<i64: 7, 40, 40>}, {pipeline_mode = #tpu.pipeline_mode<synchronous>, transform_indices = @transform_4, window_bounds = array<i64: 7, 40, 1>}, {pipeline_mode = #tpu.pipeline_mode<synchronous>, transform_indices = @transform_5, window_bounds = array<i64: 1, 40>}, {pipeline_mode = #tpu.pipeline_mode<synchronous>, transform_indices = @transform_6, window_bounds = array<i64: 1, 1>}, {transform_indices = @transform_7, window_bounds = array<i64: 1, 1024>}]} {
    %c0 = arith.constant 0 : index
    %c0_0 = arith.constant 0 : index
    %0 = vector.load %arg1[%c0, %c0_0] : memref<2x1024xf32, #tpu.memory_space<vmem>>, vector<2x1024xf32>
    %c0_1 = arith.constant 0 : index
    %c0_2 = arith.constant 0 : index
    %1 = vector.load %arg2[%c0_1, %c0_2] : memref<40x2xf32, #tpu.memory_space<vmem>>, vector<40x2xf32>
    %2 = vector.extract_strided_slice %1 {offsets = [0, 0], sizes = [40, 1], strides = [1, 1]} : vector<40x2xf32> to vector<40x1xf32>
    %3 = vector.extract_strided_slice %0 {offsets = [0, 0], sizes = [1, 1024], strides = [1, 1]} : vector<2x1024xf32> to vector<1x1024xf32>
    %4 = vector.broadcast %2 : vector<40x1xf32> to vector<40x1024xf32>
    %5 = vector.broadcast %3 : vector<1x1024xf32> to vector<40x1024xf32>
    %6 = arith.mulf %4, %5 : vector<40x1024xf32>
    %7 = vector.extract_strided_slice %1 {offsets = [0, 1], sizes = [40, 1], strides = [1, 1]} : vector<40x2xf32> to vector<40x1xf32>
    %8 = vector.extract_strided_slice %0 {offsets = [1, 0], sizes = [1, 1024], strides = [1, 1]} : vector<2x1024xf32> to vector<1x1024xf32>
    %9 = vector.broadcast %7 : vector<40x1xf32> to vector<40x1024xf32>
    %10 = vector.broadcast %8 : vector<1x1024xf32> to vector<40x1024xf32>
    %11 = arith.mulf %9, %10 : vector<40x1024xf32>
    %12 = arith.addf %6, %11 : vector<40x1024xf32>
    %c0_3 = arith.constant 0 : index
    %c0_4 = arith.constant 0 : index
    %13 = vector.load %arg3[%c0_3, %c0_4] : memref<40x1xf32, #tpu.memory_space<vmem>>, vector<40x1xf32>
    %14 = vector.broadcast %13 : vector<40x1xf32> to vector<40x1024xf32>
    %15 = arith.addf %12, %14 : vector<40x1024xf32>
    %16 = math.tanh %15 : vector<40x1024xf32>
    %c0_5 = arith.constant 0 : index
    %c0_6 = arith.constant 0 : index
    %c0_7 = arith.constant 0 : index
    %17 = vector.load %arg4[%c0_5, %c0_6, %c0_7] : memref<7x40x40xf32, #tpu.memory_space<vmem>>, vector<7x40x40xf32>
    %18 = vector.extract_strided_slice %17 {offsets = [0, 0, 0], sizes = [1, 40, 40], strides = [1, 1, 1]} : vector<7x40x40xf32> to vector<1x40x40xf32>
    %19 = vector.shape_cast %18 : vector<1x40x40xf32> to vector<40x40xf32>
    %cst = arith.constant dense<0.000000e+00> : vector<40x1024xf32>
    %20 = tpu.matmul %19, %16, %cst {dimension_numbers = #tpu.dot_dimension_numbers<[1], [0], [0], [1], [0, 0, 1, 1], [], []>} : vector<40x40xf32>, vector<40x1024xf32>, vector<40x1024xf32> -> vector<40x1024xf32>
    %c0_8 = arith.constant 0 : index
    %c0_9 = arith.constant 0 : index
    %c0_10 = arith.constant 0 : index
    %21 = vector.load %arg5[%c0_8, %c0_9, %c0_10] : memref<7x40x1xf32, #tpu.memory_space<vmem>>, vector<1x40x1xf32>
    %22 = vector.shape_cast %21 : vector<1x40x1xf32> to vector<40x1xf32>
    %23 = vector.broadcast %22 : vector<40x1xf32> to vector<40x1024xf32>
    %24 = arith.addf %20, %23 : vector<40x1024xf32>
    %25 = math.tanh %24 : vector<40x1024xf32>
    %26 = vector.extract_strided_slice %17 {offsets = [1, 0, 0], sizes = [1, 40, 40], strides = [1, 1, 1]} : vector<7x40x40xf32> to vector<1x40x40xf32>
    %27 = vector.shape_cast %26 : vector<1x40x40xf32> to vector<40x40xf32>
    %cst_11 = arith.constant dense<0.000000e+00> : vector<40x1024xf32>
    %28 = tpu.matmul %27, %25, %cst_11 {dimension_numbers = #tpu.dot_dimension_numbers<[1], [0], [0], [1], [0, 0, 1, 1], [], []>} : vector<40x40xf32>, vector<40x1024xf32>, vector<40x1024xf32> -> vector<40x1024xf32>
    %c1 = arith.constant 1 : index
    %c0_12 = arith.constant 0 : index
    %c0_13 = arith.constant 0 : index
    %29 = vector.load %arg5[%c1, %c0_12, %c0_13] : memref<7x40x1xf32, #tpu.memory_space<vmem>>, vector<1x40x1xf32>
    %30 = vector.shape_cast %29 : vector<1x40x1xf32> to vector<40x1xf32>
    %31 = vector.broadcast %30 : vector<40x1xf32> to vector<40x1024xf32>
    %32 = arith.addf %28, %31 : vector<40x1024xf32>
    %33 = math.tanh %32 : vector<40x1024xf32>
    %34 = vector.extract_strided_slice %17 {offsets = [2, 0, 0], sizes = [1, 40, 40], strides = [1, 1, 1]} : vector<7x40x40xf32> to vector<1x40x40xf32>
    %35 = vector.shape_cast %34 : vector<1x40x40xf32> to vector<40x40xf32>
    %cst_14 = arith.constant dense<0.000000e+00> : vector<40x1024xf32>
    %36 = tpu.matmul %35, %33, %cst_14 {dimension_numbers = #tpu.dot_dimension_numbers<[1], [0], [0], [1], [0, 0, 1, 1], [], []>} : vector<40x40xf32>, vector<40x1024xf32>, vector<40x1024xf32> -> vector<40x1024xf32>
    %c2 = arith.constant 2 : index
    %c0_15 = arith.constant 0 : index
    %c0_16 = arith.constant 0 : index
    %37 = vector.load %arg5[%c2, %c0_15, %c0_16] : memref<7x40x1xf32, #tpu.memory_space<vmem>>, vector<1x40x1xf32>
    %38 = vector.shape_cast %37 : vector<1x40x1xf32> to vector<40x1xf32>
    %39 = vector.broadcast %38 : vector<40x1xf32> to vector<40x1024xf32>
    %40 = arith.addf %36, %39 : vector<40x1024xf32>
    %41 = math.tanh %40 : vector<40x1024xf32>
    %42 = vector.extract_strided_slice %17 {offsets = [3, 0, 0], sizes = [1, 40, 40], strides = [1, 1, 1]} : vector<7x40x40xf32> to vector<1x40x40xf32>
    %43 = vector.shape_cast %42 : vector<1x40x40xf32> to vector<40x40xf32>
    %cst_17 = arith.constant dense<0.000000e+00> : vector<40x1024xf32>
    %44 = tpu.matmul %43, %41, %cst_17 {dimension_numbers = #tpu.dot_dimension_numbers<[1], [0], [0], [1], [0, 0, 1, 1], [], []>} : vector<40x40xf32>, vector<40x1024xf32>, vector<40x1024xf32> -> vector<40x1024xf32>
    %c3 = arith.constant 3 : index
    %c0_18 = arith.constant 0 : index
    %c0_19 = arith.constant 0 : index
    %45 = vector.load %arg5[%c3, %c0_18, %c0_19] : memref<7x40x1xf32, #tpu.memory_space<vmem>>, vector<1x40x1xf32>
    %46 = vector.shape_cast %45 : vector<1x40x1xf32> to vector<40x1xf32>
    %47 = vector.broadcast %46 : vector<40x1xf32> to vector<40x1024xf32>
    %48 = arith.addf %44, %47 : vector<40x1024xf32>
    %49 = math.tanh %48 : vector<40x1024xf32>
    %50 = vector.extract_strided_slice %17 {offsets = [4, 0, 0], sizes = [1, 40, 40], strides = [1, 1, 1]} : vector<7x40x40xf32> to vector<1x40x40xf32>
    %51 = vector.shape_cast %50 : vector<1x40x40xf32> to vector<40x40xf32>
    %cst_20 = arith.constant dense<0.000000e+00> : vector<40x1024xf32>
    %52 = tpu.matmul %51, %49, %cst_20 {dimension_numbers = #tpu.dot_dimension_numbers<[1], [0], [0], [1], [0, 0, 1, 1], [], []>} : vector<40x40xf32>, vector<40x1024xf32>, vector<40x1024xf32> -> vector<40x1024xf32>
    %c4 = arith.constant 4 : index
    %c0_21 = arith.constant 0 : index
    %c0_22 = arith.constant 0 : index
    %53 = vector.load %arg5[%c4, %c0_21, %c0_22] : memref<7x40x1xf32, #tpu.memory_space<vmem>>, vector<1x40x1xf32>
    %54 = vector.shape_cast %53 : vector<1x40x1xf32> to vector<40x1xf32>
    %55 = vector.broadcast %54 : vector<40x1xf32> to vector<40x1024xf32>
    %56 = arith.addf %52, %55 : vector<40x1024xf32>
    %57 = math.tanh %56 : vector<40x1024xf32>
    %58 = vector.extract_strided_slice %17 {offsets = [5, 0, 0], sizes = [1, 40, 40], strides = [1, 1, 1]} : vector<7x40x40xf32> to vector<1x40x40xf32>
    %59 = vector.shape_cast %58 : vector<1x40x40xf32> to vector<40x40xf32>
    %cst_23 = arith.constant dense<0.000000e+00> : vector<40x1024xf32>
    %60 = tpu.matmul %59, %57, %cst_23 {dimension_numbers = #tpu.dot_dimension_numbers<[1], [0], [0], [1], [0, 0, 1, 1], [], []>} : vector<40x40xf32>, vector<40x1024xf32>, vector<40x1024xf32> -> vector<40x1024xf32>
    %c5 = arith.constant 5 : index
    %c0_24 = arith.constant 0 : index
    %c0_25 = arith.constant 0 : index
    %61 = vector.load %arg5[%c5, %c0_24, %c0_25] : memref<7x40x1xf32, #tpu.memory_space<vmem>>, vector<1x40x1xf32>
    %62 = vector.shape_cast %61 : vector<1x40x1xf32> to vector<40x1xf32>
    %63 = vector.broadcast %62 : vector<40x1xf32> to vector<40x1024xf32>
    %64 = arith.addf %60, %63 : vector<40x1024xf32>
    %65 = math.tanh %64 : vector<40x1024xf32>
    %66 = vector.extract_strided_slice %17 {offsets = [6, 0, 0], sizes = [1, 40, 40], strides = [1, 1, 1]} : vector<7x40x40xf32> to vector<1x40x40xf32>
    %67 = vector.shape_cast %66 : vector<1x40x40xf32> to vector<40x40xf32>
    %cst_26 = arith.constant dense<0.000000e+00> : vector<40x1024xf32>
    %68 = tpu.matmul %67, %65, %cst_26 {dimension_numbers = #tpu.dot_dimension_numbers<[1], [0], [0], [1], [0, 0, 1, 1], [], []>} : vector<40x40xf32>, vector<40x1024xf32>, vector<40x1024xf32> -> vector<40x1024xf32>
    %c6 = arith.constant 6 : index
    %c0_27 = arith.constant 0 : index
    %c0_28 = arith.constant 0 : index
    %69 = vector.load %arg5[%c6, %c0_27, %c0_28] : memref<7x40x1xf32, #tpu.memory_space<vmem>>, vector<1x40x1xf32>
    %70 = vector.shape_cast %69 : vector<1x40x1xf32> to vector<40x1xf32>
    %71 = vector.broadcast %70 : vector<40x1xf32> to vector<40x1024xf32>
    %72 = arith.addf %68, %71 : vector<40x1024xf32>
    %73 = math.tanh %72 : vector<40x1024xf32>
    %c0_29 = arith.constant 0 : index
    %c0_30 = arith.constant 0 : index
    %74 = vector.load %arg6[%c0_29, %c0_30] : memref<1x40xf32, #tpu.memory_space<vmem>>, vector<1x40xf32>
    %cst_31 = arith.constant dense<0.000000e+00> : vector<1x1024xf32>
    %75 = tpu.matmul %74, %73, %cst_31 {dimension_numbers = #tpu.dot_dimension_numbers<[1], [0], [0], [1], [0, 0, 1, 1], [], []>} : vector<1x40xf32>, vector<40x1024xf32>, vector<1x1024xf32> -> vector<1x1024xf32>
    %c0_32 = arith.constant 0 : index
    %c0_33 = arith.constant 0 : index
    %76 = vector.load %arg7[%c0_32, %c0_33] : memref<1x1xf32, #tpu.memory_space<vmem>>, vector<1x1xf32>
    %77 = vector.broadcast %76 : vector<1x1xf32> to vector<1x1024xf32>
    %78 = arith.addf %75, %77 : vector<1x1024xf32>
    %c0_34 = arith.constant 0 : index
    %c0_35 = arith.constant 0 : index
    %79 = vector.load %arg8[%c0_34, %c0_35] : memref<1x1024xf32, #tpu.memory_space<vmem>>, vector<1x1024xf32>
    tpu.vector_store %arg8[%c0_34, %c0_35], %78 {strides = array<i32>} : memref<1x1024xf32, #tpu.memory_space<vmem>>, vector<1x1024xf32>,
    return
  }
  func.func @transform_0(%arg0: i32) -> (i32, i32) {
    %c0_i32 = arith.constant 0 : i32
    %c0_i32_0 = arith.constant 0 : i32
    return %c0_i32, %arg0 : i32, i32
  }
  func.func @transform_1(%arg0: i32) -> (i32, i32) {
    %c0_i32 = arith.constant 0 : i32
    %c0_i32_0 = arith.constant 0 : i32
    %c0_i32_1 = arith.constant 0 : i32
    return %c0_i32, %c0_i32_0 : i32, i32
  }
  func.func @transform_2(%arg0: i32) -> (i32, i32) {
    %c0_i32 = arith.constant 0 : i32
    %c0_i32_0 = arith.constant 0 : i32
    %c0_i32_1 = arith.constant 0 : i32
    return %c0_i32, %c0_i32_0 : i32, i32
  }
  func.func @transform_3(%arg0: i32) -> (i32, i32, i32) {
    %c0_i32 = arith.constant 0 : i32
    %c0_i32_0 = arith.constant 0 : i32
    %c0_i32_1 = arith.constant 0 : i32
    %c0_i32_2 = arith.constant 0 : i32
    return %c0_i32, %c0_i32_0, %c0_i32_1 : i32, i32, i32
  }
  func.func @transform_4(%arg0: i32) -> (i32, i32, i32) {
    %c0_i32 = arith.constant 0 : i32
    %c0_i32_0 = arith.constant 0 : i32
    %c0_i32_1 = arith.constant 0 : i32
    %c0_i32_2 = arith.constant 0 : i32
    return %c0_i32, %c0_i32_0, %c0_i32_1 : i32, i32, i32
  }
  func.func @transform_5(%arg0: i32) -> (i32, i32) {
    %c0_i32 = arith.constant 0 : i32
    %c0_i32_0 = arith.constant 0 : i32
    %c0_i32_1 = arith.constant 0 : i32
    return %c0_i32, %c0_i32_0 : i32, i32
  }
  func.func @transform_6(%arg0: i32) -> (i32, i32) {
    %c0_i32 = arith.constant 0 : i32
    %c0_i32_0 = arith.constant 0 : i32
    %c0_i32_1 = arith.constant 0 : i32
    return %c0_i32, %c0_i32_0 : i32, i32
  }
  func.func @transform_7(%arg0: i32) -> (i32, i32) {
    %c0_i32 = arith.constant 0 : i32
    %c0_i32_0 = arith.constant 0 : i32
    return %c0_i32, %arg0 : i32, i32
  }
}

</mosaic_0001>

<llo_original>
// kernel: dnn_forward_t.1
$region0: #{dnn_forward_t.1}
  #allocation0 [shape = 'u32[]', space=smem, size = 0x4, offset = 0x4, fixed_abs, tag = 'smem constant byte address 0x4 - core index']
  #allocation1 [shape = 'u32[144,128]{1,0:T(1,128)}', space=vmem, size = 0x12000, scoped, tag = 'internal scratch']
  #allocation2 [shape = 'f32[1,1]{1,0:T(1,128)S(1)}', space=vmem, size = 0x200, scoped, tag = 'scoped memory for dnn_forward_t.1']
  %s0 = inlined_call_operand.vmem [shape: f32[2,2048], index: 0, kind: input, shape index: {}]
  %s1 = inlined_call_operand.vmem [shape: f32[40,2], index: 1, kind: input, shape index: {}]
  %s2 = inlined_call_operand.vmem [shape: f32[40,1], index: 2, kind: input, shape index: {}]
  %s3 = inlined_call_operand.vmem [shape: f32[7,40,40], index: 3, kind: input, shape index: {}]
  %s4 = inlined_call_operand.vmem [shape: f32[7,40,1], index: 4, kind: input, shape index: {}]
  %s5 = inlined_call_operand.vmem [shape: f32[1,40], index: 5, kind: input, shape index: {}]
  %s6 = inlined_call_operand.<no memory space> [shape: f32[1,1], index: 6, kind: input, shape index: {}]
  %s7 = inlined_call_operand.hbm [shape: f32[1,2048], index: 7, kind: output, shape index: {}]
  %s8 = sld [smem:[#allocation0]]
  $region61: #{dnn_forward_t.1} parent=0
    _
  %s10 = ssub.s32 1, %s8
  %s11 = scalar_select 0, %s10, %s8
  %v12 = vstv %s6
  %13 = vst [vmem:[#allocation2] sm:$0x1] %v12
  $region1: #{dnn_forward_t.1} parent=0
    #allocation3 [shape = 'u8[8192]{0}', space=vmem, size = 0x2000, scoped, tag = 'output window, operand 0']
    #allocation4 [shape = 's32[2]{0}', space=sflag, size = 0x8, scoped, tag = 'scoped memory for dnn_forward_t.1']
    %14 = vsyncpa [#allocation4], 0
    %s15 = scalar_lea.sflag [#allocation4], 1
    %16 = vsyncpa %s15, 0
    loop: start=0, step=1, limit=4
    $region2: #{dnn_forward_t.1} parent=1 // loop_pre_header
      _
    $region3: #{dnn_forward_t.1} parent=1 // loop_header
      %s18 = sphi 0, %s22
      %p19 = scmp.ge.s32.totalorder %s18, 4
      %s28 = sphi 0, %s30
      %s31 = sphi 0, %s28
      %s32 = sphi 0, %s31
      %s48 = sphi 0, %s32
      %s52 = sphi 0, %s52
      %s54 = sphi 0, %s52
      %s55 = sphi 0, %s54
      %s69 = sphi 0, %s55
      %s73 = sphi 0, %s73
      %s75 = sphi 0, %s73
      %s76 = sphi 0, %s75
      %s90 = sphi 0, %s76
      %s94 = sphi 0, %s94
      %s96 = sphi 0, %s94
      %s97 = sphi 0, %s96
      %s111 = sphi 0, %s97
      %s115 = sphi 0, %s115
      %s117 = sphi 0, %s115
      %s118 = sphi 0, %s117
      %s132 = sphi 0, %s118
      %s136 = sphi 0, %s136
      %s138 = sphi 0, %s136
      %s139 = sphi 0, %s138
      %s153 = sphi 0, %s139
      %s157 = sphi 0, %s157
      %s159 = sphi 0, %s157
      %s160 = sphi 0, %s159
      %s174 = sphi 0, %s160
      %s180 = sphi 0, %s182
      %s183 = sphi 0, %s180
      %s184 = sphi 0, %s183
      %s200 = sphi 0, %s184
    $region4: #{dnn_forward_t.1} parent=1 // loop_header_branch
      %21 = sbr.rel (%p19) target = $region8
    $region5: #{dnn_forward_t.1} parent=1 // loop_body
      %s23 = ssub.s32 %s18, 1
      %s24 = ssub.s32 %s18, 2
      %s25 = sadd.s32 %s18, 1
      %s26 = ssub.s32 %s18, %s25
      %p27 = scmp.eq.s32.totalorder %s26, 0
      %s29 = sadd.s32 %s28, 1
      %s30 = scalar_select %p27, %s28, %s29
      %p33 = pneg %p27
      %p34 = scmp.eq.s32.totalorder %s18, 1
      %p35 = por %p33, %p34
      %p36 = scmp.ne.s32.totalorder %s28, %s31
      %p37 = scmp.eq.s32.totalorder %s18, 0
      %p38 = por %p36, %p37
      %p39 = scmp.ne.s32.totalorder %s28, %s31
      %p40 = scmp.eq.s32.totalorder %s23, 1
      %p41 = por %p39, %p40
      %p42 = scmp.ne.s32.totalorder %s31, %s32
      %p43 = scmp.eq.s32.totalorder %s23, 0
      %p44 = por %p42, %p43
      %p45 = scmp.ne.s32.totalorder %s31, %s32
      %p46 = scmp.eq.s32.totalorder %s24, 1
      %p47 = por %p45, %p46
      %p49 = scmp.ne.s32.totalorder %s32, %s48
      %p50 = scmp.eq.s32.totalorder %s24, 0
      %p51 = por %p49, %p50
      %s53 = sadd.s32 %s52, 1
      %p56 = scmp.eq.s32.totalorder %s18, 1
      %p57 = scmp.ne.s32.totalorder %s52, %s54
      %p58 = scmp.eq.s32.totalorder %s18, 0
      %p59 = por %p57, %p58
      %p60 = scmp.ne.s32.totalorder %s52, %s54
      %p61 = scmp.eq.s32.totalorder %s23, 1
      %p62 = por %p60, %p61
      %p63 = scmp.ne.s32.totalorder %s54, %s55
      %p64 = scmp.eq.s32.totalorder %s23, 0
      %p65 = por %p63, %p64
      %p66 = scmp.ne.s32.totalorder %s54, %s55
      %p67 = scmp.eq.s32.totalorder %s24, 1
      %p68 = por %p66, %p67
      %p70 = scmp.ne.s32.totalorder %s55, %s69
      %p71 = scmp.eq.s32.totalorder %s24, 0
      %p72 = por %p70, %p71
      %s74 = sadd.s32 %s73, 1
      %p77 = scmp.eq.s32.totalorder %s18, 1
      %p78 = scmp.ne.s32.totalorder %s73, %s75
      %p79 = scmp.eq.s32.totalorder %s18, 0
      %p80 = por %p78, %p79
      %p81 = scmp.ne.s32.totalorder %s73, %s75
      %p82 = scmp.eq.s32.totalorder %s23, 1
      %p83 = por %p81, %p82
      %p84 = scmp.ne.s32.totalorder %s75, %s76
      %p85 = scmp.eq.s32.totalorder %s23, 0
      %p86 = por %p84, %p85
      %p87 = scmp.ne.s32.totalorder %s75, %s76
      %p88 = scmp.eq.s32.totalorder %s24, 1
      %p89 = por %p87, %p88
      %p91 = scmp.ne.s32.totalorder %s76, %s90
      %p92 = scmp.eq.s32.totalorder %s24, 0
      %p93 = por %p91, %p92
      %s95 = sadd.s32 %s94, 1
      %p98 = scmp.eq.s32.totalorder %s18, 1
      %p99 = scmp.ne.s32.totalorder %s94, %s96
      %p100 = scmp.eq.s32.totalorder %s18, 0
      %p101 = por %p99, %p100
      %p102 = scmp.ne.s32.totalorder %s94, %s96
      %p103 = scmp.eq.s32.totalorder %s23, 1
      %p104 = por %p102, %p103
      %p105 = scmp.ne.s32.totalorder %s96, %s97
      %p106 = scmp.eq.s32.totalorder %s23, 0
      %p107 = por %p105, %p106
      %p108 = scmp.ne.s32.totalorder %s96, %s97
      %p109 = scmp.eq.s32.totalorder %s24, 1
      %p110 = por %p108, %p109
      %p112 = scmp.ne.s32.totalorder %s97, %s111
      %p113 = scmp.eq.s32.totalorder %s24, 0
      %p114 = por %p112, %p113
      %s116 = sadd.s32 %s115, 1
      %p119 = scmp.eq.s32.totalorder %s18, 1
      %p120 = scmp.ne.s32.totalorder %s115, %s117
      %p121 = scmp.eq.s32.totalorder %s18, 0
      %p122 = por %p120, %p121
      %p123 = scmp.ne.s32.totalorder %s115, %s117
      %p124 = scmp.eq.s32.totalorder %s23, 1
      %p125 = por %p123, %p124
      %p126 = scmp.ne.s32.totalorder %s117, %s118
      %p127 = scmp.eq.s32.totalorder %s23, 0
      %p128 = por %p126, %p127
      %p129 = scmp.ne.s32.totalorder %s117, %s118
      %p130 = scmp.eq.s32.totalorder %s24, 1
      %p131 = por %p129, %p130
      %p133 = scmp.ne.s32.totalorder %s118, %s132
      %p134 = scmp.eq.s32.totalorder %s24, 0
      %p135 = por %p133, %p134
      %s137 = sadd.s32 %s136, 1
      %p140 = scmp.eq.s32.totalorder %s18, 1
      %p141 = scmp.ne.s32.totalorder %s136, %s138
      %p142 = scmp.eq.s32.totalorder %s18, 0
      %p143 = por %p141, %p142
      %p144 = scmp.ne.s32.totalorder %s136, %s138
      %p145 = scmp.eq.s32.totalorder %s23, 1
      %p146 = por %p144, %p145
      %p147 = scmp.ne.s32.totalorder %s138, %s139
      %p148 = scmp.eq.s32.totalorder %s23, 0
      %p149 = por %p147, %p148
      %p150 = scmp.ne.s32.totalorder %s138, %s139
      %p151 = scmp.eq.s32.totalorder %s24, 1
      %p152 = por %p150, %p151
      %p154 = scmp.ne.s32.totalorder %s139, %s153
      %p155 = scmp.eq.s32.totalorder %s24, 0
      %p156 = por %p154, %p155
      %s158 = sadd.s32 %s157, 1
      %p161 = scmp.eq.s32.totalorder %s18, 1
      %p162 = scmp.ne.s32.totalorder %s157, %s159
      %p163 = scmp.eq.s32.totalorder %s18, 0
      %p164 = por %p162, %p163
      %p165 = scmp.ne.s32.totalorder %s157, %s159
      %p166 = scmp.eq.s32.totalorder %s23, 1
      %p167 = por %p165, %p166
      %p168 = scmp.ne.s32.totalorder %s159, %s160
      %p169 = scmp.eq.s32.totalorder %s23, 0
      %p170 = por %p168, %p169
      %p171 = scmp.ne.s32.totalorder %s159, %s160
      %p172 = scmp.eq.s32.totalorder %s24, 1
      %p173 = por %p171, %p172
      %p175 = scmp.ne.s32.totalorder %s160, %s174
      %p176 = scmp.eq.s32.totalorder %s24, 0
      %p177 = por %p175, %p176
      %s178 = ssub.s32 %s18, %s25
      %p179 = scmp.eq.s32.totalorder %s178, 0
      %s181 = sadd.s32 %s180, 1
      %s182 = scalar_select %p179, %s180, %s181
      %p185 = pneg %p179
      %p186 = scmp.eq.s32.totalorder %s18, 1
      %p187 = por %p185, %p186
      %p188 = scmp.ne.s32.totalorder %s180, %s183
      %p189 = scmp.eq.s32.totalorder %s18, 0
      %p190 = por %p188, %p189
      %p191 = scmp.ne.s32.totalorder %s180, %s183
      %p192 = scmp.eq.s32.totalorder %s23, 1
      %p193 = por %p191, %p192
      %p194 = scmp.ne.s32.totalorder %s183, %s184
      %p195 = scmp.eq.s32.totalorder %s23, 0
      %p196 = por %p194, %p195
      %p197 = scmp.ne.s32.totalorder %s183, %s184
      %p198 = scmp.eq.s32.totalorder %s24, 1
      %p199 = por %p197, %p198
      %p201 = scmp.ne.s32.totalorder %s184, %s200
      %p202 = scmp.eq.s32.totalorder %s24, 0
      %p203 = por %p201, %p202
      %p204 = scmp.le.s32.totalorder 1, %s18
      %p205 = scmp.lt.s32.totalorder %s18, 3
      %p206 = pnand %p204, %p205
      %p207 = pneg %p206
      // Predicated region
      $region9: #{dnn_forward_t.1} parent=5 // pred_check
        _
      $region10: #{dnn_forward_t.1} parent=5 // pred_check_branch
        %209 = sbr.rel (%p206) target = $region12
      $region11: #{dnn_forward_t.1} parent=5 // pred_region
        %s210 = ssub.s32 %s18, 1
        // Predicated region
        $region13: #{dnn_forward_t.1} parent=11 // pred_check
          %p211 = pneg %p65
        $region14: #{dnn_forward_t.1} parent=11 // pred_check_branch
          %213 = sbr.rel (%p211) target = $region16
        $region15: #{dnn_forward_t.1} parent=11 // pred_region
          _
        $region16: #{dnn_forward_t.1} parent=11 // pred_fallthru
          _
        // Predicated region
        $region17: #{dnn_forward_t.1} parent=11 // pred_check
          %p214 = pneg %p86
        $region18: #{dnn_forward_t.1} parent=11 // pred_check_branch
          %216 = sbr.rel (%p214) target = $region20
        $region19: #{dnn_forward_t.1} parent=11 // pred_region
          _
        $region20: #{dnn_forward_t.1} parent=11 // pred_fallthru
          _
        // Predicated region
        $region21: #{dnn_forward_t.1} parent=11 // pred_check
          %p217 = pneg %p107
        $region22: #{dnn_forward_t.1} parent=11 // pred_check_branch
          %219 = sbr.rel (%p217) target = $region24
        $region23: #{dnn_forward_t.1} parent=11 // pred_region
          _
        $region24: #{dnn_forward_t.1} parent=11 // pred_fallthru
          _
        // Predicated region
        $region25: #{dnn_forward_t.1} parent=11 // pred_check
          %p220 = pneg %p128
        $region26: #{dnn_forward_t.1} parent=11 // pred_check_branch
          %222 = sbr.rel (%p220) target = $region28
        $region27: #{dnn_forward_t.1} parent=11 // pred_region
          _
        $region28: #{dnn_forward_t.1} parent=11 // pred_fallthru
          _
        // Predicated region
        $region29: #{dnn_forward_t.1} parent=11 // pred_check
          %p223 = pneg %p149
        $region30: #{dnn_forward_t.1} parent=11 // pred_check_branch
          %225 = sbr.rel (%p223) target = $region32
        $region31: #{dnn_forward_t.1} parent=11 // pred_region
          _
        $region32: #{dnn_forward_t.1} parent=11 // pred_fallthru
          _
        // Predicated region
        $region33: #{dnn_forward_t.1} parent=11 // pred_check
          %p226 = pneg %p170
        $region34: #{dnn_forward_t.1} parent=11 // pred_check_branch
          %228 = sbr.rel (%p226) target = $region36
        $region35: #{dnn_forward_t.1} parent=11 // pred_region
          _
        $region36: #{dnn_forward_t.1} parent=11 // pred_fallthru
          _
      $region12: #{dnn_forward_t.1} parent=5 // pred_fallthru
        _
      %p229 = scmp.lt.s32.totalorder %s18, 2
      // Predicated region
      $region37: #{dnn_forward_t.1} parent=5 // pred_check
        %p230 = pneg %p229
      $region38: #{dnn_forward_t.1} parent=5 // pred_check_branch
        %232 = sbr.rel (%p230) target = $region40
      $region39: #{dnn_forward_t.1} parent=5 // pred_region
        // Predicated region
        $region41: #{dnn_forward_t.1} parent=39 // pred_check
          %p233 = pneg %p38
        $region42: #{dnn_forward_t.1} parent=39 // pred_check_branch
          %235 = sbr.rel (%p233) target = $region44
        $region43: #{dnn_forward_t.1} parent=39 // pred_region
          %s236 = smul.u32 8, %s18
          %p237 = scmp.lt.s32.totalorder %s236, 15
          %s238 = scalar_select %p237, %s236, 15
          %s239 = smul.addr %s238, 2
          %s240 = scalar_lea.vmem %s0, %s239
          %s241 = smul.u32 8, %s18
        $region44: #{dnn_forward_t.1} parent=39 // pred_fallthru
          _
      $region40: #{dnn_forward_t.1} parent=5 // pred_fallthru
        _
      %p242 = scmp.le.s32.totalorder 1, %s18
      %p243 = scmp.lt.s32.totalorder %s18, 3
      %p244 = pnand %p242, %p243
      %p245 = pneg %p244
      // Predicated region
      $region45: #{dnn_forward_t.1} parent=5 // pred_check
        _
      $region46: #{dnn_forward_t.1} parent=5 // pred_check_branch
        %247 = sbr.rel (%p244) target = $region48
      $region47: #{dnn_forward_t.1} parent=5 // pred_region
        %s248 = ssub.s32 %s18, 1
        %s249 = smul.u32 8, %s23
        %p250 = scmp.lt.s32.totalorder %s249, 15
        %s251 = scalar_select %p250, %s249, 15
        %s252 = smul.addr %s251, 2
        %s253 = scalar_lea.vmem %s0, %s252
        %p254 = pneg %p44
        %p255 = pneg %p41
        %p256 = pneg %p65
        %p257 = pneg %p62
        %p258 = pneg %p86
        %p259 = pneg %p83
        %p260 = pneg %p107
        %p261 = pneg %p104
        %p262 = pneg %p128
        %p263 = pneg %p125
        %p264 = pneg %p149
        %p265 = pneg %p146
        %p266 = pneg %p170
        %p267 = pneg %p167
        %p268 = pneg %p196
        %p269 = pneg %p193
        %s270 = sand.u32 %s183, 1
        %s271 = scalar_lea.sflag [#allocation4], %s270
        %s272 = sand.u32 %s183, 1
        %s273 = smul.addr %s272, 8
        %s274 = scalar_lea.vmem [#allocation3], %s273
        %s275 = smul.u32 8, %s23
        %p276 = scmp.lt.s32.totalorder %s275, 15
        %s277 = scalar_select %p276, %s275, 15
        %s278 = smul.addr %s277, 2
        %s279 = scalar_lea.vmem %s0, %s278
        %s280 = smul.u32 8, %s23
        %s281 = smul.u32 8, %s23
        %v282 = vld [vmem:[%s279] sm:$0xff]
        %v283 = vld [vmem:[%s279 + $0x8] sm:$0xff]
        %v284 = vld [vmem:[%s1] sm:$0xff]
        %v285 = vld [vmem:[%s1 + $0x8] sm:$0xff]
        %v286 = vld [vmem:[%s1 + $0x10] sm:$0xff]
        %v287 = vld [vmem:[%s1 + $0x18] sm:$0xff]
        %v288 = vld [vmem:[%s1 + $0x20] sm:$0xff]
        %290 = vset.pattern.permute.xlu0 0
        %291 = vperm.xlu0 %290, %v284
        %v292 = vpop.permute.xlu0 %291
        %295 = vset.pattern.permute.xlu0 0
        %296 = vperm.xlu0 %295, %v285
        %v297 = vpop.permute.xlu0 %296
        %300 = vset.pattern.permute.xlu0 0
        %301 = vperm.xlu0 %300, %v286
        %v302 = vpop.permute.xlu0 %301
        %305 = vset.pattern.permute.xlu0 0
        %306 = vperm.xlu0 %305, %v287
        %v307 = vpop.permute.xlu0 %306
        %310 = vset.pattern.permute.xlu0 0
        %311 = vperm.xlu0 %310, %v288
        %v312 = vpop.permute.xlu0 %311
        %v316 = vlaneseq
        %v317 = vshrl.u32 %v316, 7
        %v318 = vsub.s32 0, %v317
        %v319 = vrot.slane %v282, %v318
        %v320 = vlaneseq
        %v321 = vshrl.u32 %v320, 7
        %v322 = vsub.s32 2, %v321
        %v323 = vrot.slane %v282, %v322
        %v324 = vlaneseq
        %v325 = vshrl.u32 %v324, 7
        %v326 = vsub.s32 4, %v325
        %v327 = vrot.slane %v282, %v326
        %v328 = vlaneseq
        %v329 = vshrl.u32 %v328, 7
        %v330 = vsub.s32 6, %v329
        %v331 = vrot.slane %v282, %v330
        %v332 = vlaneseq
        %v333 = vshrl.u32 %v332, 7
        %v334 = vsub.s32 0, %v333
        %v335 = vrot.slane %v283, %v334
        %v336 = vlaneseq
        %v337 = vshrl.u32 %v336, 7
        %v338 = vsub.s32 2, %v337
        %v339 = vrot.slane %v283, %v338
        %v340 = vlaneseq
        %v341 = vshrl.u32 %v340, 7
        %v342 = vsub.s32 4, %v341
        %v343 = vrot.slane %v283, %v342
        %v344 = vlaneseq
        %v345 = vshrl.u32 %v344, 7
        %v346 = vsub.s32 6, %v345
        %v347 = vrot.slane %v283, %v346
        %v356 = vlaneseq
        %v357 = vshrl.u32 %v356, 7
        %v358 = vsub.s32 0, %v357
        %v359 = vrot.slane %v319, %v358
        %v360 = vlaneseq
        %v361 = vshrl.u32 %v360, 7
        %v362 = vsub.s32 0, %v361
        %v363 = vrot.slane %v323, %v362
        %v364 = vlaneseq
        %v365 = vshrl.u32 %v364, 7
        %v366 = vsub.s32 0, %v365
        %v367 = vrot.slane %v327, %v366
        %v368 = vlaneseq
        %v369 = vshrl.u32 %v368, 7
        %v370 = vsub.s32 0, %v369
        %v371 = vrot.slane %v331, %v370
        %v372 = vlaneseq
        %v373 = vshrl.u32 %v372, 7
        %v374 = vsub.s32 0, %v373
        %v375 = vrot.slane %v335, %v374
        %v376 = vlaneseq
        %v377 = vshrl.u32 %v376, 7
        %v378 = vsub.s32 0, %v377
        %v379 = vrot.slane %v339, %v378
        %v380 = vlaneseq
        %v381 = vshrl.u32 %v380, 7
        %v382 = vsub.s32 0, %v381
        %v383 = vrot.slane %v343, %v382
        %v384 = vlaneseq
        %v385 = vshrl.u32 %v384, 7
        %v386 = vsub.s32 0, %v385
        %v387 = vrot.slane %v347, %v386
        %v388 = vmul.f32 %v292, %v359
        %v389 = vmul.f32 %v292, %v363
        %v390 = vmul.f32 %v292, %v367
        %v391 = vmul.f32 %v292, %v371
        %v392 = vmul.f32 %v292, %v375
        %v393 = vmul.f32 %v292, %v379
        %v394 = vmul.f32 %v292, %v383
        %v395 = vmul.f32 %v292, %v387
        %v396 = vmul.f32 %v297, %v359
        %v397 = vmul.f32 %v297, %v363
        %v398 = vmul.f32 %v297, %v367
        %v399 = vmul.f32 %v297, %v371
        %v400 = vmul.f32 %v297, %v375
        %v401 = vmul.f32 %v297, %v379
        %v402 = vmul.f32 %v297, %v383
        %v403 = vmul.f32 %v297, %v387
        %v404 = vmul.f32 %v302, %v359
        %v405 = vmul.f32 %v302, %v363
        %v406 = vmul.f32 %v302, %v367
        %v407 = vmul.f32 %v302, %v371
        %v408 = vmul.f32 %v302, %v375
        %v409 = vmul.f32 %v302, %v379
        %v410 = vmul.f32 %v302, %v383
        %v411 = vmul.f32 %v302, %v387
        %v412 = vmul.f32 %v307, %v359
        %v413 = vmul.f32 %v307, %v363
        %v414 = vmul.f32 %v307, %v367
        %v415 = vmul.f32 %v307, %v371
        %v416 = vmul.f32 %v307, %v375
        %v417 = vmul.f32 %v307, %v379
        %v418 = vmul.f32 %v307, %v383
        %v419 = vmul.f32 %v307, %v387
        %v420 = vmul.f32 %v312, %v359
        %v421 = vmul.f32 %v312, %v363
        %v422 = vmul.f32 %v312, %v367
        %v423 = vmul.f32 %v312, %v371
        %v424 = vmul.f32 %v312, %v375
        %v425 = vmul.f32 %v312, %v379
        %v426 = vmul.f32 %v312, %v383
        %v427 = vmul.f32 %v312, %v387
        %428 = vset.pattern.permute.xlu0 1
        %429 = vperm.xlu0 %428, %v284
        %v430 = vpop.permute.xlu0 %429
        %432 = vset.pattern.permute.xlu0 1
        %433 = vperm.xlu0 %432, %v285
        %v434 = vpop.permute.xlu0 %433
        %436 = vset.pattern.permute.xlu0 1
        %437 = vperm.xlu0 %436, %v286
        %v438 = vpop.permute.xlu0 %437
        %440 = vset.pattern.permute.xlu0 1
        %441 = vperm.xlu0 %440, %v287
        %v442 = vpop.permute.xlu0 %441
        %444 = vset.pattern.permute.xlu0 1
        %445 = vperm.xlu0 %444, %v288
        %v446 = vpop.permute.xlu0 %445
        %v448 = vlaneseq
        %v449 = vshrl.u32 %v448, 7
        %v450 = vsub.s32 1, %v449
        %v451 = vrot.slane %v282, %v450
        %v452 = vlaneseq
        %v453 = vshrl.u32 %v452, 7
        %v454 = vsub.s32 3, %v453
        %v455 = vrot.slane %v282, %v454
        %v456 = vlaneseq
        %v457 = vshrl.u32 %v456, 7
        %v458 = vsub.s32 5, %v457
        %v459 = vrot.slane %v282, %v458
        %v460 = vlaneseq
        %v461 = vshrl.u32 %v460, 7
        %v462 = vsub.s32 7, %v461
        %v463 = vrot.slane %v282, %v462
        %v464 = vlaneseq
        %v465 = vshrl.u32 %v464, 7
        %v466 = vsub.s32 1, %v465
        %v467 = vrot.slane %v283, %v466
        %v468 = vlaneseq
        %v469 = vshrl.u32 %v468, 7
        %v470 = vsub.s32 3, %v469
        %v471 = vrot.slane %v283, %v470
        %v472 = vlaneseq
        %v473 = vshrl.u32 %v472, 7
        %v474 = vsub.s32 5, %v473
        %v475 = vrot.slane %v283, %v474
        %v476 = vlaneseq
        %v477 = vshrl.u32 %v476, 7
        %v478 = vsub.s32 7, %v477
        %v479 = vrot.slane %v283, %v478
        %v488 = vlaneseq
        %v489 = vshrl.u32 %v488, 7
        %v490 = vsub.s32 1, %v489
        %v491 = vrot.slane %v451, %v490
        %v492 = vlaneseq
        %v493 = vshrl.u32 %v492, 7
        %v494 = vsub.s32 1, %v493
        %v495 = vrot.slane %v455, %v494
        %v496 = vlaneseq
        %v497 = vshrl.u32 %v496, 7
        %v498 = vsub.s32 1, %v497
        %v499 = vrot.slane %v459, %v498
        %v500 = vlaneseq
        %v501 = vshrl.u32 %v500, 7
        %v502 = vsub.s32 1, %v501
        %v503 = vrot.slane %v463, %v502
        %v504 = vlaneseq
        %v505 = vshrl.u32 %v504, 7
        %v506 = vsub.s32 1, %v505
        %v507 = vrot.slane %v467, %v506
        %v508 = vlaneseq
        %v509 = vshrl.u32 %v508, 7
        %v510 = vsub.s32 1, %v509
        %v511 = vrot.slane %v471, %v510
        %v512 = vlaneseq
        %v513 = vshrl.u32 %v512, 7
        %v514 = vsub.s32 1, %v513
        %v515 = vrot.slane %v475, %v514
        %v516 = vlaneseq
        %v517 = vshrl.u32 %v516, 7
        %v518 = vsub.s32 1, %v517
        %v519 = vrot.slane %v479, %v518
        %v520 = vmul.f32 %v430, %v491
        %v521 = vmul.f32 %v430, %v495
        %v522 = vmul.f32 %v430, %v499
        %v523 = vmul.f32 %v430, %v503
        %v524 = vmul.f32 %v430, %v507
        %v525 = vmul.f32 %v430, %v511
        %v526 = vmul.f32 %v430, %v515
        %v527 = vmul.f32 %v430, %v519
        %v528 = vmul.f32 %v434, %v491
        %v529 = vmul.f32 %v434, %v495
        %v530 = vmul.f32 %v434, %v499
        %v531 = vmul.f32 %v434, %v503
        %v532 = vmul.f32 %v434, %v507
        %v533 = vmul.f32 %v434, %v511
        %v534 = vmul.f32 %v434, %v515
        %v535 = vmul.f32 %v434, %v519
        %v536 = vmul.f32 %v438, %v491
        %v537 = vmul.f32 %v438, %v495
        %v538 = vmul.f32 %v438, %v499
        %v539 = vmul.f32 %v438, %v503
        %v540 = vmul.f32 %v438, %v507
        %v541 = vmul.f32 %v438, %v511
        %v542 = vmul.f32 %v438, %v515
        %v543 = vmul.f32 %v438, %v519
        %v544 = vmul.f32 %v442, %v491
        %v545 = vmul.f32 %v442, %v495
        %v546 = vmul.f32 %v442, %v499
        %v547 = vmul.f32 %v442, %v503
        %v548 = vmul.f32 %v442, %v507
        %v549 = vmul.f32 %v442, %v511
        %v550 = vmul.f32 %v442, %v515
        %v551 = vmul.f32 %v442, %v519
        %v552 = vmul.f32 %v446, %v491
        %v553 = vmul.f32 %v446, %v495
        %v554 = vmul.f32 %v446, %v499
        %v555 = vmul.f32 %v446, %v503
        %v556 = vmul.f32 %v446, %v507
        %v557 = vmul.f32 %v446, %v511
        %v558 = vmul.f32 %v446, %v515
        %v559 = vmul.f32 %v446, %v519
        %v560 = vadd.f32 %v388, %v520
        %v561 = vadd.f32 %v389, %v521
        %v562 = vadd.f32 %v390, %v522
        %v563 = vadd.f32 %v391, %v523
        %v564 = vadd.f32 %v392, %v524
        %v565 = vadd.f32 %v393, %v525
        %v566 = vadd.f32 %v394, %v526
        %v567 = vadd.f32 %v395, %v527
        %v568 = vadd.f32 %v396, %v528
        %v569 = vadd.f32 %v397, %v529
        %v570 = vadd.f32 %v398, %v530
        %v571 = vadd.f32 %v399, %v531
        %v572 = vadd.f32 %v400, %v532
        %v573 = vadd.f32 %v401, %v533
        %v574 = vadd.f32 %v402, %v534
        %v575 = vadd.f32 %v403, %v535
        %v576 = vadd.f32 %v404, %v536
        %v577 = vadd.f32 %v405, %v537
        %v578 = vadd.f32 %v406, %v538
        %v579 = vadd.f32 %v407, %v539
        %v580 = vadd.f32 %v408, %v540
        %v581 = vadd.f32 %v409, %v541
        %v582 = vadd.f32 %v410, %v542
        %v583 = vadd.f32 %v411, %v543
        %v584 = vadd.f32 %v412, %v544
        %v585 = vadd.f32 %v413, %v545
        %v586 = vadd.f32 %v414, %v546
        %v587 = vadd.f32 %v415, %v547
        %v588 = vadd.f32 %v416, %v548
        %v589 = vadd.f32 %v417, %v549
        %v590 = vadd.f32 %v418, %v550
        %v591 = vadd.f32 %v419, %v551
        %v592 = vadd.f32 %v420, %v552
        %v593 = vadd.f32 %v421, %v553
        %v594 = vadd.f32 %v422, %v554
        %v595 = vadd.f32 %v423, %v555
        %v596 = vadd.f32 %v424, %v556
        %v597 = vadd.f32 %v425, %v557
        %v598 = vadd.f32 %v426, %v558
        %v599 = vadd.f32 %v427, %v559
        %v600 = vld [vmem:[%s2] sm:$0xff]
        %v601 = vld [vmem:[%s2 + $0x8] sm:$0xff]
        %v602 = vld [vmem:[%s2 + $0x10] sm:$0xff]
        %v603 = vld [vmem:[%s2 + $0x18] sm:$0xff]
        %v604 = vld [vmem:[%s2 + $0x20] sm:$0xff]
        %606 = vset.pattern.permute.xlu0 0
        %607 = vperm.xlu0 %606, %v600
        %v608 = vpop.permute.xlu0 %607
        %611 = vset.pattern.permute.xlu0 0
        %612 = vperm.xlu0 %611, %v601
        %v613 = vpop.permute.xlu0 %612
        %616 = vset.pattern.permute.xlu0 0
        %617 = vperm.xlu0 %616, %v602
        %v618 = vpop.permute.xlu0 %617
        %621 = vset.pattern.permute.xlu0 0
        %622 = vperm.xlu0 %621, %v603
        %v623 = vpop.permute.xlu0 %622
        %626 = vset.pattern.permute.xlu0 0
        %627 = vperm.xlu0 %626, %v604
        %v628 = vpop.permute.xlu0 %627
        %v630 = vadd.f32 %v560, %v608
        %v631 = vadd.f32 %v561, %v608
        %v632 = vadd.f32 %v562, %v608
        %v633 = vadd.f32 %v563, %v608
        %v634 = vadd.f32 %v564, %v608
        %v635 = vadd.f32 %v565, %v608
        %v636 = vadd.f32 %v566, %v608
        %v637 = vadd.f32 %v567, %v608
        %v638 = vadd.f32 %v568, %v613
        %v639 = vadd.f32 %v569, %v613
        %v640 = vadd.f32 %v570, %v613
        %v641 = vadd.f32 %v571, %v613
        %v642 = vadd.f32 %v572, %v613
        %v643 = vadd.f32 %v573, %v613
        %v644 = vadd.f32 %v574, %v613
        %v645 = vadd.f32 %v575, %v613
        %v646 = vadd.f32 %v576, %v618
        %v647 = vadd.f32 %v577, %v618
        %v648 = vadd.f32 %v578, %v618
        %v649 = vadd.f32 %v579, %v618
        %v650 = vadd.f32 %v580, %v618
        %v651 = vadd.f32 %v581, %v618
        %v652 = vadd.f32 %v582, %v618
        %v653 = vadd.f32 %v583, %v618
        %v654 = vadd.f32 %v584, %v623
        %v655 = vadd.f32 %v585, %v623
        %v656 = vadd.f32 %v586, %v623
        %v657 = vadd.f32 %v587, %v623
        %v658 = vadd.f32 %v588, %v623
        %v659 = vadd.f32 %v589, %v623
        %v660 = vadd.f32 %v590, %v623
        %v661 = vadd.f32 %v591, %v623
        %v662 = vadd.f32 %v592, %v628
        %v663 = vadd.f32 %v593, %v628
        %v664 = vadd.f32 %v594, %v628
        %v665 = vadd.f32 %v595, %v628
        %v666 = vadd.f32 %v596, %v628
        %v667 = vadd.f32 %v597, %v628
        %v668 = vadd.f32 %v598, %v628
        %v669 = vadd.f32 %v599, %v628
        %v670 = vtanh.pop %v630
        %v671 = vtanh.pop %v631
        %v672 = vtanh.pop %v632
        %v673 = vtanh.pop %v633
        %v674 = vtanh.pop %v634
        %v675 = vtanh.pop %v635
        %v676 = vtanh.pop %v636
        %v677 = vtanh.pop %v637
        %v678 = vtanh.pop %v638
        %v679 = vtanh.pop %v639
        %v680 = vtanh.pop %v640
        %v681 = vtanh.pop %v641
        %v682 = vtanh.pop %v642
        %v683 = vtanh.pop %v643
        %v684 = vtanh.pop %v644
        %v685 = vtanh.pop %v645
        %v686 = vtanh.pop %v646
        %v687 = vtanh.pop %v647
        %v688 = vtanh.pop %v648
        %v689 = vtanh.pop %v649
        %v690 = vtanh.pop %v650
        %v691 = vtanh.pop %v651
        %v692 = vtanh.pop %v652
        %v693 = vtanh.pop %v653
        %v694 = vtanh.pop %v654
        %v695 = vtanh.pop %v655
        %v696 = vtanh.pop %v656
        %v697 = vtanh.pop %v657
        %v698 = vtanh.pop %v658
        %v699 = vtanh.pop %v659
        %v700 = vtanh.pop %v660
        %v701 = vtanh.pop %v661
        %v702 = vtanh.pop %v662
        %v703 = vtanh.pop %v663
        %v704 = vtanh.pop %v664
        %v705 = vtanh.pop %v665
        %v706 = vtanh.pop %v666
        %v707 = vtanh.pop %v667
        %v708 = vtanh.pop %v668
        %v709 = vtanh.pop %v669
        %v710 = vld [vmem:[%s3] sm:$0xff]
        %v711 = vld [vmem:[%s3 + $0x8] sm:$0xff]
        %v712 = vld [vmem:[%s3 + $0x10] sm:$0xff]
        %v713 = vld [vmem:[%s3 + $0x18] sm:$0xff]
        %v714 = vld [vmem:[%s3 + $0x20] sm:$0xff]
        %v715 = vld [vmem:[%s3 + $0x28] sm:$0xff]
        %v716 = vld [vmem:[%s3 + $0x30] sm:$0xff]
        %v717 = vld [vmem:[%s3 + $0x38] sm:$0xff]
        %v718 = vld [vmem:[%s3 + $0x40] sm:$0xff]
        %v719 = vld [vmem:[%s3 + $0x48] sm:$0xff]
        %v720 = vld [vmem:[%s3 + $0x50] sm:$0xff]
        %v721 = vld [vmem:[%s3 + $0x58] sm:$0xff]
        %v722 = vld [vmem:[%s3 + $0x60] sm:$0xff]
        %v723 = vld [vmem:[%s3 + $0x68] sm:$0xff]
        %v724 = vld [vmem:[%s3 + $0x70] sm:$0xff]
        %v725 = vld [vmem:[%s3 + $0x78] sm:$0xff]
        %v726 = vld [vmem:[%s3 + $0x80] sm:$0xff]
        %v727 = vld [vmem:[%s3 + $0x88] sm:$0xff]
        %v728 = vld [vmem:[%s3 + $0x90] sm:$0xff]
        %v729 = vld [vmem:[%s3 + $0x98] sm:$0xff]
        %v730 = vld [vmem:[%s3 + $0xa0] sm:$0xff]
        %v731 = vld [vmem:[%s3 + $0xa8] sm:$0xff]
        %v732 = vld [vmem:[%s3 + $0xb0] sm:$0xff]
        %v733 = vld [vmem:[%s3 + $0xb8] sm:$0xff]
        %v734 = vld [vmem:[%s3 + $0xc0] sm:$0xff]
        %v735 = vld [vmem:[%s3 + $0xc8] sm:$0xff]
        %v736 = vld [vmem:[%s3 + $0xd0] sm:$0xff]
        %v737 = vld [vmem:[%s3 + $0xd8] sm:$0xff]
        %v738 = vld [vmem:[%s3 + $0xe0] sm:$0xff]
        %v739 = vld [vmem:[%s3 + $0xe8] sm:$0xff]
        %v740 = vld [vmem:[%s3 + $0xf0] sm:$0xff]
        %v741 = vld [vmem:[%s3 + $0xf8] sm:$0xff]
        %v742 = vld [vmem:[%s3 + $0x100] sm:$0xff]
        %v743 = vld [vmem:[%s3 + $0x108] sm:$0xff]
        %v744 = vld [vmem:[%s3 + $0x110] sm:$0xff]
        %v745 = vld [vmem:[%s4] sm:$0xff]
        %v746 = vld [vmem:[%s4 + $0x8] sm:$0xff]
        %v747 = vld [vmem:[%s4 + $0x10] sm:$0xff]
        %v748 = vld [vmem:[%s4 + $0x18] sm:$0xff]
        %v749 = vld [vmem:[%s4 + $0x20] sm:$0xff]
        %751 = vset.pattern.permute.xlu0 0
        %752 = vperm.xlu0 %751, %v745
        %v753 = vpop.permute.xlu0 %752
        %756 = vset.pattern.permute.xlu0 0
        %757 = vperm.xlu0 %756, %v746
        %v758 = vpop.permute.xlu0 %757
        %761 = vset.pattern.permute.xlu0 0
        %762 = vperm.xlu0 %761, %v747
        %v763 = vpop.permute.xlu0 %762
        %766 = vset.pattern.permute.xlu0 0
        %767 = vperm.xlu0 %766, %v748
        %v768 = vpop.permute.xlu0 %767
        %771 = vset.pattern.permute.xlu0 0
        %772 = vperm.xlu0 %771, %v749
        %v773 = vpop.permute.xlu0 %772
        %vm775 = vcmask 326656
        %v777 = vsel %vm775, %v710, 0
        %v780 = vsel %vm775, %v711, 0
        %v783 = vsel %vm775, %v712, 0
        %v786 = vsel %vm775, %v713, 0
        %v789 = vsel %vm775, %v714, 0
        %791 = vmatprep.subr.mxu0 %v671
        %792 = vmatpush1.msra.mxu0 %v670
        %793 = vmatprep.subr.mxu0 %v679
        %794 = vmatpush1.msra.mxu0 %v678
        %795 = vmatprep.subr.mxu0 %v687
        %796 = vmatpush1.msra.mxu0 %v686
        %797 = vmatprep.subr.mxu0 %v695
        %798 = vmatpush1.msra.mxu0 %v694
        %799 = vmatprep.subr.mxu0 %v703
        %800 = vmatpush1.msra.mxu0 %v702
        %801 = vmatprep.subr.mxu0 0.0
        %802 = vmatpush1.msra.mxu0 0.0
        %803 = vmatprep.subr.mxu0 0.0
        %804 = vmatpush1.msra.mxu0 0.0
        %805 = vmatprep.subr.mxu0 0.0
        %806 = vmatpush1.msra.mxu0 0.0
        %807 = vmatprep.subr.mxu0 0.0
        %808 = vmatpush1.msra.mxu0 0.0
        %809 = vmatprep.subr.mxu0 0.0
        %810 = vmatpush1.msra.mxu0 0.0
        %811 = vmatprep.subr.mxu0 0.0
        %812 = vmatpush1.msra.mxu0 0.0
        %813 = vmatprep.subr.mxu0 0.0
        %814 = vmatpush1.msra.mxu0 0.0
        %815 = vmatprep.subr.mxu0 0.0
        %816 = vmatpush1.msra.mxu0 0.0
        %817 = vmatprep.subr.mxu0 0.0
        %818 = vmatpush1.msra.mxu0 0.0
        %819 = vmatprep.subr.mxu0 0.0
        %820 = vmatpush1.msra.mxu0 0.0
        %821 = vmatprep.subr.mxu0 0.0
        %822 = vmatpush1.msra.mxu0 0.0
        %823 = vmatprep.subr.mxu0 0.0
        %824 = vmatpush1.msra.mxu0 0.0
        %825 = vmatprep.subr.mxu0 0.0
        %826 = vmatpush1.msra.mxu0 0.0
        %827 = vmatprep.subr.mxu0 0.0
        %828 = vmatpush1.msra.mxu0 0.0
        %829 = vmatprep.subr.mxu0 0.0
        %830 = vmatpush1.msra.mxu0 0.0
        %831 = vmatprep.subr.mxu0 0.0
        %832 = vmatpush1.msra.mxu0 0.0
        %833 = vmatprep.subr.mxu0 0.0
        %834 = vmatpush1.msra.mxu0 0.0
        %835 = vmatprep.subr.mxu0 0.0
        %836 = vmatpush1.msra.mxu0 0.0
        %837 = vmatprep.subr.mxu0 0.0
        %838 = vmatpush1.msra.mxu0 0.0
        %839 = vmatprep.subr.mxu0 0.0
        %840 = vmatpush1.msra.mxu0 0.0
        %841 = vmatprep.subr.mxu0 0.0
        %842 = vmatpush1.msra.mxu0 0.0
        %843 = vmatprep.subr.mxu0 0.0
        %844 = vmatpush1.msra.mxu0 0.0
        %845 = vmatprep.subr.mxu0 0.0
        %846 = vmatpush1.msra.mxu0 0.0
        %847 = vmatprep.subr.mxu0 0.0
        %848 = vmatpush1.msra.mxu0 0.0
        %849 = vmatprep.subr.mxu0 0.0
        %850 = vmatpush1.msra.mxu0 0.0
        %851 = vmatprep.subr.mxu0 0.0
        %852 = vmatpush1.msra.mxu0 0.0
        %853 = vmatprep.subr.mxu0 0.0
        %854 = vmatpush1.msra.mxu0 0.0
        %855 = vmatprep.mubr.f32.mxu0 0.0
        %856 = vmatmul.mubr.f32.gmra.mrb[0].mxu0 %v777
        %v857 = vpop.f32.mrb[0].mxu0
        %v858 = vadd.f32 %v753, %v857
        %v859 = vpop.f32.mrb[0].mxu0
        %v860 = vadd.f32 %v753, %v859
        %861 = vmatprep.mubr.f32.mxu0 0.0
        %862 = vmatmul.mubr.f32.gmra.mrb[0].mxu0 %v780
        %v863 = vpop.f32.mrb[0].mxu0
        %v864 = vadd.f32 %v758, %v863
        %v865 = vpop.f32.mrb[0].mxu0
        %v866 = vadd.f32 %v758, %v865
        %867 = vmatprep.mubr.f32.mxu0 0.0
        %868 = vmatmul.mubr.f32.gmra.mrb[0].mxu0 %v783
        %v869 = vpop.f32.mrb[0].mxu0
        %v870 = vadd.f32 %v763, %v869
        %v871 = vpop.f32.mrb[0].mxu0
        %v872 = vadd.f32 %v763, %v871
        %873 = vmatprep.mubr.f32.mxu0 0.0
        %874 = vmatmul.mubr.f32.gmra.mrb[0].mxu0 %v786
        %v875 = vpop.f32.mrb[0].mxu0
        %v876 = vadd.f32 %v768, %v875
        %v877 = vpop.f32.mrb[0].mxu0
        %v878 = vadd.f32 %v768, %v877
        %879 = vmatprep.mubr.f32.mxu0 0.0
        %880 = vmatmul.mubr.f32.gmra.mrb[0].mxu0 %v789
        %v881 = vpop.f32.mrb[0].mxu0
        %v882 = vadd.f32 %v773, %v881
        %v883 = vpop.f32.mrb[0].mxu0
        %v884 = vadd.f32 %v773, %v883
        %885 = vdwg.mxu0
        %886 = vmatprep.subr.mxu0 %v673
        %887 = vmatpush1.msra.mxu0 %v672
        %888 = vmatprep.subr.mxu0 %v681
        %889 = vmatpush1.msra.mxu0 %v680
        %890 = vmatprep.subr.mxu0 %v689
        %891 = vmatpush1.msra.mxu0 %v688
        %892 = vmatprep.subr.mxu0 %v697
        %893 = vmatpush1.msra.mxu0 %v696
        %894 = vmatprep.subr.mxu0 %v705
        %895 = vmatpush1.msra.mxu0 %v704
        %896 = vmatprep.subr.mxu0 0.0
        %897 = vmatpush1.msra.mxu0 0.0
        %898 = vmatprep.subr.mxu0 0.0
        %899 = vmatpush1.msra.mxu0 0.0
        %900 = vmatprep.subr.mxu0 0.0
        %901 = vmatpush1.msra.mxu0 0.0
        %902 = vmatprep.subr.mxu0 0.0
        %903 = vmatpush1.msra.mxu0 0.0
        %904 = vmatprep.subr.mxu0 0.0
        %905 = vmatpush1.msra.mxu0 0.0
        %906 = vmatprep.subr.mxu0 0.0
        %907 = vmatpush1.msra.mxu0 0.0
        %908 = vmatprep.subr.mxu0 0.0
        %909 = vmatpush1.msra.mxu0 0.0
        %910 = vmatprep.subr.mxu0 0.0
        %911 = vmatpush1.msra.mxu0 0.0
        %912 = vmatprep.subr.mxu0 0.0
        %913 = vmatpush1.msra.mxu0 0.0
        %914 = vmatprep.subr.mxu0 0.0
        %915 = vmatpush1.msra.mxu0 0.0
        %916 = vmatprep.subr.mxu0 0.0
        %917 = vmatpush1.msra.mxu0 0.0
        %918 = vmatprep.subr.mxu0 0.0
        %919 = vmatpush1.msra.mxu0 0.0
        %920 = vmatprep.subr.mxu0 0.0
        %921 = vmatpush1.msra.mxu0 0.0
        %922 = vmatprep.subr.mxu0 0.0
        %923 = vmatpush1.msra.mxu0 0.0
        %924 = vmatprep.subr.mxu0 0.0
        %925 = vmatpush1.msra.mxu0 0.0
        %926 = vmatprep.subr.mxu0 0.0
        %927 = vmatpush1.msra.mxu0 0.0
        %928 = vmatprep.subr.mxu0 0.0
        %929 = vmatpush1.msra.mxu0 0.0
        %930 = vmatprep.subr.mxu0 0.0
        %931 = vmatpush1.msra.mxu0 0.0
        %932 = vmatprep.subr.mxu0 0.0
        %933 = vmatpush1.msra.mxu0 0.0
        %934 = vmatprep.subr.mxu0 0.0
        %935 = vmatpush1.msra.mxu0 0.0
        %936 = vmatprep.subr.mxu0 0.0
        %937 = vmatpush1.msra.mxu0 0.0
        %938 = vmatprep.subr.mxu0 0.0
        %939 = vmatpush1.msra.mxu0 0.0
        %940 = vmatprep.subr.mxu0 0.0
        %941 = vmatpush1.msra.mxu0 0.0
        %942 = vmatprep.subr.mxu0 0.0
        %943 = vmatpush1.msra.mxu0 0.0
        %944 = vmatprep.subr.mxu0 0.0
        %945 = vmatpush1.msra.mxu0 0.0
        %946 = vmatprep.subr.mxu0 0.0
        %947 = vmatpush1.msra.mxu0 0.0
        %948 = vmatprep.subr.mxu0 0.0
        %949 = vmatpush1.msra.mxu0 0.0
        %950 = vmatprep.mubr.f32.mxu0 0.0
        %951 = vmatmul.mubr.f32.gmra.mrb[0].mxu0 %v777
        %v952 = vpop.f32.mrb[0].mxu0
        %v953 = vadd.f32 %v753, %v952
        %v954 = vpop.f32.mrb[0].mxu0
        %v955 = vadd.f32 %v753, %v954
        %956 = vmatprep.mubr.f32.mxu0 0.0
        %957 = vmatmul.mubr.f32.gmra.mrb[0].mxu0 %v780
        %v958 = vpop.f32.mrb[0].mxu0
        %v959 = vadd.f32 %v758, %v958
        %v960 = vpop.f32.mrb[0].mxu0
        %v961 = vadd.f32 %v758, %v960
        %962 = vmatprep.mubr.f32.mxu0 0.0
        %963 = vmatmul.mubr.f32.gmra.mrb[0].mxu0 %v783
        %v964 = vpop.f32.mrb[0].mxu0
        %v965 = vadd.f32 %v763, %v964
        %v966 = vpop.f32.mrb[0].mxu0
        %v967 = vadd.f32 %v763, %v966
        %968 = vmatprep.mubr.f32.mxu0 0.0
        %969 = vmatmul.mubr.f32.gmra.mrb[0].mxu0 %v786
        %v970 = vpop.f32.mrb[0].mxu0
        %v971 = vadd.f32 %v768, %v970
        %v972 = vpop.f32.mrb[0].mxu0
        %v973 = vadd.f32 %v768, %v972
        %974 = vmatprep.mubr.f32.mxu0 0.0
        %975 = vmatmul.mubr.f32.gmra.mrb[0].mxu0 %v789
        %v976 = vpop.f32.mrb[0].mxu0
        %v977 = vadd.f32 %v773, %v976
        %v978 = vpop.f32.mrb[0].mxu0
        %v979 = vadd.f32 %v773, %v978
        %980 = vdwg.mxu0
        %981 = vmatprep.subr.mxu0 %v675
        %982 = vmatpush1.msra.mxu0 %v674
        %983 = vmatprep.subr.mxu0 %v683
        %984 = vmatpush1.msra.mxu0 %v682
        %985 = vmatprep.subr.mxu0 %v691
        %986 = vmatpush1.msra.mxu0 %v690
        %987 = vmatprep.subr.mxu0 %v699
        %988 = vmatpush1.msra.mxu0 %v698
        %989 = vmatprep.subr.mxu0 %v707
        %990 = vmatpush1.msra.mxu0 %v706
        %991 = vmatprep.subr.mxu0 0.0
        %992 = vmatpush1.msra.mxu0 0.0
        %993 = vmatprep.subr.mxu0 0.0
        %994 = vmatpush1.msra.mxu0 0.0
        %995 = vmatprep.subr.mxu0 0.0
        %996 = vmatpush1.msra.mxu0 0.0
        %997 = vmatprep.subr.mxu0 0.0
        %998 = vmatpush1.msra.mxu0 0.0
        %999 = vmatprep.subr.mxu0 0.0
        %1000 = vmatpush1.msra.mxu0 0.0
        %1001 = vmatprep.subr.mxu0 0.0
        %1002 = vmatpush1.msra.mxu0 0.0
        %1003 = vmatprep.subr.mxu0 0.0
        %1004 = vmatpush1.msra.mxu0 0.0
        %1005 = vmatprep.subr.mxu0 0.0
        %1006 = vmatpush1.msra.mxu0 0.0
        %1007 = vmatprep.subr.mxu0 0.0
        %1008 = vmatpush1.msra.mxu0 0.0
        %1009 = vmatprep.subr.mxu0 0.0
        %1010 = vmatpush1.msra.mxu0 0.0
        %1011 = vmatprep.subr.mxu0 0.0
        %1012 = vmatpush1.msra.mxu0 0.0
        %1013 = vmatprep.subr.mxu0 0.0
        %1014 = vmatpush1.msra.mxu0 0.0
        %1015 = vmatprep.subr.mxu0 0.0
        %1016 = vmatpush1.msra.mxu0 0.0
        %1017 = vmatprep.subr.mxu0 0.0
        %1018 = vmatpush1.msra.mxu0 0.0
        %1019 = vmatprep.subr.mxu0 0.0
        %1020 = vmatpush1.msra.mxu0 0.0
        %1021 = vmatprep.subr.mxu0 0.0
        %1022 = vmatpush1.msra.mxu0 0.0
        %1023 = vmatprep.subr.mxu0 0.0
        %1024 = vmatpush1.msra.mxu0 0.0
        %1025 = vmatprep.subr.mxu0 0.0
        %1026 = vmatpush1.msra.mxu0 0.0
        %1027 = vmatprep.subr.mxu0 0.0
        %1028 = vmatpush1.msra.mxu0 0.0
        %1029 = vmatprep.subr.mxu0 0.0
        %1030 = vmatpush1.msra.mxu0 0.0
        %1031 = vmatprep.subr.mxu0 0.0
        %1032 = vmatpush1.msra.mxu0 0.0
        %1033 = vmatprep.subr.mxu0 0.0
        %1034 = vmatpush1.msra.mxu0 0.0
        %1035 = vmatprep.subr.mxu0 0.0
        %1036 = vmatpush1.msra.mxu0 0.0
        %1037 = vmatprep.subr.mxu0 0.0
        %1038 = vmatpush1.msra.mxu0 0.0
        %1039 = vmatprep.subr.mxu0 0.0
        %1040 = vmatpush1.msra.mxu0 0.0
        %1041 = vmatprep.subr.mxu0 0.0
        %1042 = vmatpush1.msra.mxu0 0.0
        %1043 = vmatprep.subr.mxu0 0.0
        %1044 = vmatpush1.msra.mxu0 0.0
        %1045 = vmatprep.mubr.f32.mxu0 0.0
        %1046 = vmatmul.mubr.f32.gmra.mrb[0].mxu0 %v777
        %v1047 = vpop.f32.mrb[0].mxu0
        %v1048 = vadd.f32 %v753, %v1047
        %v1049 = vpop.f32.mrb[0].mxu0
        %v1050 = vadd.f32 %v753, %v1049
        %1051 = vmatprep.mubr.f32.mxu0 0.0
        %1052 = vmatmul.mubr.f32.gmra.mrb[0].mxu0 %v780
        %v1053 = vpop.f32.mrb[0].mxu0
        %v1054 = vadd.f32 %v758, %v1053
        %v1055 = vpop.f32.mrb[0].mxu0
        %v1056 = vadd.f32 %v758, %v1055
        %1057 = vmatprep.mubr.f32.mxu0 0.0
        %1058 = vmatmul.mubr.f32.gmra.mrb[0].mxu0 %v783
        %v1059 = vpop.f32.mrb[0].mxu0
        %v1060 = vadd.f32 %v763, %v1059
        %v1061 = vpop.f32.mrb[0].mxu0
        %v1062 = vadd.f32 %v763, %v1061
        %1063 = vmatprep.mubr.f32.mxu0 0.0
        %1064 = vmatmul.mubr.f32.gmra.mrb[0].mxu0 %v786
        %v1065 = vpop.f32.mrb[0].mxu0
        %v1066 = vadd.f32 %v768, %v1065
        %v1067 = vpop.f32.mrb[0].mxu0
        %v1068 = vadd.f32 %v768, %v1067
        %1069 = vmatprep.mubr.f32.mxu0 0.0
        %1070 = vmatmul.mubr.f32.gmra.mrb[0].mxu0 %v789
        %v1071 = vpop.f32.mrb[0].mxu0
        %v1072 = vadd.f32 %v773, %v1071
        %v1073 = vpop.f32.mrb[0].mxu0
        %v1074 = vadd.f32 %v773, %v1073
        %1075 = vdwg.mxu0
        %1076 = vmatprep.subr.mxu0 %v677
        %1077 = vmatpush1.msra.mxu0 %v676
        %1078 = vmatprep.subr.mxu0 %v685
        %1079 = vmatpush1.msra.mxu0 %v684
        %1080 = vmatprep.subr.mxu0 %v693
        %1081 = vmatpush1.msra.mxu0 %v692
        %1082 = vmatprep.subr.mxu0 %v701
        %1083 = vmatpush1.msra.mxu0 %v700
        %1084 = vmatprep.subr.mxu0 %v709
        %1085 = vmatpush1.msra.mxu0 %v708
        %1086 = vmatprep.subr.mxu0 0.0
        %1087 = vmatpush1.msra.mxu0 0.0
        %1088 = vmatprep.subr.mxu0 0.0
        %1089 = vmatpush1.msra.mxu0 0.0
        %1090 = vmatprep.subr.mxu0 0.0
        %1091 = vmatpush1.msra.mxu0 0.0
        %1092 = vmatprep.subr.mxu0 0.0
        %1093 = vmatpush1.msra.mxu0 0.0
        %1094 = vmatprep.subr.mxu0 0.0
        %1095 = vmatpush1.msra.mxu0 0.0
        %1096 = vmatprep.subr.mxu0 0.0
        %1097 = vmatpush1.msra.mxu0 0.0
        %1098 = vmatprep.subr.mxu0 0.0
        %1099 = vmatpush1.msra.mxu0 0.0
        %1100 = vmatprep.subr.mxu0 0.0
        %1101 = vmatpush1.msra.mxu0 0.0
        %1102 = vmatprep.subr.mxu0 0.0
        %1103 = vmatpush1.msra.mxu0 0.0
        %1104 = vmatprep.subr.mxu0 0.0
        %1105 = vmatpush1.msra.mxu0 0.0
        %1106 = vmatprep.subr.mxu0 0.0
        %1107 = vmatpush1.msra.mxu0 0.0
        %1108 = vmatprep.subr.mxu0 0.0
        %1109 = vmatpush1.msra.mxu0 0.0
        %1110 = vmatprep.subr.mxu0 0.0
        %1111 = vmatpush1.msra.mxu0 0.0
        %1112 = vmatprep.subr.mxu0 0.0
        %1113 = vmatpush1.msra.mxu0 0.0
        %1114 = vmatprep.subr.mxu0 0.0
        %1115 = vmatpush1.msra.mxu0 0.0
        %1116 = vmatprep.subr.mxu0 0.0
        %1117 = vmatpush1.msra.mxu0 0.0
        %1118 = vmatprep.subr.mxu0 0.0
        %1119 = vmatpush1.msra.mxu0 0.0
        %1120 = vmatprep.subr.mxu0 0.0
        %1121 = vmatpush1.msra.mxu0 0.0
        %1122 = vmatprep.subr.mxu0 0.0
        %1123 = vmatpush1.msra.mxu0 0.0
        %1124 = vmatprep.subr.mxu0 0.0
        %1125 = vmatpush1.msra.mxu0 0.0
        %1126 = vmatprep.subr.mxu0 0.0
        %1127 = vmatpush1.msra.mxu0 0.0
        %1128 = vmatprep.subr.mxu0 0.0
        %1129 = vmatpush1.msra.mxu0 0.0
        %1130 = vmatprep.subr.mxu0 0.0
        %1131 = vmatpush1.msra.mxu0 0.0
        %1132 = vmatprep.subr.mxu0 0.0
        %1133 = vmatpush1.msra.mxu0 0.0
        %1134 = vmatprep.subr.mxu0 0.0
        %1135 = vmatpush1.msra.mxu0 0.0
        %1136 = vmatprep.subr.mxu0 0.0
        %1137 = vmatpush1.msra.mxu0 0.0
        %1138 = vmatprep.subr.mxu0 0.0
        %1139 = vmatpush1.msra.mxu0 0.0
        %1140 = vmatprep.mubr.f32.mxu0 0.0
        %1141 = vmatmul.mubr.f32.gmra.mrb[0].mxu0 %v777
        %v1142 = vpop.f32.mrb[0].mxu0
        %v1143 = vadd.f32 %v753, %v1142
        %v1144 = vpop.f32.mrb[0].mxu0
        %v1145 = vadd.f32 %v753, %v1144
        %1146 = vmatprep.mubr.f32.mxu0 0.0
        %1147 = vmatmul.mubr.f32.gmra.mrb[0].mxu0 %v780
        %v1148 = vpop.f32.mrb[0].mxu0
        %v1149 = vadd.f32 %v758, %v1148
        %v1150 = vpop.f32.mrb[0].mxu0
        %v1151 = vadd.f32 %v758, %v1150
        %1152 = vmatprep.mubr.f32.mxu0 0.0
        %1153 = vmatmul.mubr.f32.gmra.mrb[0].mxu0 %v783
        %v1154 = vpop.f32.mrb[0].mxu0
        %v1155 = vadd.f32 %v763, %v1154
        %v1156 = vpop.f32.mrb[0].mxu0
        %v1157 = vadd.f32 %v763, %v1156
        %1158 = vmatprep.mubr.f32.mxu0 0.0
        %1159 = vmatmul.mubr.f32.gmra.mrb[0].mxu0 %v786
        %v1160 = vpop.f32.mrb[0].mxu0
        %v1161 = vadd.f32 %v768, %v1160
        %v1162 = vpop.f32.mrb[0].mxu0
        %v1163 = vadd.f32 %v768, %v1162
        %1164 = vmatprep.mubr.f32.mxu0 0.0
        %1165 = vmatmul.mubr.f32.gmra.mrb[0].mxu0 %v789
        %v1166 = vpop.f32.mrb[0].mxu0
        %v1167 = vadd.f32 %v773, %v1166
        %v1168 = vpop.f32.mrb[0].mxu0
        %v1169 = vadd.f32 %v773, %v1168
        %1170 = vdwg.mxu0
        %v1171 = vtanh.pop %v858
        %v1172 = vtanh.pop %v860
        %v1173 = vtanh.pop %v953
        %v1174 = vtanh.pop %v955
        %v1175 = vtanh.pop %v1048
        %v1176 = vtanh.pop %v1050
        %v1177 = vtanh.pop %v1143
        %v1178 = vtanh.pop %v1145
        %v1179 = vtanh.pop %v864
        %v1180 = vtanh.pop %v866
        %v1181 = vtanh.pop %v959
        %v1182 = vtanh.pop %v961
        %v1183 = vtanh.pop %v1054
        %v1184 = vtanh.pop %v1056
        %v1185 = vtanh.pop %v1149
        %v1186 = vtanh.pop %v1151
        %v1187 = vtanh.pop %v870
        %v1188 = vtanh.pop %v872
        %v1189 = vtanh.pop %v965
        %v1190 = vtanh.pop %v967
        %v1191 = vtanh.pop %v1060
        %v1192 = vtanh.pop %v1062
        %v1193 = vtanh.pop %v1155
        %v1194 = vtanh.pop %v1157
        %v1195 = vtanh.pop %v876
        %v1196 = vtanh.pop %v878
        %v1197 = vtanh.pop %v971
        %v1198 = vtanh.pop %v973
        %v1199 = vtanh.pop %v1066
        %v1200 = vtanh.pop %v1068
        %v1201 = vtanh.pop %v1161
        %v1202 = vtanh.pop %v1163
        %v1203 = vtanh.pop %v882
        %v1204 = vtanh.pop %v884
        %v1205 = vtanh.pop %v977
        %v1206 = vtanh.pop %v979
        %v1207 = vtanh.pop %v1072
        %v1208 = vtanh.pop %v1074
        %v1209 = vtanh.pop %v1167
        %v1210 = vtanh.pop %v1169
        %s1211 = scalar_lea.vmem %s4, 40
        %v1212 = vld [vmem:[%s1211] sm:$0xff]
        %v1213 = vld [vmem:[%s1211 + $0x8] sm:$0xff]
        %v1214 = vld [vmem:[%s1211 + $0x10] sm:$0xff]
        %v1215 = vld [vmem:[%s1211 + $0x18] sm:$0xff]
        %v1216 = vld [vmem:[%s1211 + $0x20] sm:$0xff]
        %1218 = vset.pattern.permute.xlu0 0
        %1219 = vperm.xlu0 %1218, %v1212
        %v1220 = vpop.permute.xlu0 %1219
        %1223 = vset.pattern.permute.xlu0 0
        %1224 = vperm.xlu0 %1223, %v1213
        %v1225 = vpop.permute.xlu0 %1224
        %1228 = vset.pattern.permute.xlu0 0
        %1229 = vperm.xlu0 %1228, %v1214
        %v1230 = vpop.permute.xlu0 %1229
        %1233 = vset.pattern.permute.xlu0 0
        %1234 = vperm.xlu0 %1233, %v1215
        %v1235 = vpop.permute.xlu0 %1234
        %1238 = vset.pattern.permute.xlu0 0
        %1239 = vperm.xlu0 %1238, %v1216
        %v1240 = vpop.permute.xlu0 %1239
        %v1243 = vsel %vm775, %v715, 0
        %v1246 = vsel %vm775, %v716, 0
        %v1249 = vsel %vm775, %v717, 0
        %v1252 = vsel %vm775, %v718, 0
        %v1255 = vsel %vm775, %v719, 0
        %1257 = vmatprep.subr.mxu0 %v1172
        %1258 = vmatpush1.msra.mxu0 %v1171
        %1259 = vmatprep.subr.mxu0 %v1180
        %1260 = vmatpush1.msra.mxu0 %v1179
        %1261 = vmatprep.subr.mxu0 %v1188
        %1262 = vmatpush1.msra.mxu0 %v1187
        %1263 = vmatprep.subr.mxu0 %v1196
        %1264 = vmatpush1.msra.mxu0 %v1195
        %1265 = vmatprep.subr.mxu0 %v1204
        %1266 = vmatpush1.msra.mxu0 %v1203
        %1267 = vmatprep.subr.mxu0 0.0
        %1268 = vmatpush1.msra.mxu0 0.0
        %1269 = vmatprep.subr.mxu0 0.0
        %1270 = vmatpush1.msra.mxu0 0.0
        %1271 = vmatprep.subr.mxu0 0.0
        %1272 = vmatpush1.msra.mxu0 0.0
        %1273 = vmatprep.subr.mxu0 0.0
        %1274 = vmatpush1.msra.mxu0 0.0
        %1275 = vmatprep.subr.mxu0 0.0
        %1276 = vmatpush1.msra.mxu0 0.0
        %1277 = vmatprep.subr.mxu0 0.0
        %1278 = vmatpush1.msra.mxu0 0.0
        %1279 = vmatprep.subr.mxu0 0.0
        %1280 = vmatpush1.msra.mxu0 0.0
        %1281 = vmatprep.subr.mxu0 0.0
        %1282 = vmatpush1.msra.mxu0 0.0
        %1283 = vmatprep.subr.mxu0 0.0
        %1284 = vmatpush1.msra.mxu0 0.0
        %1285 = vmatprep.subr.mxu0 0.0
        %1286 = vmatpush1.msra.mxu0 0.0
        %1287 = vmatprep.subr.mxu0 0.0
        %1288 = vmatpush1.msra.mxu0 0.0
        %1289 = vmatprep.subr.mxu0 0.0
        %1290 = vmatpush1.msra.mxu0 0.0
        %1291 = vmatprep.subr.mxu0 0.0
        %1292 = vmatpush1.msra.mxu0 0.0
        %1293 = vmatprep.subr.mxu0 0.0
        %1294 = vmatpush1.msra.mxu0 0.0
        %1295 = vmatprep.subr.mxu0 0.0
        %1296 = vmatpush1.msra.mxu0 0.0
        %1297 = vmatprep.subr.mxu0 0.0
        %1298 = vmatpush1.msra.mxu0 0.0
        %1299 = vmatprep.subr.mxu0 0.0
        %1300 = vmatpush1.msra.mxu0 0.0
        %1301 = vmatprep.subr.mxu0 0.0
        %1302 = vmatpush1.msra.mxu0 0.0
        %1303 = vmatprep.subr.mxu0 0.0
        %1304 = vmatpush1.msra.mxu0 0.0
        %1305 = vmatprep.subr.mxu0 0.0
        %1306 = vmatpush1.msra.mxu0 0.0
        %1307 = vmatprep.subr.mxu0 0.0
        %1308 = vmatpush1.msra.mxu0 0.0
        %1309 = vmatprep.subr.mxu0 0.0
        %1310 = vmatpush1.msra.mxu0 0.0
        %1311 = vmatprep.subr.mxu0 0.0
        %1312 = vmatpush1.msra.mxu0 0.0
        %1313 = vmatprep.subr.mxu0 0.0
        %1314 = vmatpush1.msra.mxu0 0.0
        %1315 = vmatprep.subr.mxu0 0.0
        %1316 = vmatpush1.msra.mxu0 0.0
        %1317 = vmatprep.subr.mxu0 0.0
        %1318 = vmatpush1.msra.mxu0 0.0
        %1319 = vmatprep.subr.mxu0 0.0
        %1320 = vmatpush1.msra.mxu0 0.0
        %1321 = vmatprep.mubr.f32.mxu0 0.0
        %1322 = vmatmul.mubr.f32.gmra.mrb[0].mxu0 %v1243
        %v1323 = vpop.f32.mrb[0].mxu0
        %v1324 = vadd.f32 %v1220, %v1323
        %v1325 = vpop.f32.mrb[0].mxu0
        %v1326 = vadd.f32 %v1220, %v1325
        %1327 = vmatprep.mubr.f32.mxu0 0.0
        %1328 = vmatmul.mubr.f32.gmra.mrb[0].mxu0 %v1246
        %v1329 = vpop.f32.mrb[0].mxu0
        %v1330 = vadd.f32 %v1225, %v1329
        %v1331 = vpop.f32.mrb[0].mxu0
        %v1332 = vadd.f32 %v1225, %v1331
        %1333 = vmatprep.mubr.f32.mxu0 0.0
        %1334 = vmatmul.mubr.f32.gmra.mrb[0].mxu0 %v1249
        %v1335 = vpop.f32.mrb[0].mxu0
        %v1336 = vadd.f32 %v1230, %v1335
        %v1337 = vpop.f32.mrb[0].mxu0
        %v1338 = vadd.f32 %v1230, %v1337
        %1339 = vmatprep.mubr.f32.mxu0 0.0
        %1340 = vmatmul.mubr.f32.gmra.mrb[0].mxu0 %v1252
        %v1341 = vpop.f32.mrb[0].mxu0
        %v1342 = vadd.f32 %v1235, %v1341
        %v1343 = vpop.f32.mrb[0].mxu0
        %v1344 = vadd.f32 %v1235, %v1343
        %1345 = vmatprep.mubr.f32.mxu0 0.0
        %1346 = vmatmul.mubr.f32.gmra.mrb[0].mxu0 %v1255
        %v1347 = vpop.f32.mrb[0].mxu0
        %v1348 = vadd.f32 %v1240, %v1347
        %v1349 = vpop.f32.mrb[0].mxu0
        %v1350 = vadd.f32 %v1240, %v1349
        %1351 = vdwg.mxu0
        %1352 = vmatprep.subr.mxu0 %v1174
        %1353 = vmatpush1.msra.mxu0 %v1173
        %1354 = vmatprep.subr.mxu0 %v1182
        %1355 = vmatpush1.msra.mxu0 %v1181
        %1356 = vmatprep.subr.mxu0 %v1190
        %1357 = vmatpush1.msra.mxu0 %v1189
        %1358 = vmatprep.subr.mxu0 %v1198
        %1359 = vmatpush1.msra.mxu0 %v1197
        %1360 = vmatprep.subr.mxu0 %v1206
        %1361 = vmatpush1.msra.mxu0 %v1205
        %1362 = vmatprep.subr.mxu0 0.0
        %1363 = vmatpush1.msra.mxu0 0.0
        %1364 = vmatprep.subr.mxu0 0.0
        %1365 = vmatpush1.msra.mxu0 0.0
        %1366 = vmatprep.subr.mxu0 0.0
        %1367 = vmatpush1.msra.mxu0 0.0
        %1368 = vmatprep.subr.mxu0 0.0
        %1369 = vmatpush1.msra.mxu0 0.0
        %1370 = vmatprep.subr.mxu0 0.0
        %1371 = vmatpush1.msra.mxu0 0.0
        %1372 = vmatprep.subr.mxu0 0.0
        %1373 = vmatpush1.msra.mxu0 0.0
        %1374 = vmatprep.subr.mxu0 0.0
        %1375 = vmatpush1.msra.mxu0 0.0
        %1376 = vmatprep.subr.mxu0 0.0
        %1377 = vmatpush1.msra.mxu0 0.0
        %1378 = vmatprep.subr.mxu0 0.0
        %1379 = vmatpush1.msra.mxu0 0.0
        %1380 = vmatprep.subr.mxu0 0.0
        %1381 = vmatpush1.msra.mxu0 0.0
        %1382 = vmatprep.subr.mxu0 0.0
        %1383 = vmatpush1.msra.mxu0 0.0
        %1384 = vmatprep.subr.mxu0 0.0
        %1385 = vmatpush1.msra.mxu0 0.0
        %1386 = vmatprep.subr.mxu0 0.0
        %1387 = vmatpush1.msra.mxu0 0.0
        %1388 = vmatprep.subr.mxu0 0.0
        %1389 = vmatpush1.msra.mxu0 0.0
        %1390 = vmatprep.subr.mxu0 0.0
        %1391 = vmatpush1.msra.mxu0 0.0
        %1392 = vmatprep.subr.mxu0 0.0
        %1393 = vmatpush1.msra.mxu0 0.0
        %1394 = vmatprep.subr.mxu0 0.0
        %1395 = vmatpush1.msra.mxu0 0.0
        %1396 = vmatprep.subr.mxu0 0.0
        %1397 = vmatpush1.msra.mxu0 0.0
        %1398 = vmatprep.subr.mxu0 0.0
        %1399 = vmatpush1.msra.mxu0 0.0
        %1400 = vmatprep.subr.mxu0 0.0
        %1401 = vmatpush1.msra.mxu0 0.0
        %1402 = vmatprep.subr.mxu0 0.0
        %1403 = vmatpush1.msra.mxu0 0.0
        %1404 = vmatprep.subr.mxu0 0.0
        %1405 = vmatpush1.msra.mxu0 0.0
        %1406 = vmatprep.subr.mxu0 0.0
        %1407 = vmatpush1.msra.mxu0 0.0
        %1408 = vmatprep.subr.mxu0 0.0
        %1409 = vmatpush1.msra.mxu0 0.0
        %1410 = vmatprep.subr.mxu0 0.0
        %1411 = vmatpush1.msra.mxu0 0.0
        %1412 = vmatprep.subr.mxu0 0.0
        %1413 = vmatpush1.msra.mxu0 0.0
        %1414 = vmatprep.subr.mxu0 0.0
        %1415 = vmatpush1.msra.mxu0 0.0
        %1416 = vmatprep.mubr.f32.mxu0 0.0
        %1417 = vmatmul.mubr.f32.gmra.mrb[0].mxu0 %v1243
        %v1418 = vpop.f32.mrb[0].mxu0
        %v1419 = vadd.f32 %v1220, %v1418
        %v1420 = vpop.f32.mrb[0].mxu0
        %v1421 = vadd.f32 %v1220, %v1420
        %1422 = vmatprep.mubr.f32.mxu0 0.0
        %1423 = vmatmul.mubr.f32.gmra.mrb[0].mxu0 %v1246
        %v1424 = vpop.f32.mrb[0].mxu0
        %v1425 = vadd.f32 %v1225, %v1424
        %v1426 = vpop.f32.mrb[0].mxu0
        %v1427 = vadd.f32 %v1225, %v1426
        %1428 = vmatprep.mubr.f32.mxu0 0.0
        %1429 = vmatmul.mubr.f32.gmra.mrb[0].mxu0 %v1249
        %v1430 = vpop.f32.mrb[0].mxu0
        %v1431 = vadd.f32 %v1230, %v1430
        %v1432 = vpop.f32.mrb[0].mxu0
        %v1433 = vadd.f32 %v1230, %v1432
        %1434 = vmatprep.mubr.f32.mxu0 0.0
        %1435 = vmatmul.mubr.f32.gmra.mrb[0].mxu0 %v1252
        %v1436 = vpop.f32.mrb[0].mxu0
        %v1437 = vadd.f32 %v1235, %v1436
        %v1438 = vpop.f32.mrb[0].mxu0
        %v1439 = vadd.f32 %v1235, %v1438
        %1440 = vmatprep.mubr.f32.mxu0 0.0
        %1441 = vmatmul.mubr.f32.gmra.mrb[0].mxu0 %v1255
        %v1442 = vpop.f32.mrb[0].mxu0
        %v1443 = vadd.f32 %v1240, %v1442
        %v1444 = vpop.f32.mrb[0].mxu0
        %v1445 = vadd.f32 %v1240, %v1444
        %1446 = vdwg.mxu0
        %1447 = vmatprep.subr.mxu0 %v1176
        %1448 = vmatpush1.msra.mxu0 %v1175
        %1449 = vmatprep.subr.mxu0 %v1184
        %1450 = vmatpush1.msra.mxu0 %v1183
        %1451 = vmatprep.subr.mxu0 %v1192
        %1452 = vmatpush1.msra.mxu0 %v1191
        %1453 = vmatprep.subr.mxu0 %v1200
        %1454 = vmatpush1.msra.mxu0 %v1199
        %1455 = vmatprep.subr.mxu0 %v1208
        %1456 = vmatpush1.msra.mxu0 %v1207
        %1457 = vmatprep.subr.mxu0 0.0
        %1458 = vmatpush1.msra.mxu0 0.0
        %1459 = vmatprep.subr.mxu0 0.0
        %1460 = vmatpush1.msra.mxu0 0.0
        %1461 = vmatprep.subr.mxu0 0.0
        %1462 = vmatpush1.msra.mxu0 0.0
        %1463 = vmatprep.subr.mxu0 0.0
        %1464 = vmatpush1.msra.mxu0 0.0
        %1465 = vmatprep.subr.mxu0 0.0
        %1466 = vmatpush1.msra.mxu0 0.0
        %1467 = vmatprep.subr.mxu0 0.0
        %1468 = vmatpush1.msra.mxu0 0.0
        %1469 = vmatprep.subr.mxu0 0.0
        %1470 = vmatpush1.msra.mxu0 0.0
        %1471 = vmatprep.subr.mxu0 0.0
        %1472 = vmatpush1.msra.mxu0 0.0
        %1473 = vmatprep.subr.mxu0 0.0
        %1474 = vmatpush1.msra.mxu0 0.0
        %1475 = vmatprep.subr.mxu0 0.0
        %1476 = vmatpush1.msra.mxu0 0.0
        %1477 = vmatprep.subr.mxu0 0.0
        %1478 = vmatpush1.msra.mxu0 0.0
        %1479 = vmatprep.subr.mxu0 0.0
        %1480 = vmatpush1.msra.mxu0 0.0
        %1481 = vmatprep.subr.mxu0 0.0
        %1482 = vmatpush1.msra.mxu0 0.0
        %1483 = vmatprep.subr.mxu0 0.0
        %1484 = vmatpush1.msra.mxu0 0.0
        %1485 = vmatprep.subr.mxu0 0.0
        %1486 = vmatpush1.msra.mxu0 0.0
        %1487 = vmatprep.subr.mxu0 0.0
        %1488 = vmatpush1.msra.mxu0 0.0
        %1489 = vmatprep.subr.mxu0 0.0
        %1490 = vmatpush1.msra.mxu0 0.0
        %1491 = vmatprep.subr.mxu0 0.0
        %1492 = vmatpush1.msra.mxu0 0.0
        %1493 = vmatprep.subr.mxu0 0.0
        %1494 = vmatpush1.msra.mxu0 0.0
        %1495 = vmatprep.subr.mxu0 0.0
        %1496 = vmatpush1.msra.mxu0 0.0
        %1497 = vmatprep.subr.mxu0 0.0
        %1498 = vmatpush1.msra.mxu0 0.0
        %1499 = vmatprep.subr.mxu0 0.0
        %1500 = vmatpush1.msra.mxu0 0.0
        %1501 = vmatprep.subr.mxu0 0.0
        %1502 = vmatpush1.msra.mxu0 0.0
        %1503 = vmatprep.subr.mxu0 0.0
        %1504 = vmatpush1.msra.mxu0 0.0
        %1505 = vmatprep.subr.mxu0 0.0
        %1506 = vmatpush1.msra.mxu0 0.0
        %1507 = vmatprep.subr.mxu0 0.0
        %1508 = vmatpush1.msra.mxu0 0.0
        %1509 = vmatprep.subr.mxu0 0.0
        %1510 = vmatpush1.msra.mxu0 0.0
        %1511 = vmatprep.mubr.f32.mxu0 0.0
        %1512 = vmatmul.mubr.f32.gmra.mrb[0].mxu0 %v1243
        %v1513 = vpop.f32.mrb[0].mxu0
        %v1514 = vadd.f32 %v1220, %v1513
        %v1515 = vpop.f32.mrb[0].mxu0
        %v1516 = vadd.f32 %v1220, %v1515
        %1517 = vmatprep.mubr.f32.mxu0 0.0
        %1518 = vmatmul.mubr.f32.gmra.mrb[0].mxu0 %v1246
        %v1519 = vpop.f32.mrb[0].mxu0
        %v1520 = vadd.f32 %v1225, %v1519
        %v1521 = vpop.f32.mrb[0].mxu0
        %v1522 = vadd.f32 %v1225, %v1521
        %1523 = vmatprep.mubr.f32.mxu0 0.0
        %1524 = vmatmul.mubr.f32.gmra.mrb[0].mxu0 %v1249
        %v1525 = vpop.f32.mrb[0].mxu0
        %v1526 = vadd.f32 %v1230, %v1525
        %v1527 = vpop.f32.mrb[0].mxu0
        %v1528 = vadd.f32 %v1230, %v1527
        %1529 = vmatprep.mubr.f32.mxu0 0.0
        %1530 = vmatmul.mubr.f32.gmra.mrb[0].mxu0 %v1252
        %v1531 = vpop.f32.mrb[0].mxu0
        %v1532 = vadd.f32 %v1235, %v1531
        %v1533 = vpop.f32.mrb[0].mxu0
        %v1534 = vadd.f32 %v1235, %v1533
        %1535 = vmatprep.mubr.f32.mxu0 0.0
        %1536 = vmatmul.mubr.f32.gmra.mrb[0].mxu0 %v1255
        %v1537 = vpop.f32.mrb[0].mxu0
        %v1538 = vadd.f32 %v1240, %v1537
        %v1539 = vpop.f32.mrb[0].mxu0
        %v1540 = vadd.f32 %v1240, %v1539
        %1541 = vdwg.mxu0
        %1542 = vmatprep.subr.mxu0 %v1178
        %1543 = vmatpush1.msra.mxu0 %v1177
        %1544 = vmatprep.subr.mxu0 %v1186
        %1545 = vmatpush1.msra.mxu0 %v1185
        %1546 = vmatprep.subr.mxu0 %v1194
        %1547 = vmatpush1.msra.mxu0 %v1193
        %1548 = vmatprep.subr.mxu0 %v1202
        %1549 = vmatpush1.msra.mxu0 %v1201
        %1550 = vmatprep.subr.mxu0 %v1210
        %1551 = vmatpush1.msra.mxu0 %v1209
        %1552 = vmatprep.subr.mxu0 0.0
        %1553 = vmatpush1.msra.mxu0 0.0
        %1554 = vmatprep.subr.mxu0 0.0
        %1555 = vmatpush1.msra.mxu0 0.0
        %1556 = vmatprep.subr.mxu0 0.0
        %1557 = vmatpush1.msra.mxu0 0.0
        %1558 = vmatprep.subr.mxu0 0.0
        %1559 = vmatpush1.msra.mxu0 0.0
        %1560 = vmatprep.subr.mxu0 0.0
        %1561 = vmatpush1.msra.mxu0 0.0
        %1562 = vmatprep.subr.mxu0 0.0
        %1563 = vmatpush1.msra.mxu0 0.0
        %1564 = vmatprep.subr.mxu0 0.0
        %1565 = vmatpush1.msra.mxu0 0.0
        %1566 = vmatprep.subr.mxu0 0.0
        %1567 = vmatpush1.msra.mxu0 0.0
        %1568 = vmatprep.subr.mxu0 0.0
        %1569 = vmatpush1.msra.mxu0 0.0
        %1570 = vmatprep.subr.mxu0 0.0
        %1571 = vmatpush1.msra.mxu0 0.0
        %1572 = vmatprep.subr.mxu0 0.0
        %1573 = vmatpush1.msra.mxu0 0.0
        %1574 = vmatprep.subr.mxu0 0.0
        %1575 = vmatpush1.msra.mxu0 0.0
        %1576 = vmatprep.subr.mxu0 0.0
        %1577 = vmatpush1.msra.mxu0 0.0
        %1578 = vmatprep.subr.mxu0 0.0
        %1579 = vmatpush1.msra.mxu0 0.0
        %1580 = vmatprep.subr.mxu0 0.0
        %1581 = vmatpush1.msra.mxu0 0.0
        %1582 = vmatprep.subr.mxu0 0.0
        %1583 = vmatpush1.msra.mxu0 0.0
        %1584 = vmatprep.subr.mxu0 0.0
        %1585 = vmatpush1.msra.mxu0 0.0
        %1586 = vmatprep.subr.mxu0 0.0
        %1587 = vmatpush1.msra.mxu0 0.0
        %1588 = vmatprep.subr.mxu0 0.0
        %1589 = vmatpush1.msra.mxu0 0.0
        %1590 = vmatprep.subr.mxu0 0.0
        %1591 = vmatpush1.msra.mxu0 0.0
        %1592 = vmatprep.subr.mxu0 0.0
        %1593 = vmatpush1.msra.mxu0 0.0
        %1594 = vmatprep.subr.mxu0 0.0
        %1595 = vmatpush1.msra.mxu0 0.0
        %1596 = vmatprep.subr.mxu0 0.0
        %1597 = vmatpush1.msra.mxu0 0.0
        %1598 = vmatprep.subr.mxu0 0.0
        %1599 = vmatpush1.msra.mxu0 0.0
        %1600 = vmatprep.subr.mxu0 0.0
        %1601 = vmatpush1.msra.mxu0 0.0
        %1602 = vmatprep.subr.mxu0 0.0
        %1603 = vmatpush1.msra.mxu0 0.0
        %1604 = vmatprep.subr.mxu0 0.0
        %1605 = vmatpush1.msra.mxu0 0.0
        %1606 = vmatprep.mubr.f32.mxu0 0.0
        %1607 = vmatmul.mubr.f32.gmra.mrb[0].mxu0 %v1243
        %v1608 = vpop.f32.mrb[0].mxu0
        %v1609 = vadd.f32 %v1220, %v1608
        %v1610 = vpop.f32.mrb[0].mxu0
        %v1611 = vadd.f32 %v1220, %v1610
        %1612 = vmatprep.mubr.f32.mxu0 0.0
        %1613 = vmatmul.mubr.f32.gmra.mrb[0].mxu0 %v1246
        %v1614 = vpop.f32.mrb[0].mxu0
        %v1615 = vadd.f32 %v1225, %v1614
        %v1616 = vpop.f32.mrb[0].mxu0
        %v1617 = vadd.f32 %v1225, %v1616
        %1618 = vmatprep.mubr.f32.mxu0 0.0
        %1619 = vmatmul.mubr.f32.gmra.mrb[0].mxu0 %v1249
        %v1620 = vpop.f32.mrb[0].mxu0
        %v1621 = vadd.f32 %v1230, %v1620
        %v1622 = vpop.f32.mrb[0].mxu0
        %v1623 = vadd.f32 %v1230, %v1622
        %1624 = vmatprep.mubr.f32.mxu0 0.0
        %1625 = vmatmul.mubr.f32.gmra.mrb[0].mxu0 %v1252
        %v1626 = vpop.f32.mrb[0].mxu0
        %v1627 = vadd.f32 %v1235, %v1626
        %v1628 = vpop.f32.mrb[0].mxu0
        %v1629 = vadd.f32 %v1235, %v1628
        %1630 = vmatprep.mubr.f32.mxu0 0.0
        %1631 = vmatmul.mubr.f32.gmra.mrb[0].mxu0 %v1255
        %v1632 = vpop.f32.mrb[0].mxu0
        %v1633 = vadd.f32 %v1240, %v1632
        %v1634 = vpop.f32.mrb[0].mxu0
        %v1635 = vadd.f32 %v1240, %v1634
        %1636 = vdwg.mxu0
        %v1637 = vtanh.pop %v1324
        %v1638 = vtanh.pop %v1326
        %v1639 = vtanh.pop %v1419
        %v1640 = vtanh.pop %v1421
        %v1641 = vtanh.pop %v1514
        %v1642 = vtanh.pop %v1516
        %v1643 = vtanh.pop %v1609
        %v1644 = vtanh.pop %v1611
        %v1645 = vtanh.pop %v1330
        %v1646 = vtanh.pop %v1332
        %v1647 = vtanh.pop %v1425
        %v1648 = vtanh.pop %v1427
        %v1649 = vtanh.pop %v1520
        %v1650 = vtanh.pop %v1522
        %v1651 = vtanh.pop %v1615
        %v1652 = vtanh.pop %v1617
        %v1653 = vtanh.pop %v1336
        %v1654 = vtanh.pop %v1338
        %v1655 = vtanh.pop %v1431
        %v1656 = vtanh.pop %v1433
        %v1657 = vtanh.pop %v1526
        %v1658 = vtanh.pop %v1528
        %v1659 = vtanh.pop %v1621
        %v1660 = vtanh.pop %v1623
        %v1661 = vtanh.pop %v1342
        %v1662 = vtanh.pop %v1344
        %v1663 = vtanh.pop %v1437
        %v1664 = vtanh.pop %v1439
        %v1665 = vtanh.pop %v1532
        %v1666 = vtanh.pop %v1534
        %v1667 = vtanh.pop %v1627
        %v1668 = vtanh.pop %v1629
        %v1669 = vtanh.pop %v1348
        %v1670 = vtanh.pop %v1350
        %v1671 = vtanh.pop %v1443
        %v1672 = vtanh.pop %v1445
        %v1673 = vtanh.pop %v1538
        %v1674 = vtanh.pop %v1540
        %v1675 = vtanh.pop %v1633
        %v1676 = vtanh.pop %v1635
        %s1677 = scalar_lea.vmem %s4, 80
        %v1678 = vld [vmem:[%s1677] sm:$0xff]
        %v1679 = vld [vmem:[%s1677 + $0x8] sm:$0xff]
        %v1680 = vld [vmem:[%s1677 + $0x10] sm:$0xff]
        %v1681 = vld [vmem:[%s1677 + $0x18] sm:$0xff]
        %v1682 = vld [vmem:[%s1677 + $0x20] sm:$0xff]
        %1684 = vset.pattern.permute.xlu0 0
        %1685 = vperm.xlu0 %1684, %v1678
        %v1686 = vpop.permute.xlu0 %1685
        %1689 = vset.pattern.permute.xlu0 0
        %1690 = vperm.xlu0 %1689, %v1679
        %v1691 = vpop.permute.xlu0 %1690
        %1694 = vset.pattern.permute.xlu0 0
        %1695 = vperm.xlu0 %1694, %v1680
        %v1696 = vpop.permute.xlu0 %1695
        %1699 = vset.pattern.permute.xlu0 0
        %1700 = vperm.xlu0 %1699, %v1681
        %v1701 = vpop.permute.xlu0 %1700
        %1704 = vset.pattern.permute.xlu0 0
        %1705 = vperm.xlu0 %1704, %v1682
        %v1706 = vpop.permute.xlu0 %1705
        %v1709 = vsel %vm775, %v720, 0
        %v1712 = vsel %vm775, %v721, 0
        %v1715 = vsel %vm775, %v722, 0
        %v1718 = vsel %vm775, %v723, 0
        %v1721 = vsel %vm775, %v724, 0
        %1723 = vmatprep.subr.mxu0 %v1638
        %1724 = vmatpush1.msra.mxu0 %v1637
        %1725 = vmatprep.subr.mxu0 %v1646
        %1726 = vmatpush1.msra.mxu0 %v1645
        %1727 = vmatprep.subr.mxu0 %v1654
        %1728 = vmatpush1.msra.mxu0 %v1653
        %1729 = vmatprep.subr.mxu0 %v1662
        %1730 = vmatpush1.msra.mxu0 %v1661
        %1731 = vmatprep.subr.mxu0 %v1670
        %1732 = vmatpush1.msra.mxu0 %v1669
        %1733 = vmatprep.subr.mxu0 0.0
        %1734 = vmatpush1.msra.mxu0 0.0
        %1735 = vmatprep.subr.mxu0 0.0
        %1736 = vmatpush1.msra.mxu0 0.0
        %1737 = vmatprep.subr.mxu0 0.0
        %1738 = vmatpush1.msra.mxu0 0.0
        %1739 = vmatprep.subr.mxu0 0.0
        %1740 = vmatpush1.msra.mxu0 0.0
        %1741 = vmatprep.subr.mxu0 0.0
        %1742 = vmatpush1.msra.mxu0 0.0
        %1743 = vmatprep.subr.mxu0 0.0
        %1744 = vmatpush1.msra.mxu0 0.0
        %1745 = vmatprep.subr.mxu0 0.0
        %1746 = vmatpush1.msra.mxu0 0.0
        %1747 = vmatprep.subr.mxu0 0.0
        %1748 = vmatpush1.msra.mxu0 0.0
        %1749 = vmatprep.subr.mxu0 0.0
        %1750 = vmatpush1.msra.mxu0 0.0
        %1751 = vmatprep.subr.mxu0 0.0
        %1752 = vmatpush1.msra.mxu0 0.0
        %1753 = vmatprep.subr.mxu0 0.0
        %1754 = vmatpush1.msra.mxu0 0.0
        %1755 = vmatprep.subr.mxu0 0.0
        %1756 = vmatpush1.msra.mxu0 0.0
        %1757 = vmatprep.subr.mxu0 0.0
        %1758 = vmatpush1.msra.mxu0 0.0
        %1759 = vmatprep.subr.mxu0 0.0
        %1760 = vmatpush1.msra.mxu0 0.0
        %1761 = vmatprep.subr.mxu0 0.0
        %1762 = vmatpush1.msra.mxu0 0.0
        %1763 = vmatprep.subr.mxu0 0.0
        %1764 = vmatpush1.msra.mxu0 0.0
        %1765 = vmatprep.subr.mxu0 0.0
        %1766 = vmatpush1.msra.mxu0 0.0
        %1767 = vmatprep.subr.mxu0 0.0
        %1768 = vmatpush1.msra.mxu0 0.0
        %1769 = vmatprep.subr.mxu0 0.0
        %1770 = vmatpush1.msra.mxu0 0.0
        %1771 = vmatprep.subr.mxu0 0.0
        %1772 = vmatpush1.msra.mxu0 0.0
        %1773 = vmatprep.subr.mxu0 0.0
        %1774 = vmatpush1.msra.mxu0 0.0
        %1775 = vmatprep.subr.mxu0 0.0
        %1776 = vmatpush1.msra.mxu0 0.0
        %1777 = vmatprep.subr.mxu0 0.0
        %1778 = vmatpush1.msra.mxu0 0.0
        %1779 = vmatprep.subr.mxu0 0.0
        %1780 = vmatpush1.msra.mxu0 0.0
        %1781 = vmatprep.subr.mxu0 0.0
        %1782 = vmatpush1.msra.mxu0 0.0
        %1783 = vmatprep.subr.mxu0 0.0
        %1784 = vmatpush1.msra.mxu0 0.0
        %1785 = vmatprep.subr.mxu0 0.0
        %1786 = vmatpush1.msra.mxu0 0.0
        %1787 = vmatprep.mubr.f32.mxu0 0.0
        %1788 = vmatmul.mubr.f32.gmra.mrb[0].mxu0 %v1709
        %v1789 = vpop.f32.mrb[0].mxu0
        %v1790 = vadd.f32 %v1686, %v1789
        %v1791 = vpop.f32.mrb[0].mxu0
        %v1792 = vadd.f32 %v1686, %v1791
        %1793 = vmatprep.mubr.f32.mxu0 0.0
        %1794 = vmatmul.mubr.f32.gmra.mrb[0].mxu0 %v1712
        %v1795 = vpop.f32.mrb[0].mxu0
        %v1796 = vadd.f32 %v1691, %v1795
        %v1797 = vpop.f32.mrb[0].mxu0
        %v1798 = vadd.f32 %v1691, %v1797
        %1799 = vmatprep.mubr.f32.mxu0 0.0
        %1800 = vmatmul.mubr.f32.gmra.mrb[0].mxu0 %v1715
        %v1801 = vpop.f32.mrb[0].mxu0
        %v1802 = vadd.f32 %v1696, %v1801
        %v1803 = vpop.f32.mrb[0].mxu0
        %v1804 = vadd.f32 %v1696, %v1803
        %1805 = vmatprep.mubr.f32.mxu0 0.0
        %1806 = vmatmul.mubr.f32.gmra.mrb[0].mxu0 %v1718
        %v1807 = vpop.f32.mrb[0].mxu0
        %v1808 = vadd.f32 %v1701, %v1807
        %v1809 = vpop.f32.mrb[0].mxu0
        %v1810 = vadd.f32 %v1701, %v1809
        %1811 = vmatprep.mubr.f32.mxu0 0.0
        %1812 = vmatmul.mubr.f32.gmra.mrb[0].mxu0 %v1721
        %v1813 = vpop.f32.mrb[0].mxu0
        %v1814 = vadd.f32 %v1706, %v1813
        %v1815 = vpop.f32.mrb[0].mxu0
        %v1816 = vadd.f32 %v1706, %v1815
        %1817 = vdwg.mxu0
        %1818 = vmatprep.subr.mxu0 %v1640
        %1819 = vmatpush1.msra.mxu0 %v1639
        %1820 = vmatprep.subr.mxu0 %v1648
        %1821 = vmatpush1.msra.mxu0 %v1647
        %1822 = vmatprep.subr.mxu0 %v1656
        %1823 = vmatpush1.msra.mxu0 %v1655
        %1824 = vmatprep.subr.mxu0 %v1664
        %1825 = vmatpush1.msra.mxu0 %v1663
        %1826 = vmatprep.subr.mxu0 %v1672
        %1827 = vmatpush1.msra.mxu0 %v1671
        %1828 = vmatprep.subr.mxu0 0.0
        %1829 = vmatpush1.msra.mxu0 0.0
        %1830 = vmatprep.subr.mxu0 0.0
        %1831 = vmatpush1.msra.mxu0 0.0
        %1832 = vmatprep.subr.mxu0 0.0
        %1833 = vmatpush1.msra.mxu0 0.0
        %1834 = vmatprep.subr.mxu0 0.0
        %1835 = vmatpush1.msra.mxu0 0.0
        %1836 = vmatprep.subr.mxu0 0.0
        %1837 = vmatpush1.msra.mxu0 0.0
        %1838 = vmatprep.subr.mxu0 0.0
        %1839 = vmatpush1.msra.mxu0 0.0
        %1840 = vmatprep.subr.mxu0 0.0
        %1841 = vmatpush1.msra.mxu0 0.0
        %1842 = vmatprep.subr.mxu0 0.0
        %1843 = vmatpush1.msra.mxu0 0.0
        %1844 = vmatprep.subr.mxu0 0.0
        %1845 = vmatpush1.msra.mxu0 0.0
        %1846 = vmatprep.subr.mxu0 0.0
        %1847 = vmatpush1.msra.mxu0 0.0
        %1848 = vmatprep.subr.mxu0 0.0
        %1849 = vmatpush1.msra.mxu0 0.0
        %1850 = vmatprep.subr.mxu0 0.0
        %1851 = vmatpush1.msra.mxu0 0.0
        %1852 = vmatprep.subr.mxu0 0.0
        %1853 = vmatpush1.msra.mxu0 0.0
        %1854 = vmatprep.subr.mxu0 0.0
        %1855 = vmatpush1.msra.mxu0 0.0
        %1856 = vmatprep.subr.mxu0 0.0
        %1857 = vmatpush1.msra.mxu0 0.0
        %1858 = vmatprep.subr.mxu0 0.0
        %1859 = vmatpush1.msra.mxu0 0.0
        %1860 = vmatprep.subr.mxu0 0.0
        %1861 = vmatpush1.msra.mxu0 0.0
        %1862 = vmatprep.subr.mxu0 0.0
        %1863 = vmatpush1.msra.mxu0 0.0
        %1864 = vmatprep.subr.mxu0 0.0
        %1865 = vmatpush1.msra.mxu0 0.0
        %1866 = vmatprep.subr.mxu0 0.0
        %1867 = vmatpush1.msra.mxu0 0.0
        %1868 = vmatprep.subr.mxu0 0.0
        %1869 = vmatpush1.msra.mxu0 0.0
        %1870 = vmatprep.subr.mxu0 0.0
        %1871 = vmatpush1.msra.mxu0 0.0
        %1872 = vmatprep.subr.mxu0 0.0
        %1873 = vmatpush1.msra.mxu0 0.0
        %1874 = vmatprep.subr.mxu0 0.0
        %1875 = vmatpush1.msra.mxu0 0.0
        %1876 = vmatprep.subr.mxu0 0.0
        %1877 = vmatpush1.msra.mxu0 0.0
        %1878 = vmatprep.subr.mxu0 0.0
        %1879 = vmatpush1.msra.mxu0 0.0
        %1880 = vmatprep.subr.mxu0 0.0
        %1881 = vmatpush1.msra.mxu0 0.0
        %1882 = vmatprep.mubr.f32.mxu0 0.0
        %1883 = vmatmul.mubr.f32.gmra.mrb[0].mxu0 %v1709
        %v1884 = vpop.f32.mrb[0].mxu0
        %v1885 = vadd.f32 %v1686, %v1884
        %v1886 = vpop.f32.mrb[0].mxu0
        %v1887 = vadd.f32 %v1686, %v1886
        %1888 = vmatprep.mubr.f32.mxu0 0.0
        %1889 = vmatmul.mubr.f32.gmra.mrb[0].mxu0 %v1712
        %v1890 = vpop.f32.mrb[0].mxu0
        %v1891 = vadd.f32 %v1691, %v1890
        %v1892 = vpop.f32.mrb[0].mxu0
        %v1893 = vadd.f32 %v1691, %v1892
        %1894 = vmatprep.mubr.f32.mxu0 0.0
        %1895 = vmatmul.mubr.f32.gmra.mrb[0].mxu0 %v1715
        %v1896 = vpop.f32.mrb[0].mxu0
        %v1897 = vadd.f32 %v1696, %v1896
        %v1898 = vpop.f32.mrb[0].mxu0
        %v1899 = vadd.f32 %v1696, %v1898
        %1900 = vmatprep.mubr.f32.mxu0 0.0
        %1901 = vmatmul.mubr.f32.gmra.mrb[0].mxu0 %v1718
        %v1902 = vpop.f32.mrb[0].mxu0
        %v1903 = vadd.f32 %v1701, %v1902
        %v1904 = vpop.f32.mrb[0].mxu0
        %v1905 = vadd.f32 %v1701, %v1904
        %1906 = vmatprep.mubr.f32.mxu0 0.0
        %1907 = vmatmul.mubr.f32.gmra.mrb[0].mxu0 %v1721
        %v1908 = vpop.f32.mrb[0].mxu0
        %v1909 = vadd.f32 %v1706, %v1908
        %v1910 = vpop.f32.mrb[0].mxu0
        %v1911 = vadd.f32 %v1706, %v1910
        %1912 = vdwg.mxu0
        %1913 = vmatprep.subr.mxu0 %v1642
        %1914 = vmatpush1.msra.mxu0 %v1641
        %1915 = vmatprep.subr.mxu0 %v1650
        %1916 = vmatpush1.msra.mxu0 %v1649
        %1917 = vmatprep.subr.mxu0 %v1658
        %1918 = vmatpush1.msra.mxu0 %v1657
        %1919 = vmatprep.subr.mxu0 %v1666
        %1920 = vmatpush1.msra.mxu0 %v1665
        %1921 = vmatprep.subr.mxu0 %v1674
        %1922 = vmatpush1.msra.mxu0 %v1673
        %1923 = vmatprep.subr.mxu0 0.0
        %1924 = vmatpush1.msra.mxu0 0.0
        %1925 = vmatprep.subr.mxu0 0.0
        %1926 = vmatpush1.msra.mxu0 0.0
        %1927 = vmatprep.subr.mxu0 0.0
        %1928 = vmatpush1.msra.mxu0 0.0
        %1929 = vmatprep.subr.mxu0 0.0
        %1930 = vmatpush1.msra.mxu0 0.0
        %1931 = vmatprep.subr.mxu0 0.0
        %1932 = vmatpush1.msra.mxu0 0.0
        %1933 = vmatprep.subr.mxu0 0.0
        %1934 = vmatpush1.msra.mxu0 0.0
        %1935 = vmatprep.subr.mxu0 0.0
        %1936 = vmatpush1.msra.mxu0 0.0
        %1937 = vmatprep.subr.mxu0 0.0
        %1938 = vmatpush1.msra.mxu0 0.0
        %1939 = vmatprep.subr.mxu0 0.0
        %1940 = vmatpush1.msra.mxu0 0.0
        %1941 = vmatprep.subr.mxu0 0.0
        %1942 = vmatpush1.msra.mxu0 0.0
        %1943 = vmatprep.subr.mxu0 0.0
        %1944 = vmatpush1.msra.mxu0 0.0
        %1945 = vmatprep.subr.mxu0 0.0
        %1946 = vmatpush1.msra.mxu0 0.0
        %1947 = vmatprep.subr.mxu0 0.0
        %1948 = vmatpush1.msra.mxu0 0.0
        %1949 = vmatprep.subr.mxu0 0.0
        %1950 = vmatpush1.msra.mxu0 0.0
        %1951 = vmatprep.subr.mxu0 0.0
        %1952 = vmatpush1.msra.mxu0 0.0
        %1953 = vmatprep.subr.mxu0 0.0
        %1954 = vmatpush1.msra.mxu0 0.0
        %1955 = vmatprep.subr.mxu0 0.0
        %1956 = vmatpush1.msra.mxu0 0.0
        %1957 = vmatprep.subr.mxu0 0.0
        %1958 = vmatpush1.msra.mxu0 0.0
        %1959 = vmatprep.subr.mxu0 0.0
        %1960 = vmatpush1.msra.mxu0 0.0
        %1961 = vmatprep.subr.mxu0 0.0
        %1962 = vmatpush1.msra.mxu0 0.0
        %1963 = vmatprep.subr.mxu0 0.0
        %1964 = vmatpush1.msra.mxu0 0.0
        %1965 = vmatprep.subr.mxu0 0.0
        %1966 = vmatpush1.msra.mxu0 0.0
        %1967 = vmatprep.subr.mxu0 0.0
        %1968 = vmatpush1.msra.mxu0 0.0
        %1969 = vmatprep.subr.mxu0 0.0
        %1970 = vmatpush1.msra.mxu0 0.0
        %1971 = vmatprep.subr.mxu0 0.0
        %1972 = vmatpush1.msra.mxu0 0.0
        %1973 = vmatprep.subr.mxu0 0.0
        %1974 = vmatpush1.msra.mxu0 0.0
        %1975 = vmatprep.subr.mxu0 0.0
        %1976 = vmatpush1.msra.mxu0 0.0
        %1977 = vmatprep.mubr.f32.mxu0 0.0
        %1978 = vmatmul.mubr.f32.gmra.mrb[0].mxu0 %v1709
        %v1979 = vpop.f32.mrb[0].mxu0
        %v1980 = vadd.f32 %v1686, %v1979
        %v1981 = vpop.f32.mrb[0].mxu0
        %v1982 = vadd.f32 %v1686, %v1981
        %1983 = vmatprep.mubr.f32.mxu0 0.0
        %1984 = vmatmul.mubr.f32.gmra.mrb[0].mxu0 %v1712
        %v1985 = vpop.f32.mrb[0].mxu0
        %v1986 = vadd.f32 %v1691, %v1985
        %v1987 = vpop.f32.mrb[0].mxu0
        %v1988 = vadd.f32 %v1691, %v1987
        %1989 = vmatprep.mubr.f32.mxu0 0.0
        %1990 = vmatmul.mubr.f32.gmra.mrb[0].mxu0 %v1715
        %v1991 = vpop.f32.mrb[0].mxu0
        %v1992 = vadd.f32 %v1696, %v1991
        %v1993 = vpop.f32.mrb[0].mxu0
        %v1994 = vadd.f32 %v1696, %v1993
        %1995 = vmatprep.mubr.f32.mxu0 0.0
        %1996 = vmatmul.mubr.f32.gmra.mrb[0].mxu0 %v1718
        %v1997 = vpop.f32.mrb[0].mxu0
        %v1998 = vadd.f32 %v1701, %v1997
        %v1999 = vpop.f32.mrb[0].mxu0
        %v2000 = vadd.f32 %v1701, %v1999
        %2001 = vmatprep.mubr.f32.mxu0 0.0
        %2002 = vmatmul.mubr.f32.gmra.mrb[0].mxu0 %v1721
        %v2003 = vpop.f32.mrb[0].mxu0
        %v2004 = vadd.f32 %v1706, %v2003
        %v2005 = vpop.f32.mrb[0].mxu0
        %v2006 = vadd.f32 %v1706, %v2005
        %2007 = vdwg.mxu0
        %2008 = vmatprep.subr.mxu0 %v1644
        %2009 = vmatpush1.msra.mxu0 %v1643
        %2010 = vmatprep.subr.mxu0 %v1652
        %2011 = vmatpush1.msra.mxu0 %v1651
        %2012 = vmatprep.subr.mxu0 %v1660
        %2013 = vmatpush1.msra.mxu0 %v1659
        %2014 = vmatprep.subr.mxu0 %v1668
        %2015 = vmatpush1.msra.mxu0 %v1667
        %2016 = vmatprep.subr.mxu0 %v1676
        %2017 = vmatpush1.msra.mxu0 %v1675
        %2018 = vmatprep.subr.mxu0 0.0
        %2019 = vmatpush1.msra.mxu0 0.0
        %2020 = vmatprep.subr.mxu0 0.0
        %2021 = vmatpush1.msra.mxu0 0.0
        %2022 = vmatprep.subr.mxu0 0.0
        %2023 = vmatpush1.msra.mxu0 0.0
        %2024 = vmatprep.subr.mxu0 0.0
        %2025 = vmatpush1.msra.mxu0 0.0
        %2026 = vmatprep.subr.mxu0 0.0
        %2027 = vmatpush1.msra.mxu0 0.0
        %2028 = vmatprep.subr.mxu0 0.0
        %2029 = vmatpush1.msra.mxu0 0.0
        %2030 = vmatprep.subr.mxu0 0.0
        %2031 = vmatpush1.msra.mxu0 0.0
        %2032 = vmatprep.subr.mxu0 0.0
        %2033 = vmatpush1.msra.mxu0 0.0
        %2034 = vmatprep.subr.mxu0 0.0
        %2035 = vmatpush1.msra.mxu0 0.0
        %2036 = vmatprep.subr.mxu0 0.0
        %2037 = vmatpush1.msra.mxu0 0.0
        %2038 = vmatprep.subr.mxu0 0.0
        %2039 = vmatpush1.msra.mxu0 0.0
        %2040 = vmatprep.subr.mxu0 0.0
        %2041 = vmatpush1.msra.mxu0 0.0
        %2042 = vmatprep.subr.mxu0 0.0
        %2043 = vmatpush1.msra.mxu0 0.0
        %2044 = vmatprep.subr.mxu0 0.0
        %2045 = vmatpush1.msra.mxu0 0.0
        %2046 = vmatprep.subr.mxu0 0.0
        %2047 = vmatpush1.msra.mxu0 0.0
        %2048 = vmatprep.subr.mxu0 0.0
        %2049 = vmatpush1.msra.mxu0 0.0
        %2050 = vmatprep.subr.mxu0 0.0
        %2051 = vmatpush1.msra.mxu0 0.0
        %2052 = vmatprep.subr.mxu0 0.0
        %2053 = vmatpush1.msra.mxu0 0.0
        %2054 = vmatprep.subr.mxu0 0.0
        %2055 = vmatpush1.msra.mxu0 0.0
        %2056 = vmatprep.subr.mxu0 0.0
        %2057 = vmatpush1.msra.mxu0 0.0
        %2058 = vmatprep.subr.mxu0 0.0
        %2059 = vmatpush1.msra.mxu0 0.0
        %2060 = vmatprep.subr.mxu0 0.0
        %2061 = vmatpush1.msra.mxu0 0.0
        %2062 = vmatprep.subr.mxu0 0.0
        %2063 = vmatpush1.msra.mxu0 0.0
        %2064 = vmatprep.subr.mxu0 0.0
        %2065 = vmatpush1.msra.mxu0 0.0
        %2066 = vmatprep.subr.mxu0 0.0
        %2067 = vmatpush1.msra.mxu0 0.0
        %2068 = vmatprep.subr.mxu0 0.0
        %2069 = vmatpush1.msra.mxu0 0.0
        %2070 = vmatprep.subr.mxu0 0.0
        %2071 = vmatpush1.msra.mxu0 0.0
        %2072 = vmatprep.mubr.f32.mxu0 0.0
        %2073 = vmatmul.mubr.f32.gmra.mrb[0].mxu0 %v1709
        %v2074 = vpop.f32.mrb[0].mxu0
        %v2075 = vadd.f32 %v1686, %v2074
        %v2076 = vpop.f32.mrb[0].mxu0
        %v2077 = vadd.f32 %v1686, %v2076
        %2078 = vmatprep.mubr.f32.mxu0 0.0
        %2079 = vmatmul.mubr.f32.gmra.mrb[0].mxu0 %v1712
        %v2080 = vpop.f32.mrb[0].mxu0
        %v2081 = vadd.f32 %v1691, %v2080
        %v2082 = vpop.f32.mrb[0].mxu0
        %v2083 = vadd.f32 %v1691, %v2082
        %2084 = vmatprep.mubr.f32.mxu0 0.0
        %2085 = vmatmul.mubr.f32.gmra.mrb[0].mxu0 %v1715
        %v2086 = vpop.f32.mrb[0].mxu0
        %v2087 = vadd.f32 %v1696, %v2086
        %v2088 = vpop.f32.mrb[0].mxu0
        %v2089 = vadd.f32 %v1696, %v2088
        %2090 = vmatprep.mubr.f32.mxu0 0.0
        %2091 = vmatmul.mubr.f32.gmra.mrb[0].mxu0 %v1718
        %v2092 = vpop.f32.mrb[0].mxu0
        %v2093 = vadd.f32 %v1701, %v2092
        %v2094 = vpop.f32.mrb[0].mxu0
        %v2095 = vadd.f32 %v1701, %v2094
        %2096 = vmatprep.mubr.f32.mxu0 0.0
        %2097 = vmatmul.mubr.f32.gmra.mrb[0].mxu0 %v1721
        %v2098 = vpop.f32.mrb[0].mxu0
        %v2099 = vadd.f32 %v1706, %v2098
        %v2100 = vpop.f32.mrb[0].mxu0
        %v2101 = vadd.f32 %v1706, %v2100
        %2102 = vdwg.mxu0
        %v2103 = vtanh.pop %v1790
        %v2104 = vtanh.pop %v1792
        %v2105 = vtanh.pop %v1885
        %v2106 = vtanh.pop %v1887
        %v2107 = vtanh.pop %v1980
        %v2108 = vtanh.pop %v1982
        %v2109 = vtanh.pop %v2075
        %v2110 = vtanh.pop %v2077
        %v2111 = vtanh.pop %v1796
        %v2112 = vtanh.pop %v1798
        %v2113 = vtanh.pop %v1891
        %v2114 = vtanh.pop %v1893
        %v2115 = vtanh.pop %v1986
        %v2116 = vtanh.pop %v1988
        %v2117 = vtanh.pop %v2081
        %v2118 = vtanh.pop %v2083
        %v2119 = vtanh.pop %v1802
        %v2120 = vtanh.pop %v1804
        %v2121 = vtanh.pop %v1897
        %v2122 = vtanh.pop %v1899
        %v2123 = vtanh.pop %v1992
        %v2124 = vtanh.pop %v1994
        %v2125 = vtanh.pop %v2087
        %v2126 = vtanh.pop %v2089
        %v2127 = vtanh.pop %v1808
        %v2128 = vtanh.pop %v1810
        %v2129 = vtanh.pop %v1903
        %v2130 = vtanh.pop %v1905
        %v2131 = vtanh.pop %v1998
        %v2132 = vtanh.pop %v2000
        %v2133 = vtanh.pop %v2093
        %v2134 = vtanh.pop %v2095
        %v2135 = vtanh.pop %v1814
        %v2136 = vtanh.pop %v1816
        %v2137 = vtanh.pop %v1909
        %v2138 = vtanh.pop %v1911
        %v2139 = vtanh.pop %v2004
        %v2140 = vtanh.pop %v2006
        %v2141 = vtanh.pop %v2099
        %v2142 = vtanh.pop %v2101
        %s2143 = scalar_lea.vmem %s4, 120
        %v2144 = vld [vmem:[%s2143] sm:$0xff]
        %v2145 = vld [vmem:[%s2143 + $0x8] sm:$0xff]
        %v2146 = vld [vmem:[%s2143 + $0x10] sm:$0xff]
        %v2147 = vld [vmem:[%s2143 + $0x18] sm:$0xff]
        %v2148 = vld [vmem:[%s2143 + $0x20] sm:$0xff]
        %2150 = vset.pattern.permute.xlu0 0
        %2151 = vperm.xlu0 %2150, %v2144
        %v2152 = vpop.permute.xlu0 %2151
        %2155 = vset.pattern.permute.xlu0 0
        %2156 = vperm.xlu0 %2155, %v2145
        %v2157 = vpop.permute.xlu0 %2156
        %2160 = vset.pattern.permute.xlu0 0
        %2161 = vperm.xlu0 %2160, %v2146
        %v2162 = vpop.permute.xlu0 %2161
        %2165 = vset.pattern.permute.xlu0 0
        %2166 = vperm.xlu0 %2165, %v2147
        %v2167 = vpop.permute.xlu0 %2166
        %2170 = vset.pattern.permute.xlu0 0
        %2171 = vperm.xlu0 %2170, %v2148
        %v2172 = vpop.permute.xlu0 %2171
        %v2175 = vsel %vm775, %v725, 0
        %v2178 = vsel %vm775, %v726, 0
        %v2181 = vsel %vm775, %v727, 0
        %v2184 = vsel %vm775, %v728, 0
        %v2187 = vsel %vm775, %v729, 0
        %2189 = vmatprep.subr.mxu0 %v2104
        %2190 = vmatpush1.msra.mxu0 %v2103
        %2191 = vmatprep.subr.mxu0 %v2112
        %2192 = vmatpush1.msra.mxu0 %v2111
        %2193 = vmatprep.subr.mxu0 %v2120
        %2194 = vmatpush1.msra.mxu0 %v2119
        %2195 = vmatprep.subr.mxu0 %v2128
        %2196 = vmatpush1.msra.mxu0 %v2127
        %2197 = vmatprep.subr.mxu0 %v2136
        %2198 = vmatpush1.msra.mxu0 %v2135
        %2199 = vmatprep.subr.mxu0 0.0
        %2200 = vmatpush1.msra.mxu0 0.0
        %2201 = vmatprep.subr.mxu0 0.0
        %2202 = vmatpush1.msra.mxu0 0.0
        %2203 = vmatprep.subr.mxu0 0.0
        %2204 = vmatpush1.msra.mxu0 0.0
        %2205 = vmatprep.subr.mxu0 0.0
        %2206 = vmatpush1.msra.mxu0 0.0
        %2207 = vmatprep.subr.mxu0 0.0
        %2208 = vmatpush1.msra.mxu0 0.0
        %2209 = vmatprep.subr.mxu0 0.0
        %2210 = vmatpush1.msra.mxu0 0.0
        %2211 = vmatprep.subr.mxu0 0.0
        %2212 = vmatpush1.msra.mxu0 0.0
        %2213 = vmatprep.subr.mxu0 0.0
        %2214 = vmatpush1.msra.mxu0 0.0
        %2215 = vmatprep.subr.mxu0 0.0
        %2216 = vmatpush1.msra.mxu0 0.0
        %2217 = vmatprep.subr.mxu0 0.0
        %2218 = vmatpush1.msra.mxu0 0.0
        %2219 = vmatprep.subr.mxu0 0.0
        %2220 = vmatpush1.msra.mxu0 0.0
        %2221 = vmatprep.subr.mxu0 0.0
        %2222 = vmatpush1.msra.mxu0 0.0
        %2223 = vmatprep.subr.mxu0 0.0
        %2224 = vmatpush1.msra.mxu0 0.0
        %2225 = vmatprep.subr.mxu0 0.0
        %2226 = vmatpush1.msra.mxu0 0.0
        %2227 = vmatprep.subr.mxu0 0.0
        %2228 = vmatpush1.msra.mxu0 0.0
        %2229 = vmatprep.subr.mxu0 0.0
        %2230 = vmatpush1.msra.mxu0 0.0
        %2231 = vmatprep.subr.mxu0 0.0
        %2232 = vmatpush1.msra.mxu0 0.0
        %2233 = vmatprep.subr.mxu0 0.0
        %2234 = vmatpush1.msra.mxu0 0.0
        %2235 = vmatprep.subr.mxu0 0.0
        %2236 = vmatpush1.msra.mxu0 0.0
        %2237 = vmatprep.subr.mxu0 0.0
        %2238 = vmatpush1.msra.mxu0 0.0
        %2239 = vmatprep.subr.mxu0 0.0
        %2240 = vmatpush1.msra.mxu0 0.0
        %2241 = vmatprep.subr.mxu0 0.0
        %2242 = vmatpush1.msra.mxu0 0.0
        %2243 = vmatprep.subr.mxu0 0.0
        %2244 = vmatpush1.msra.mxu0 0.0
        %2245 = vmatprep.subr.mxu0 0.0
        %2246 = vmatpush1.msra.mxu0 0.0
        %2247 = vmatprep.subr.mxu0 0.0
        %2248 = vmatpush1.msra.mxu0 0.0
        %2249 = vmatprep.subr.mxu0 0.0
        %2250 = vmatpush1.msra.mxu0 0.0
        %2251 = vmatprep.subr.mxu0 0.0
        %2252 = vmatpush1.msra.mxu0 0.0
        %2253 = vmatprep.mubr.f32.mxu0 0.0
        %2254 = vmatmul.mubr.f32.gmra.mrb[0].mxu0 %v2175
        %v2255 = vpop.f32.mrb[0].mxu0
        %v2256 = vadd.f32 %v2152, %v2255
        %v2257 = vpop.f32.mrb[0].mxu0
        %v2258 = vadd.f32 %v2152, %v2257
        %2259 = vmatprep.mubr.f32.mxu0 0.0
        %2260 = vmatmul.mubr.f32.gmra.mrb[0].mxu0 %v2178
        %v2261 = vpop.f32.mrb[0].mxu0
        %v2262 = vadd.f32 %v2157, %v2261
        %v2263 = vpop.f32.mrb[0].mxu0
        %v2264 = vadd.f32 %v2157, %v2263
        %2265 = vmatprep.mubr.f32.mxu0 0.0
        %2266 = vmatmul.mubr.f32.gmra.mrb[0].mxu0 %v2181
        %v2267 = vpop.f32.mrb[0].mxu0
        %v2268 = vadd.f32 %v2162, %v2267
        %v2269 = vpop.f32.mrb[0].mxu0
        %v2270 = vadd.f32 %v2162, %v2269
        %2271 = vmatprep.mubr.f32.mxu0 0.0
        %2272 = vmatmul.mubr.f32.gmra.mrb[0].mxu0 %v2184
        %v2273 = vpop.f32.mrb[0].mxu0
        %v2274 = vadd.f32 %v2167, %v2273
        %v2275 = vpop.f32.mrb[0].mxu0
        %v2276 = vadd.f32 %v2167, %v2275
        %2277 = vmatprep.mubr.f32.mxu0 0.0
        %2278 = vmatmul.mubr.f32.gmra.mrb[0].mxu0 %v2187
        %v2279 = vpop.f32.mrb[0].mxu0
        %v2280 = vadd.f32 %v2172, %v2279
        %v2281 = vpop.f32.mrb[0].mxu0
        %v2282 = vadd.f32 %v2172, %v2281
        %2283 = vdwg.mxu0
        %2284 = vmatprep.subr.mxu0 %v2106
        %2285 = vmatpush1.msra.mxu0 %v2105
        %2286 = vmatprep.subr.mxu0 %v2114
        %2287 = vmatpush1.msra.mxu0 %v2113
        %2288 = vmatprep.subr.mxu0 %v2122
        %2289 = vmatpush1.msra.mxu0 %v2121
        %2290 = vmatprep.subr.mxu0 %v2130
        %2291 = vmatpush1.msra.mxu0 %v2129
        %2292 = vmatprep.subr.mxu0 %v2138
        %2293 = vmatpush1.msra.mxu0 %v2137
        %2294 = vmatprep.subr.mxu0 0.0
        %2295 = vmatpush1.msra.mxu0 0.0
        %2296 = vmatprep.subr.mxu0 0.0
        %2297 = vmatpush1.msra.mxu0 0.0
        %2298 = vmatprep.subr.mxu0 0.0
        %2299 = vmatpush1.msra.mxu0 0.0
        %2300 = vmatprep.subr.mxu0 0.0
        %2301 = vmatpush1.msra.mxu0 0.0
        %2302 = vmatprep.subr.mxu0 0.0
        %2303 = vmatpush1.msra.mxu0 0.0
        %2304 = vmatprep.subr.mxu0 0.0
        %2305 = vmatpush1.msra.mxu0 0.0
        %2306 = vmatprep.subr.mxu0 0.0
        %2307 = vmatpush1.msra.mxu0 0.0
        %2308 = vmatprep.subr.mxu0 0.0
        %2309 = vmatpush1.msra.mxu0 0.0
        %2310 = vmatprep.subr.mxu0 0.0
        %2311 = vmatpush1.msra.mxu0 0.0
        %2312 = vmatprep.subr.mxu0 0.0
        %2313 = vmatpush1.msra.mxu0 0.0
        %2314 = vmatprep.subr.mxu0 0.0
        %2315 = vmatpush1.msra.mxu0 0.0
        %2316 = vmatprep.subr.mxu0 0.0
        %2317 = vmatpush1.msra.mxu0 0.0
        %2318 = vmatprep.subr.mxu0 0.0
        %2319 = vmatpush1.msra.mxu0 0.0
        %2320 = vmatprep.subr.mxu0 0.0
        %2321 = vmatpush1.msra.mxu0 0.0
        %2322 = vmatprep.subr.mxu0 0.0
        %2323 = vmatpush1.msra.mxu0 0.0
        %2324 = vmatprep.subr.mxu0 0.0
        %2325 = vmatpush1.msra.mxu0 0.0
        %2326 = vmatprep.subr.mxu0 0.0
        %2327 = vmatpush1.msra.mxu0 0.0
        %2328 = vmatprep.subr.mxu0 0.0
        %2329 = vmatpush1.msra.mxu0 0.0
        %2330 = vmatprep.subr.mxu0 0.0
        %2331 = vmatpush1.msra.mxu0 0.0
        %2332 = vmatprep.subr.mxu0 0.0
        %2333 = vmatpush1.msra.mxu0 0.0
        %2334 = vmatprep.subr.mxu0 0.0
        %2335 = vmatpush1.msra.mxu0 0.0
        %2336 = vmatprep.subr.mxu0 0.0
        %2337 = vmatpush1.msra.mxu0 0.0
        %2338 = vmatprep.subr.mxu0 0.0
        %2339 = vmatpush1.msra.mxu0 0.0
        %2340 = vmatprep.subr.mxu0 0.0
        %2341 = vmatpush1.msra.mxu0 0.0
        %2342 = vmatprep.subr.mxu0 0.0
        %2343 = vmatpush1.msra.mxu0 0.0
        %2344 = vmatprep.subr.mxu0 0.0
        %2345 = vmatpush1.msra.mxu0 0.0
        %2346 = vmatprep.subr.mxu0 0.0
        %2347 = vmatpush1.msra.mxu0 0.0
        %2348 = vmatprep.mubr.f32.mxu0 0.0
        %2349 = vmatmul.mubr.f32.gmra.mrb[0].mxu0 %v2175
        %v2350 = vpop.f32.mrb[0].mxu0
        %v2351 = vadd.f32 %v2152, %v2350
        %v2352 = vpop.f32.mrb[0].mxu0
        %v2353 = vadd.f32 %v2152, %v2352
        %2354 = vmatprep.mubr.f32.mxu0 0.0
        %2355 = vmatmul.mubr.f32.gmra.mrb[0].mxu0 %v2178
        %v2356 = vpop.f32.mrb[0].mxu0
        %v2357 = vadd.f32 %v2157, %v2356
        %v2358 = vpop.f32.mrb[0].mxu0
        %v2359 = vadd.f32 %v2157, %v2358
        %2360 = vmatprep.mubr.f32.mxu0 0.0
        %2361 = vmatmul.mubr.f32.gmra.mrb[0].mxu0 %v2181
        %v2362 = vpop.f32.mrb[0].mxu0
        %v2363 = vadd.f32 %v2162, %v2362
        %v2364 = vpop.f32.mrb[0].mxu0
        %v2365 = vadd.f32 %v2162, %v2364
        %2366 = vmatprep.mubr.f32.mxu0 0.0
        %2367 = vmatmul.mubr.f32.gmra.mrb[0].mxu0 %v2184
        %v2368 = vpop.f32.mrb[0].mxu0
        %v2369 = vadd.f32 %v2167, %v2368
        %v2370 = vpop.f32.mrb[0].mxu0
        %v2371 = vadd.f32 %v2167, %v2370
        %2372 = vmatprep.mubr.f32.mxu0 0.0
        %2373 = vmatmul.mubr.f32.gmra.mrb[0].mxu0 %v2187
        %v2374 = vpop.f32.mrb[0].mxu0
        %v2375 = vadd.f32 %v2172, %v2374
        %v2376 = vpop.f32.mrb[0].mxu0
        %v2377 = vadd.f32 %v2172, %v2376
        %2378 = vdwg.mxu0
        %2379 = vmatprep.subr.mxu0 %v2108
        %2380 = vmatpush1.msra.mxu0 %v2107
        %2381 = vmatprep.subr.mxu0 %v2116
        %2382 = vmatpush1.msra.mxu0 %v2115
        %2383 = vmatprep.subr.mxu0 %v2124
        %2384 = vmatpush1.msra.mxu0 %v2123
        %2385 = vmatprep.subr.mxu0 %v2132
        %2386 = vmatpush1.msra.mxu0 %v2131
        %2387 = vmatprep.subr.mxu0 %v2140
        %2388 = vmatpush1.msra.mxu0 %v2139
        %2389 = vmatprep.subr.mxu0 0.0
        %2390 = vmatpush1.msra.mxu0 0.0
        %2391 = vmatprep.subr.mxu0 0.0
        %2392 = vmatpush1.msra.mxu0 0.0
        %2393 = vmatprep.subr.mxu0 0.0
        %2394 = vmatpush1.msra.mxu0 0.0
        %2395 = vmatprep.subr.mxu0 0.0
        %2396 = vmatpush1.msra.mxu0 0.0
        %2397 = vmatprep.subr.mxu0 0.0
        %2398 = vmatpush1.msra.mxu0 0.0
        %2399 = vmatprep.subr.mxu0 0.0
        %2400 = vmatpush1.msra.mxu0 0.0
        %2401 = vmatprep.subr.mxu0 0.0
        %2402 = vmatpush1.msra.mxu0 0.0
        %2403 = vmatprep.subr.mxu0 0.0
        %2404 = vmatpush1.msra.mxu0 0.0
        %2405 = vmatprep.subr.mxu0 0.0
        %2406 = vmatpush1.msra.mxu0 0.0
        %2407 = vmatprep.subr.mxu0 0.0
        %2408 = vmatpush1.msra.mxu0 0.0
        %2409 = vmatprep.subr.mxu0 0.0
        %2410 = vmatpush1.msra.mxu0 0.0
        %2411 = vmatprep.subr.mxu0 0.0
        %2412 = vmatpush1.msra.mxu0 0.0
        %2413 = vmatprep.subr.mxu0 0.0
        %2414 = vmatpush1.msra.mxu0 0.0
        %2415 = vmatprep.subr.mxu0 0.0
        %2416 = vmatpush1.msra.mxu0 0.0
        %2417 = vmatprep.subr.mxu0 0.0
        %2418 = vmatpush1.msra.mxu0 0.0
        %2419 = vmatprep.subr.mxu0 0.0
        %2420 = vmatpush1.msra.mxu0 0.0
        %2421 = vmatprep.subr.mxu0 0.0
        %2422 = vmatpush1.msra.mxu0 0.0
        %2423 = vmatprep.subr.mxu0 0.0
        %2424 = vmatpush1.msra.mxu0 0.0
        %2425 = vmatprep.subr.mxu0 0.0
        %2426 = vmatpush1.msra.mxu0 0.0
        %2427 = vmatprep.subr.mxu0 0.0
        %2428 = vmatpush1.msra.mxu0 0.0
        %2429 = vmatprep.subr.mxu0 0.0
        %2430 = vmatpush1.msra.mxu0 0.0
        %2431 = vmatprep.subr.mxu0 0.0
        %2432 = vmatpush1.msra.mxu0 0.0
        %2433 = vmatprep.subr.mxu0 0.0
        %2434 = vmatpush1.msra.mxu0 0.0
        %2435 = vmatprep.subr.mxu0 0.0
        %2436 = vmatpush1.msra.mxu0 0.0
        %2437 = vmatprep.subr.mxu0 0.0
        %2438 = vmatpush1.msra.mxu0 0.0
        %2439 = vmatprep.subr.mxu0 0.0
        %2440 = vmatpush1.msra.mxu0 0.0
        %2441 = vmatprep.subr.mxu0 0.0
        %2442 = vmatpush1.msra.mxu0 0.0
        %2443 = vmatprep.mubr.f32.mxu0 0.0
        %2444 = vmatmul.mubr.f32.gmra.mrb[0].mxu0 %v2175
        %v2445 = vpop.f32.mrb[0].mxu0
        %v2446 = vadd.f32 %v2152, %v2445
        %v2447 = vpop.f32.mrb[0].mxu0
        %v2448 = vadd.f32 %v2152, %v2447
        %2449 = vmatprep.mubr.f32.mxu0 0.0
        %2450 = vmatmul.mubr.f32.gmra.mrb[0].mxu0 %v2178
        %v2451 = vpop.f32.mrb[0].mxu0
        %v2452 = vadd.f32 %v2157, %v2451
        %v2453 = vpop.f32.mrb[0].mxu0
        %v2454 = vadd.f32 %v2157, %v2453
        %2455 = vmatprep.mubr.f32.mxu0 0.0
        %2456 = vmatmul.mubr.f32.gmra.mrb[0].mxu0 %v2181
        %v2457 = vpop.f32.mrb[0].mxu0
        %v2458 = vadd.f32 %v2162, %v2457
        %v2459 = vpop.f32.mrb[0].mxu0
        %v2460 = vadd.f32 %v2162, %v2459
        %2461 = vmatprep.mubr.f32.mxu0 0.0
        %2462 = vmatmul.mubr.f32.gmra.mrb[0].mxu0 %v2184
        %v2463 = vpop.f32.mrb[0].mxu0
        %v2464 = vadd.f32 %v2167, %v2463
        %v2465 = vpop.f32.mrb[0].mxu0
        %v2466 = vadd.f32 %v2167, %v2465
        %2467 = vmatprep.mubr.f32.mxu0 0.0
        %2468 = vmatmul.mubr.f32.gmra.mrb[0].mxu0 %v2187
        %v2469 = vpop.f32.mrb[0].mxu0
        %v2470 = vadd.f32 %v2172, %v2469
        %v2471 = vpop.f32.mrb[0].mxu0
        %v2472 = vadd.f32 %v2172, %v2471
        %2473 = vdwg.mxu0
        %2474 = vmatprep.subr.mxu0 %v2110
        %2475 = vmatpush1.msra.mxu0 %v2109
        %2476 = vmatprep.subr.mxu0 %v2118
        %2477 = vmatpush1.msra.mxu0 %v2117
        %2478 = vmatprep.subr.mxu0 %v2126
        %2479 = vmatpush1.msra.mxu0 %v2125
        %2480 = vmatprep.subr.mxu0 %v2134
        %2481 = vmatpush1.msra.mxu0 %v2133
        %2482 = vmatprep.subr.mxu0 %v2142
        %2483 = vmatpush1.msra.mxu0 %v2141
        %2484 = vmatprep.subr.mxu0 0.0
        %2485 = vmatpush1.msra.mxu0 0.0
        %2486 = vmatprep.subr.mxu0 0.0
        %2487 = vmatpush1.msra.mxu0 0.0
        %2488 = vmatprep.subr.mxu0 0.0
        %2489 = vmatpush1.msra.mxu0 0.0
        %2490 = vmatprep.subr.mxu0 0.0
        %2491 = vmatpush1.msra.mxu0 0.0
        %2492 = vmatprep.subr.mxu0 0.0
        %2493 = vmatpush1.msra.mxu0 0.0
        %2494 = vmatprep.subr.mxu0 0.0
        %2495 = vmatpush1.msra.mxu0 0.0
        %2496 = vmatprep.subr.mxu0 0.0
        %2497 = vmatpush1.msra.mxu0 0.0
        %2498 = vmatprep.subr.mxu0 0.0
        %2499 = vmatpush1.msra.mxu0 0.0
        %2500 = vmatprep.subr.mxu0 0.0
        %2501 = vmatpush1.msra.mxu0 0.0
        %2502 = vmatprep.subr.mxu0 0.0
        %2503 = vmatpush1.msra.mxu0 0.0
        %2504 = vmatprep.subr.mxu0 0.0
        %2505 = vmatpush1.msra.mxu0 0.0
        %2506 = vmatprep.subr.mxu0 0.0
        %2507 = vmatpush1.msra.mxu0 0.0
        %2508 = vmatprep.subr.mxu0 0.0
        %2509 = vmatpush1.msra.mxu0 0.0
        %2510 = vmatprep.subr.mxu0 0.0
        %2511 = vmatpush1.msra.mxu0 0.0
        %2512 = vmatprep.subr.mxu0 0.0
        %2513 = vmatpush1.msra.mxu0 0.0
        %2514 = vmatprep.subr.mxu0 0.0
        %2515 = vmatpush1.msra.mxu0 0.0
        %2516 = vmatprep.subr.mxu0 0.0
        %2517 = vmatpush1.msra.mxu0 0.0
        %2518 = vmatprep.subr.mxu0 0.0
        %2519 = vmatpush1.msra.mxu0 0.0
        %2520 = vmatprep.subr.mxu0 0.0
        %2521 = vmatpush1.msra.mxu0 0.0
        %2522 = vmatprep.subr.mxu0 0.0
        %2523 = vmatpush1.msra.mxu0 0.0
        %2524 = vmatprep.subr.mxu0 0.0
        %2525 = vmatpush1.msra.mxu0 0.0
        %2526 = vmatprep.subr.mxu0 0.0
        %2527 = vmatpush1.msra.mxu0 0.0
        %2528 = vmatprep.subr.mxu0 0.0
        %2529 = vmatpush1.msra.mxu0 0.0
        %2530 = vmatprep.subr.mxu0 0.0
        %2531 = vmatpush1.msra.mxu0 0.0
        %2532 = vmatprep.subr.mxu0 0.0
        %2533 = vmatpush1.msra.mxu0 0.0
        %2534 = vmatprep.subr.mxu0 0.0
        %2535 = vmatpush1.msra.mxu0 0.0
        %2536 = vmatprep.subr.mxu0 0.0
        %2537 = vmatpush1.msra.mxu0 0.0
        %2538 = vmatprep.mubr.f32.mxu0 0.0
        %2539 = vmatmul.mubr.f32.gmra.mrb[0].mxu0 %v2175
        %v2540 = vpop.f32.mrb[0].mxu0
        %v2541 = vadd.f32 %v2152, %v2540
        %v2542 = vpop.f32.mrb[0].mxu0
        %v2543 = vadd.f32 %v2152, %v2542
        %2544 = vmatprep.mubr.f32.mxu0 0.0
        %2545 = vmatmul.mubr.f32.gmra.mrb[0].mxu0 %v2178
        %v2546 = vpop.f32.mrb[0].mxu0
        %v2547 = vadd.f32 %v2157, %v2546
        %v2548 = vpop.f32.mrb[0].mxu0
        %v2549 = vadd.f32 %v2157, %v2548
        %2550 = vmatprep.mubr.f32.mxu0 0.0
        %2551 = vmatmul.mubr.f32.gmra.mrb[0].mxu0 %v2181
        %v2552 = vpop.f32.mrb[0].mxu0
        %v2553 = vadd.f32 %v2162, %v2552
        %v2554 = vpop.f32.mrb[0].mxu0
        %v2555 = vadd.f32 %v2162, %v2554
        %2556 = vmatprep.mubr.f32.mxu0 0.0
        %2557 = vmatmul.mubr.f32.gmra.mrb[0].mxu0 %v2184
        %v2558 = vpop.f32.mrb[0].mxu0
        %v2559 = vadd.f32 %v2167, %v2558
        %v2560 = vpop.f32.mrb[0].mxu0
        %v2561 = vadd.f32 %v2167, %v2560
        %2562 = vmatprep.mubr.f32.mxu0 0.0
        %2563 = vmatmul.mubr.f32.gmra.mrb[0].mxu0 %v2187
        %v2564 = vpop.f32.mrb[0].mxu0
        %v2565 = vadd.f32 %v2172, %v2564
        %v2566 = vpop.f32.mrb[0].mxu0
        %v2567 = vadd.f32 %v2172, %v2566
        %2568 = vdwg.mxu0
        %v2569 = vtanh.pop %v2256
        %v2570 = vtanh.pop %v2258
        %v2571 = vtanh.pop %v2351
        %v2572 = vtanh.pop %v2353
        %v2573 = vtanh.pop %v2446
        %v2574 = vtanh.pop %v2448
        %v2575 = vtanh.pop %v2541
        %v2576 = vtanh.pop %v2543
        %v2577 = vtanh.pop %v2262
        %v2578 = vtanh.pop %v2264
        %v2579 = vtanh.pop %v2357
        %v2580 = vtanh.pop %v2359
        %v2581 = vtanh.pop %v2452
        %v2582 = vtanh.pop %v2454
        %v2583 = vtanh.pop %v2547
        %v2584 = vtanh.pop %v2549
        %v2585 = vtanh.pop %v2268
        %v2586 = vtanh.pop %v2270
        %v2587 = vtanh.pop %v2363
        %v2588 = vtanh.pop %v2365
        %v2589 = vtanh.pop %v2458
        %v2590 = vtanh.pop %v2460
        %v2591 = vtanh.pop %v2553
        %v2592 = vtanh.pop %v2555
        %v2593 = vtanh.pop %v2274
        %v2594 = vtanh.pop %v2276
        %v2595 = vtanh.pop %v2369
        %v2596 = vtanh.pop %v2371
        %v2597 = vtanh.pop %v2464
        %v2598 = vtanh.pop %v2466
        %v2599 = vtanh.pop %v2559
        %v2600 = vtanh.pop %v2561
        %v2601 = vtanh.pop %v2280
        %v2602 = vtanh.pop %v2282
        %v2603 = vtanh.pop %v2375
        %v2604 = vtanh.pop %v2377
        %v2605 = vtanh.pop %v2470
        %v2606 = vtanh.pop %v2472
        %v2607 = vtanh.pop %v2565
        %v2608 = vtanh.pop %v2567
        %s2609 = scalar_lea.vmem %s4, 160
        %v2610 = vld [vmem:[%s2609] sm:$0xff]
        %v2611 = vld [vmem:[%s2609 + $0x8] sm:$0xff]
        %v2612 = vld [vmem:[%s2609 + $0x10] sm:$0xff]
        %v2613 = vld [vmem:[%s2609 + $0x18] sm:$0xff]
        %v2614 = vld [vmem:[%s2609 + $0x20] sm:$0xff]
        %2616 = vset.pattern.permute.xlu0 0
        %2617 = vperm.xlu0 %2616, %v2610
        %v2618 = vpop.permute.xlu0 %2617
        %2621 = vset.pattern.permute.xlu0 0
        %2622 = vperm.xlu0 %2621, %v2611
        %v2623 = vpop.permute.xlu0 %2622
        %2626 = vset.pattern.permute.xlu0 0
        %2627 = vperm.xlu0 %2626, %v2612
        %v2628 = vpop.permute.xlu0 %2627
        %2631 = vset.pattern.permute.xlu0 0
        %2632 = vperm.xlu0 %2631, %v2613
        %v2633 = vpop.permute.xlu0 %2632
        %2636 = vset.pattern.permute.xlu0 0
        %2637 = vperm.xlu0 %2636, %v2614
        %v2638 = vpop.permute.xlu0 %2637
        %v2641 = vsel %vm775, %v730, 0
        %v2644 = vsel %vm775, %v731, 0
        %v2647 = vsel %vm775, %v732, 0
        %v2650 = vsel %vm775, %v733, 0
        %v2653 = vsel %vm775, %v734, 0
        %2655 = vmatprep.subr.mxu0 %v2570
        %2656 = vmatpush1.msra.mxu0 %v2569
        %2657 = vmatprep.subr.mxu0 %v2578
        %2658 = vmatpush1.msra.mxu0 %v2577
        %2659 = vmatprep.subr.mxu0 %v2586
        %2660 = vmatpush1.msra.mxu0 %v2585
        %2661 = vmatprep.subr.mxu0 %v2594
        %2662 = vmatpush1.msra.mxu0 %v2593
        %2663 = vmatprep.subr.mxu0 %v2602
        %2664 = vmatpush1.msra.mxu0 %v2601
        %2665 = vmatprep.subr.mxu0 0.0
        %2666 = vmatpush1.msra.mxu0 0.0
        %2667 = vmatprep.subr.mxu0 0.0
        %2668 = vmatpush1.msra.mxu0 0.0
        %2669 = vmatprep.subr.mxu0 0.0
        %2670 = vmatpush1.msra.mxu0 0.0
        %2671 = vmatprep.subr.mxu0 0.0
        %2672 = vmatpush1.msra.mxu0 0.0
        %2673 = vmatprep.subr.mxu0 0.0
        %2674 = vmatpush1.msra.mxu0 0.0
        %2675 = vmatprep.subr.mxu0 0.0
        %2676 = vmatpush1.msra.mxu0 0.0
        %2677 = vmatprep.subr.mxu0 0.0
        %2678 = vmatpush1.msra.mxu0 0.0
        %2679 = vmatprep.subr.mxu0 0.0
        %2680 = vmatpush1.msra.mxu0 0.0
        %2681 = vmatprep.subr.mxu0 0.0
        %2682 = vmatpush1.msra.mxu0 0.0
        %2683 = vmatprep.subr.mxu0 0.0
        %2684 = vmatpush1.msra.mxu0 0.0
        %2685 = vmatprep.subr.mxu0 0.0
        %2686 = vmatpush1.msra.mxu0 0.0
        %2687 = vmatprep.subr.mxu0 0.0
        %2688 = vmatpush1.msra.mxu0 0.0
        %2689 = vmatprep.subr.mxu0 0.0
        %2690 = vmatpush1.msra.mxu0 0.0
        %2691 = vmatprep.subr.mxu0 0.0
        %2692 = vmatpush1.msra.mxu0 0.0
        %2693 = vmatprep.subr.mxu0 0.0
        %2694 = vmatpush1.msra.mxu0 0.0
        %2695 = vmatprep.subr.mxu0 0.0
        %2696 = vmatpush1.msra.mxu0 0.0
        %2697 = vmatprep.subr.mxu0 0.0
        %2698 = vmatpush1.msra.mxu0 0.0
        %2699 = vmatprep.subr.mxu0 0.0
        %2700 = vmatpush1.msra.mxu0 0.0
        %2701 = vmatprep.subr.mxu0 0.0
        %2702 = vmatpush1.msra.mxu0 0.0
        %2703 = vmatprep.subr.mxu0 0.0
        %2704 = vmatpush1.msra.mxu0 0.0
        %2705 = vmatprep.subr.mxu0 0.0
        %2706 = vmatpush1.msra.mxu0 0.0
        %2707 = vmatprep.subr.mxu0 0.0
        %2708 = vmatpush1.msra.mxu0 0.0
        %2709 = vmatprep.subr.mxu0 0.0
        %2710 = vmatpush1.msra.mxu0 0.0
        %2711 = vmatprep.subr.mxu0 0.0
        %2712 = vmatpush1.msra.mxu0 0.0
        %2713 = vmatprep.subr.mxu0 0.0
        %2714 = vmatpush1.msra.mxu0 0.0
        %2715 = vmatprep.subr.mxu0 0.0
        %2716 = vmatpush1.msra.mxu0 0.0
        %2717 = vmatprep.subr.mxu0 0.0
        %2718 = vmatpush1.msra.mxu0 0.0
        %2719 = vmatprep.mubr.f32.mxu0 0.0
        %2720 = vmatmul.mubr.f32.gmra.mrb[0].mxu0 %v2641
        %v2721 = vpop.f32.mrb[0].mxu0
        %v2722 = vadd.f32 %v2618, %v2721
        %v2723 = vpop.f32.mrb[0].mxu0
        %v2724 = vadd.f32 %v2618, %v2723
        %2725 = vmatprep.mubr.f32.mxu0 0.0
        %2726 = vmatmul.mubr.f32.gmra.mrb[0].mxu0 %v2644
        %v2727 = vpop.f32.mrb[0].mxu0
        %v2728 = vadd.f32 %v2623, %v2727
        %v2729 = vpop.f32.mrb[0].mxu0
        %v2730 = vadd.f32 %v2623, %v2729
        %2731 = vmatprep.mubr.f32.mxu0 0.0
        %2732 = vmatmul.mubr.f32.gmra.mrb[0].mxu0 %v2647
        %v2733 = vpop.f32.mrb[0].mxu0
        %v2734 = vadd.f32 %v2628, %v2733
        %v2735 = vpop.f32.mrb[0].mxu0
        %v2736 = vadd.f32 %v2628, %v2735
        %2737 = vmatprep.mubr.f32.mxu0 0.0
        %2738 = vmatmul.mubr.f32.gmra.mrb[0].mxu0 %v2650
        %v2739 = vpop.f32.mrb[0].mxu0
        %v2740 = vadd.f32 %v2633, %v2739
        %v2741 = vpop.f32.mrb[0].mxu0
        %v2742 = vadd.f32 %v2633, %v2741
        %2743 = vmatprep.mubr.f32.mxu0 0.0
        %2744 = vmatmul.mubr.f32.gmra.mrb[0].mxu0 %v2653
        %v2745 = vpop.f32.mrb[0].mxu0
        %v2746 = vadd.f32 %v2638, %v2745
        %v2747 = vpop.f32.mrb[0].mxu0
        %v2748 = vadd.f32 %v2638, %v2747
        %2749 = vdwg.mxu0
        %2750 = vmatprep.subr.mxu0 %v2572
        %2751 = vmatpush1.msra.mxu0 %v2571
        %2752 = vmatprep.subr.mxu0 %v2580
        %2753 = vmatpush1.msra.mxu0 %v2579
        %2754 = vmatprep.subr.mxu0 %v2588
        %2755 = vmatpush1.msra.mxu0 %v2587
        %2756 = vmatprep.subr.mxu0 %v2596
        %2757 = vmatpush1.msra.mxu0 %v2595
        %2758 = vmatprep.subr.mxu0 %v2604
        %2759 = vmatpush1.msra.mxu0 %v2603
        %2760 = vmatprep.subr.mxu0 0.0
        %2761 = vmatpush1.msra.mxu0 0.0
        %2762 = vmatprep.subr.mxu0 0.0
        %2763 = vmatpush1.msra.mxu0 0.0
        %2764 = vmatprep.subr.mxu0 0.0
        %2765 = vmatpush1.msra.mxu0 0.0
        %2766 = vmatprep.subr.mxu0 0.0
        %2767 = vmatpush1.msra.mxu0 0.0
        %2768 = vmatprep.subr.mxu0 0.0
        %2769 = vmatpush1.msra.mxu0 0.0
        %2770 = vmatprep.subr.mxu0 0.0
        %2771 = vmatpush1.msra.mxu0 0.0
        %2772 = vmatprep.subr.mxu0 0.0
        %2773 = vmatpush1.msra.mxu0 0.0
        %2774 = vmatprep.subr.mxu0 0.0
        %2775 = vmatpush1.msra.mxu0 0.0
        %2776 = vmatprep.subr.mxu0 0.0
        %2777 = vmatpush1.msra.mxu0 0.0
        %2778 = vmatprep.subr.mxu0 0.0
        %2779 = vmatpush1.msra.mxu0 0.0
        %2780 = vmatprep.subr.mxu0 0.0
        %2781 = vmatpush1.msra.mxu0 0.0
        %2782 = vmatprep.subr.mxu0 0.0
        %2783 = vmatpush1.msra.mxu0 0.0
        %2784 = vmatprep.subr.mxu0 0.0
        %2785 = vmatpush1.msra.mxu0 0.0
        %2786 = vmatprep.subr.mxu0 0.0
        %2787 = vmatpush1.msra.mxu0 0.0
        %2788 = vmatprep.subr.mxu0 0.0
        %2789 = vmatpush1.msra.mxu0 0.0
        %2790 = vmatprep.subr.mxu0 0.0
        %2791 = vmatpush1.msra.mxu0 0.0
        %2792 = vmatprep.subr.mxu0 0.0
        %2793 = vmatpush1.msra.mxu0 0.0
        %2794 = vmatprep.subr.mxu0 0.0
        %2795 = vmatpush1.msra.mxu0 0.0
        %2796 = vmatprep.subr.mxu0 0.0
        %2797 = vmatpush1.msra.mxu0 0.0
        %2798 = vmatprep.subr.mxu0 0.0
        %2799 = vmatpush1.msra.mxu0 0.0
        %2800 = vmatprep.subr.mxu0 0.0
        %2801 = vmatpush1.msra.mxu0 0.0
        %2802 = vmatprep.subr.mxu0 0.0
        %2803 = vmatpush1.msra.mxu0 0.0
        %2804 = vmatprep.subr.mxu0 0.0
        %2805 = vmatpush1.msra.mxu0 0.0
        %2806 = vmatprep.subr.mxu0 0.0
        %2807 = vmatpush1.msra.mxu0 0.0
        %2808 = vmatprep.subr.mxu0 0.0
        %2809 = vmatpush1.msra.mxu0 0.0
        %2810 = vmatprep.subr.mxu0 0.0
        %2811 = vmatpush1.msra.mxu0 0.0
        %2812 = vmatprep.subr.mxu0 0.0
        %2813 = vmatpush1.msra.mxu0 0.0
        %2814 = vmatprep.mubr.f32.mxu0 0.0
        %2815 = vmatmul.mubr.f32.gmra.mrb[0].mxu0 %v2641
        %v2816 = vpop.f32.mrb[0].mxu0
        %v2817 = vadd.f32 %v2618, %v2816
        %v2818 = vpop.f32.mrb[0].mxu0
        %v2819 = vadd.f32 %v2618, %v2818
        %2820 = vmatprep.mubr.f32.mxu0 0.0
        %2821 = vmatmul.mubr.f32.gmra.mrb[0].mxu0 %v2644
        %v2822 = vpop.f32.mrb[0].mxu0
        %v2823 = vadd.f32 %v2623, %v2822
        %v2824 = vpop.f32.mrb[0].mxu0
        %v2825 = vadd.f32 %v2623, %v2824
        %2826 = vmatprep.mubr.f32.mxu0 0.0
        %2827 = vmatmul.mubr.f32.gmra.mrb[0].mxu0 %v2647
        %v2828 = vpop.f32.mrb[0].mxu0
        %v2829 = vadd.f32 %v2628, %v2828
        %v2830 = vpop.f32.mrb[0].mxu0
        %v2831 = vadd.f32 %v2628, %v2830
        %2832 = vmatprep.mubr.f32.mxu0 0.0
        %2833 = vmatmul.mubr.f32.gmra.mrb[0].mxu0 %v2650
        %v2834 = vpop.f32.mrb[0].mxu0
        %v2835 = vadd.f32 %v2633, %v2834
        %v2836 = vpop.f32.mrb[0].mxu0
        %v2837 = vadd.f32 %v2633, %v2836
        %2838 = vmatprep.mubr.f32.mxu0 0.0
        %2839 = vmatmul.mubr.f32.gmra.mrb[0].mxu0 %v2653
        %v2840 = vpop.f32.mrb[0].mxu0
        %v2841 = vadd.f32 %v2638, %v2840
        %v2842 = vpop.f32.mrb[0].mxu0
        %v2843 = vadd.f32 %v2638, %v2842
        %2844 = vdwg.mxu0
        %2845 = vmatprep.subr.mxu0 %v2574
        %2846 = vmatpush1.msra.mxu0 %v2573
        %2847 = vmatprep.subr.mxu0 %v2582
        %2848 = vmatpush1.msra.mxu0 %v2581
        %2849 = vmatprep.subr.mxu0 %v2590
        %2850 = vmatpush1.msra.mxu0 %v2589
        %2851 = vmatprep.subr.mxu0 %v2598
        %2852 = vmatpush1.msra.mxu0 %v2597
        %2853 = vmatprep.subr.mxu0 %v2606
        %2854 = vmatpush1.msra.mxu0 %v2605
        %2855 = vmatprep.subr.mxu0 0.0
        %2856 = vmatpush1.msra.mxu0 0.0
        %2857 = vmatprep.subr.mxu0 0.0
        %2858 = vmatpush1.msra.mxu0 0.0
        %2859 = vmatprep.subr.mxu0 0.0
        %2860 = vmatpush1.msra.mxu0 0.0
        %2861 = vmatprep.subr.mxu0 0.0
        %2862 = vmatpush1.msra.mxu0 0.0
        %2863 = vmatprep.subr.mxu0 0.0
        %2864 = vmatpush1.msra.mxu0 0.0
        %2865 = vmatprep.subr.mxu0 0.0
        %2866 = vmatpush1.msra.mxu0 0.0
        %2867 = vmatprep.subr.mxu0 0.0
        %2868 = vmatpush1.msra.mxu0 0.0
        %2869 = vmatprep.subr.mxu0 0.0
        %2870 = vmatpush1.msra.mxu0 0.0
        %2871 = vmatprep.subr.mxu0 0.0
        %2872 = vmatpush1.msra.mxu0 0.0
        %2873 = vmatprep.subr.mxu0 0.0
        %2874 = vmatpush1.msra.mxu0 0.0
        %2875 = vmatprep.subr.mxu0 0.0
        %2876 = vmatpush1.msra.mxu0 0.0
        %2877 = vmatprep.subr.mxu0 0.0
        %2878 = vmatpush1.msra.mxu0 0.0
        %2879 = vmatprep.subr.mxu0 0.0
        %2880 = vmatpush1.msra.mxu0 0.0
        %2881 = vmatprep.subr.mxu0 0.0
        %2882 = vmatpush1.msra.mxu0 0.0
        %2883 = vmatprep.subr.mxu0 0.0
        %2884 = vmatpush1.msra.mxu0 0.0
        %2885 = vmatprep.subr.mxu0 0.0
        %2886 = vmatpush1.msra.mxu0 0.0
        %2887 = vmatprep.subr.mxu0 0.0
        %2888 = vmatpush1.msra.mxu0 0.0
        %2889 = vmatprep.subr.mxu0 0.0
        %2890 = vmatpush1.msra.mxu0 0.0
        %2891 = vmatprep.subr.mxu0 0.0
        %2892 = vmatpush1.msra.mxu0 0.0
        %2893 = vmatprep.subr.mxu0 0.0
        %2894 = vmatpush1.msra.mxu0 0.0
        %2895 = vmatprep.subr.mxu0 0.0
        %2896 = vmatpush1.msra.mxu0 0.0
        %2897 = vmatprep.subr.mxu0 0.0
        %2898 = vmatpush1.msra.mxu0 0.0
        %2899 = vmatprep.subr.mxu0 0.0
        %2900 = vmatpush1.msra.mxu0 0.0
        %2901 = vmatprep.subr.mxu0 0.0
        %2902 = vmatpush1.msra.mxu0 0.0
        %2903 = vmatprep.subr.mxu0 0.0
        %2904 = vmatpush1.msra.mxu0 0.0
        %2905 = vmatprep.subr.mxu0 0.0
        %2906 = vmatpush1.msra.mxu0 0.0
        %2907 = vmatprep.subr.mxu0 0.0
        %2908 = vmatpush1.msra.mxu0 0.0
        %2909 = vmatprep.mubr.f32.mxu0 0.0
        %2910 = vmatmul.mubr.f32.gmra.mrb[0].mxu0 %v2641
        %v2911 = vpop.f32.mrb[0].mxu0
        %v2912 = vadd.f32 %v2618, %v2911
        %v2913 = vpop.f32.mrb[0].mxu0
        %v2914 = vadd.f32 %v2618, %v2913
        %2915 = vmatprep.mubr.f32.mxu0 0.0
        %2916 = vmatmul.mubr.f32.gmra.mrb[0].mxu0 %v2644
        %v2917 = vpop.f32.mrb[0].mxu0
        %v2918 = vadd.f32 %v2623, %v2917
        %v2919 = vpop.f32.mrb[0].mxu0
        %v2920 = vadd.f32 %v2623, %v2919
        %2921 = vmatprep.mubr.f32.mxu0 0.0
        %2922 = vmatmul.mubr.f32.gmra.mrb[0].mxu0 %v2647
        %v2923 = vpop.f32.mrb[0].mxu0
        %v2924 = vadd.f32 %v2628, %v2923
        %v2925 = vpop.f32.mrb[0].mxu0
        %v2926 = vadd.f32 %v2628, %v2925
        %2927 = vmatprep.mubr.f32.mxu0 0.0
        %2928 = vmatmul.mubr.f32.gmra.mrb[0].mxu0 %v2650
        %v2929 = vpop.f32.mrb[0].mxu0
        %v2930 = vadd.f32 %v2633, %v2929
        %v2931 = vpop.f32.mrb[0].mxu0
        %v2932 = vadd.f32 %v2633, %v2931
        %2933 = vmatprep.mubr.f32.mxu0 0.0
        %2934 = vmatmul.mubr.f32.gmra.mrb[0].mxu0 %v2653
        %v2935 = vpop.f32.mrb[0].mxu0
        %v2936 = vadd.f32 %v2638, %v2935
        %v2937 = vpop.f32.mrb[0].mxu0
        %v2938 = vadd.f32 %v2638, %v2937
        %2939 = vdwg.mxu0
        %2940 = vmatprep.subr.mxu0 %v2576
        %2941 = vmatpush1.msra.mxu0 %v2575
        %2942 = vmatprep.subr.mxu0 %v2584
        %2943 = vmatpush1.msra.mxu0 %v2583
        %2944 = vmatprep.subr.mxu0 %v2592
        %2945 = vmatpush1.msra.mxu0 %v2591
        %2946 = vmatprep.subr.mxu0 %v2600
        %2947 = vmatpush1.msra.mxu0 %v2599
        %2948 = vmatprep.subr.mxu0 %v2608
        %2949 = vmatpush1.msra.mxu0 %v2607
        %2950 = vmatprep.subr.mxu0 0.0
        %2951 = vmatpush1.msra.mxu0 0.0
        %2952 = vmatprep.subr.mxu0 0.0
        %2953 = vmatpush1.msra.mxu0 0.0
        %2954 = vmatprep.subr.mxu0 0.0
        %2955 = vmatpush1.msra.mxu0 0.0
        %2956 = vmatprep.subr.mxu0 0.0
        %2957 = vmatpush1.msra.mxu0 0.0
        %2958 = vmatprep.subr.mxu0 0.0
        %2959 = vmatpush1.msra.mxu0 0.0
        %2960 = vmatprep.subr.mxu0 0.0
        %2961 = vmatpush1.msra.mxu0 0.0
        %2962 = vmatprep.subr.mxu0 0.0
        %2963 = vmatpush1.msra.mxu0 0.0
        %2964 = vmatprep.subr.mxu0 0.0
        %2965 = vmatpush1.msra.mxu0 0.0
        %2966 = vmatprep.subr.mxu0 0.0
        %2967 = vmatpush1.msra.mxu0 0.0
        %2968 = vmatprep.subr.mxu0 0.0
        %2969 = vmatpush1.msra.mxu0 0.0
        %2970 = vmatprep.subr.mxu0 0.0
        %2971 = vmatpush1.msra.mxu0 0.0
        %2972 = vmatprep.subr.mxu0 0.0
        %2973 = vmatpush1.msra.mxu0 0.0
        %2974 = vmatprep.subr.mxu0 0.0
        %2975 = vmatpush1.msra.mxu0 0.0
        %2976 = vmatprep.subr.mxu0 0.0
        %2977 = vmatpush1.msra.mxu0 0.0
        %2978 = vmatprep.subr.mxu0 0.0
        %2979 = vmatpush1.msra.mxu0 0.0
        %2980 = vmatprep.subr.mxu0 0.0
        %2981 = vmatpush1.msra.mxu0 0.0
        %2982 = vmatprep.subr.mxu0 0.0
        %2983 = vmatpush1.msra.mxu0 0.0
        %2984 = vmatprep.subr.mxu0 0.0
        %2985 = vmatpush1.msra.mxu0 0.0
        %2986 = vmatprep.subr.mxu0 0.0
        %2987 = vmatpush1.msra.mxu0 0.0
        %2988 = vmatprep.subr.mxu0 0.0
        %2989 = vmatpush1.msra.mxu0 0.0
        %2990 = vmatprep.subr.mxu0 0.0
        %2991 = vmatpush1.msra.mxu0 0.0
        %2992 = vmatprep.subr.mxu0 0.0
        %2993 = vmatpush1.msra.mxu0 0.0
        %2994 = vmatprep.subr.mxu0 0.0
        %2995 = vmatpush1.msra.mxu0 0.0
        %2996 = vmatprep.subr.mxu0 0.0
        %2997 = vmatpush1.msra.mxu0 0.0
        %2998 = vmatprep.subr.mxu0 0.0
        %2999 = vmatpush1.msra.mxu0 0.0
        %3000 = vmatprep.subr.mxu0 0.0
        %3001 = vmatpush1.msra.mxu0 0.0
        %3002 = vmatprep.subr.mxu0 0.0
        %3003 = vmatpush1.msra.mxu0 0.0
        %3004 = vmatprep.mubr.f32.mxu0 0.0
        %3005 = vmatmul.mubr.f32.gmra.mrb[0].mxu0 %v2641
        %v3006 = vpop.f32.mrb[0].mxu0
        %v3007 = vadd.f32 %v2618, %v3006
        %v3008 = vpop.f32.mrb[0].mxu0
        %v3009 = vadd.f32 %v2618, %v3008
        %3010 = vmatprep.mubr.f32.mxu0 0.0
        %3011 = vmatmul.mubr.f32.gmra.mrb[0].mxu0 %v2644
        %v3012 = vpop.f32.mrb[0].mxu0
        %v3013 = vadd.f32 %v2623, %v3012
        %v3014 = vpop.f32.mrb[0].mxu0
        %v3015 = vadd.f32 %v2623, %v3014
        %3016 = vmatprep.mubr.f32.mxu0 0.0
        %3017 = vmatmul.mubr.f32.gmra.mrb[0].mxu0 %v2647
        %v3018 = vpop.f32.mrb[0].mxu0
        %v3019 = vadd.f32 %v2628, %v3018
        %v3020 = vpop.f32.mrb[0].mxu0
        %v3021 = vadd.f32 %v2628, %v3020
        %3022 = vmatprep.mubr.f32.mxu0 0.0
        %3023 = vmatmul.mubr.f32.gmra.mrb[0].mxu0 %v2650
        %v3024 = vpop.f32.mrb[0].mxu0
        %v3025 = vadd.f32 %v2633, %v3024
        %v3026 = vpop.f32.mrb[0].mxu0
        %v3027 = vadd.f32 %v2633, %v3026
        %3028 = vmatprep.mubr.f32.mxu0 0.0
        %3029 = vmatmul.mubr.f32.gmra.mrb[0].mxu0 %v2653
        %v3030 = vpop.f32.mrb[0].mxu0
        %v3031 = vadd.f32 %v2638, %v3030
        %v3032 = vpop.f32.mrb[0].mxu0
        %v3033 = vadd.f32 %v2638, %v3032
        %3034 = vdwg.mxu0
        %v3035 = vtanh.pop %v2722
        %v3036 = vtanh.pop %v2724
        %v3037 = vtanh.pop %v2817
        %v3038 = vtanh.pop %v2819
        %v3039 = vtanh.pop %v2912
        %v3040 = vtanh.pop %v2914
        %v3041 = vtanh.pop %v3007
        %v3042 = vtanh.pop %v3009
        %v3043 = vtanh.pop %v2728
        %v3044 = vtanh.pop %v2730
        %v3045 = vtanh.pop %v2823
        %v3046 = vtanh.pop %v2825
        %v3047 = vtanh.pop %v2918
        %v3048 = vtanh.pop %v2920
        %v3049 = vtanh.pop %v3013
        %v3050 = vtanh.pop %v3015
        %v3051 = vtanh.pop %v2734
        %v3052 = vtanh.pop %v2736
        %v3053 = vtanh.pop %v2829
        %v3054 = vtanh.pop %v2831
        %v3055 = vtanh.pop %v2924
        %v3056 = vtanh.pop %v2926
        %v3057 = vtanh.pop %v3019
        %v3058 = vtanh.pop %v3021
        %v3059 = vtanh.pop %v2740
        %v3060 = vtanh.pop %v2742
        %v3061 = vtanh.pop %v2835
        %v3062 = vtanh.pop %v2837
        %v3063 = vtanh.pop %v2930
        %v3064 = vtanh.pop %v2932
        %v3065 = vtanh.pop %v3025
        %v3066 = vtanh.pop %v3027
        %v3067 = vtanh.pop %v2746
        %v3068 = vtanh.pop %v2748
        %v3069 = vtanh.pop %v2841
        %v3070 = vtanh.pop %v2843
        %v3071 = vtanh.pop %v2936
        %v3072 = vtanh.pop %v2938
        %v3073 = vtanh.pop %v3031
        %v3074 = vtanh.pop %v3033
        %s3075 = scalar_lea.vmem %s4, 200
        %v3076 = vld [vmem:[%s3075] sm:$0xff]
        %v3077 = vld [vmem:[%s3075 + $0x8] sm:$0xff]
        %v3078 = vld [vmem:[%s3075 + $0x10] sm:$0xff]
        %v3079 = vld [vmem:[%s3075 + $0x18] sm:$0xff]
        %v3080 = vld [vmem:[%s3075 + $0x20] sm:$0xff]
        %3082 = vset.pattern.permute.xlu0 0
        %3083 = vperm.xlu0 %3082, %v3076
        %v3084 = vpop.permute.xlu0 %3083
        %3087 = vset.pattern.permute.xlu0 0
        %3088 = vperm.xlu0 %3087, %v3077
        %v3089 = vpop.permute.xlu0 %3088
        %3092 = vset.pattern.permute.xlu0 0
        %3093 = vperm.xlu0 %3092, %v3078
        %v3094 = vpop.permute.xlu0 %3093
        %3097 = vset.pattern.permute.xlu0 0
        %3098 = vperm.xlu0 %3097, %v3079
        %v3099 = vpop.permute.xlu0 %3098
        %3102 = vset.pattern.permute.xlu0 0
        %3103 = vperm.xlu0 %3102, %v3080
        %v3104 = vpop.permute.xlu0 %3103
        %v3107 = vsel %vm775, %v735, 0
        %v3110 = vsel %vm775, %v736, 0
        %v3113 = vsel %vm775, %v737, 0
        %v3116 = vsel %vm775, %v738, 0
        %v3119 = vsel %vm775, %v739, 0
        %3121 = vmatprep.subr.mxu0 %v3036
        %3122 = vmatpush1.msra.mxu0 %v3035
        %3123 = vmatprep.subr.mxu0 %v3044
        %3124 = vmatpush1.msra.mxu0 %v3043
        %3125 = vmatprep.subr.mxu0 %v3052
        %3126 = vmatpush1.msra.mxu0 %v3051
        %3127 = vmatprep.subr.mxu0 %v3060
        %3128 = vmatpush1.msra.mxu0 %v3059
        %3129 = vmatprep.subr.mxu0 %v3068
        %3130 = vmatpush1.msra.mxu0 %v3067
        %3131 = vmatprep.subr.mxu0 0.0
        %3132 = vmatpush1.msra.mxu0 0.0
        %3133 = vmatprep.subr.mxu0 0.0
        %3134 = vmatpush1.msra.mxu0 0.0
        %3135 = vmatprep.subr.mxu0 0.0
        %3136 = vmatpush1.msra.mxu0 0.0
        %3137 = vmatprep.subr.mxu0 0.0
        %3138 = vmatpush1.msra.mxu0 0.0
        %3139 = vmatprep.subr.mxu0 0.0
        %3140 = vmatpush1.msra.mxu0 0.0
        %3141 = vmatprep.subr.mxu0 0.0
        %3142 = vmatpush1.msra.mxu0 0.0
        %3143 = vmatprep.subr.mxu0 0.0
        %3144 = vmatpush1.msra.mxu0 0.0
        %3145 = vmatprep.subr.mxu0 0.0
        %3146 = vmatpush1.msra.mxu0 0.0
        %3147 = vmatprep.subr.mxu0 0.0
        %3148 = vmatpush1.msra.mxu0 0.0
        %3149 = vmatprep.subr.mxu0 0.0
        %3150 = vmatpush1.msra.mxu0 0.0
        %3151 = vmatprep.subr.mxu0 0.0
        %3152 = vmatpush1.msra.mxu0 0.0
        %3153 = vmatprep.subr.mxu0 0.0
        %3154 = vmatpush1.msra.mxu0 0.0
        %3155 = vmatprep.subr.mxu0 0.0
        %3156 = vmatpush1.msra.mxu0 0.0
        %3157 = vmatprep.subr.mxu0 0.0
        %3158 = vmatpush1.msra.mxu0 0.0
        %3159 = vmatprep.subr.mxu0 0.0
        %3160 = vmatpush1.msra.mxu0 0.0
        %3161 = vmatprep.subr.mxu0 0.0
        %3162 = vmatpush1.msra.mxu0 0.0
        %3163 = vmatprep.subr.mxu0 0.0
        %3164 = vmatpush1.msra.mxu0 0.0
        %3165 = vmatprep.subr.mxu0 0.0
        %3166 = vmatpush1.msra.mxu0 0.0
        %3167 = vmatprep.subr.mxu0 0.0
        %3168 = vmatpush1.msra.mxu0 0.0
        %3169 = vmatprep.subr.mxu0 0.0
        %3170 = vmatpush1.msra.mxu0 0.0
        %3171 = vmatprep.subr.mxu0 0.0
        %3172 = vmatpush1.msra.mxu0 0.0
        %3173 = vmatprep.subr.mxu0 0.0
        %3174 = vmatpush1.msra.mxu0 0.0
        %3175 = vmatprep.subr.mxu0 0.0
        %3176 = vmatpush1.msra.mxu0 0.0
        %3177 = vmatprep.subr.mxu0 0.0
        %3178 = vmatpush1.msra.mxu0 0.0
        %3179 = vmatprep.subr.mxu0 0.0
        %3180 = vmatpush1.msra.mxu0 0.0
        %3181 = vmatprep.subr.mxu0 0.0
        %3182 = vmatpush1.msra.mxu0 0.0
        %3183 = vmatprep.subr.mxu0 0.0
        %3184 = vmatpush1.msra.mxu0 0.0
        %3185 = vmatprep.mubr.f32.mxu0 0.0
        %3186 = vmatmul.mubr.f32.gmra.mrb[0].mxu0 %v3107
        %v3187 = vpop.f32.mrb[0].mxu0
        %v3188 = vadd.f32 %v3084, %v3187
        %v3189 = vpop.f32.mrb[0].mxu0
        %v3190 = vadd.f32 %v3084, %v3189
        %3191 = vmatprep.mubr.f32.mxu0 0.0
        %3192 = vmatmul.mubr.f32.gmra.mrb[0].mxu0 %v3110
        %v3193 = vpop.f32.mrb[0].mxu0
        %v3194 = vadd.f32 %v3089, %v3193
        %v3195 = vpop.f32.mrb[0].mxu0
        %v3196 = vadd.f32 %v3089, %v3195
        %3197 = vmatprep.mubr.f32.mxu0 0.0
        %3198 = vmatmul.mubr.f32.gmra.mrb[0].mxu0 %v3113
        %v3199 = vpop.f32.mrb[0].mxu0
        %v3200 = vadd.f32 %v3094, %v3199
        %v3201 = vpop.f32.mrb[0].mxu0
        %v3202 = vadd.f32 %v3094, %v3201
        %3203 = vmatprep.mubr.f32.mxu0 0.0
        %3204 = vmatmul.mubr.f32.gmra.mrb[0].mxu0 %v3116
        %v3205 = vpop.f32.mrb[0].mxu0
        %v3206 = vadd.f32 %v3099, %v3205
        %v3207 = vpop.f32.mrb[0].mxu0
        %v3208 = vadd.f32 %v3099, %v3207
        %3209 = vmatprep.mubr.f32.mxu0 0.0
        %3210 = vmatmul.mubr.f32.gmra.mrb[0].mxu0 %v3119
        %v3211 = vpop.f32.mrb[0].mxu0
        %v3212 = vadd.f32 %v3104, %v3211
        %v3213 = vpop.f32.mrb[0].mxu0
        %v3214 = vadd.f32 %v3104, %v3213
        %3215 = vdwg.mxu0
        %3216 = vmatprep.subr.mxu0 %v3038
        %3217 = vmatpush1.msra.mxu0 %v3037
        %3218 = vmatprep.subr.mxu0 %v3046
        %3219 = vmatpush1.msra.mxu0 %v3045
        %3220 = vmatprep.subr.mxu0 %v3054
        %3221 = vmatpush1.msra.mxu0 %v3053
        %3222 = vmatprep.subr.mxu0 %v3062
        %3223 = vmatpush1.msra.mxu0 %v3061
        %3224 = vmatprep.subr.mxu0 %v3070
        %3225 = vmatpush1.msra.mxu0 %v3069
        %3226 = vmatprep.subr.mxu0 0.0
        %3227 = vmatpush1.msra.mxu0 0.0
        %3228 = vmatprep.subr.mxu0 0.0
        %3229 = vmatpush1.msra.mxu0 0.0
        %3230 = vmatprep.subr.mxu0 0.0
        %3231 = vmatpush1.msra.mxu0 0.0
        %3232 = vmatprep.subr.mxu0 0.0
        %3233 = vmatpush1.msra.mxu0 0.0
        %3234 = vmatprep.subr.mxu0 0.0
        %3235 = vmatpush1.msra.mxu0 0.0
        %3236 = vmatprep.subr.mxu0 0.0
        %3237 = vmatpush1.msra.mxu0 0.0
        %3238 = vmatprep.subr.mxu0 0.0
        %3239 = vmatpush1.msra.mxu0 0.0
        %3240 = vmatprep.subr.mxu0 0.0
        %3241 = vmatpush1.msra.mxu0 0.0
        %3242 = vmatprep.subr.mxu0 0.0
        %3243 = vmatpush1.msra.mxu0 0.0
        %3244 = vmatprep.subr.mxu0 0.0
        %3245 = vmatpush1.msra.mxu0 0.0
        %3246 = vmatprep.subr.mxu0 0.0
        %3247 = vmatpush1.msra.mxu0 0.0
        %3248 = vmatprep.subr.mxu0 0.0
        %3249 = vmatpush1.msra.mxu0 0.0
        %3250 = vmatprep.subr.mxu0 0.0
        %3251 = vmatpush1.msra.mxu0 0.0
        %3252 = vmatprep.subr.mxu0 0.0
        %3253 = vmatpush1.msra.mxu0 0.0
        %3254 = vmatprep.subr.mxu0 0.0
        %3255 = vmatpush1.msra.mxu0 0.0
        %3256 = vmatprep.subr.mxu0 0.0
        %3257 = vmatpush1.msra.mxu0 0.0
        %3258 = vmatprep.subr.mxu0 0.0
        %3259 = vmatpush1.msra.mxu0 0.0
        %3260 = vmatprep.subr.mxu0 0.0
        %3261 = vmatpush1.msra.mxu0 0.0
        %3262 = vmatprep.subr.mxu0 0.0
        %3263 = vmatpush1.msra.mxu0 0.0
        %3264 = vmatprep.subr.mxu0 0.0
        %3265 = vmatpush1.msra.mxu0 0.0
        %3266 = vmatprep.subr.mxu0 0.0
        %3267 = vmatpush1.msra.mxu0 0.0
        %3268 = vmatprep.subr.mxu0 0.0
        %3269 = vmatpush1.msra.mxu0 0.0
        %3270 = vmatprep.subr.mxu0 0.0
        %3271 = vmatpush1.msra.mxu0 0.0
        %3272 = vmatprep.subr.mxu0 0.0
        %3273 = vmatpush1.msra.mxu0 0.0
        %3274 = vmatprep.subr.mxu0 0.0
        %3275 = vmatpush1.msra.mxu0 0.0
        %3276 = vmatprep.subr.mxu0 0.0
        %3277 = vmatpush1.msra.mxu0 0.0
        %3278 = vmatprep.subr.mxu0 0.0
        %3279 = vmatpush1.msra.mxu0 0.0
        %3280 = vmatprep.mubr.f32.mxu0 0.0
        %3281 = vmatmul.mubr.f32.gmra.mrb[0].mxu0 %v3107
        %v3282 = vpop.f32.mrb[0].mxu0
        %v3283 = vadd.f32 %v3084, %v3282
        %v3284 = vpop.f32.mrb[0].mxu0
        %v3285 = vadd.f32 %v3084, %v3284
        %3286 = vmatprep.mubr.f32.mxu0 0.0
        %3287 = vmatmul.mubr.f32.gmra.mrb[0].mxu0 %v3110
        %v3288 = vpop.f32.mrb[0].mxu0
        %v3289 = vadd.f32 %v3089, %v3288
        %v3290 = vpop.f32.mrb[0].mxu0
        %v3291 = vadd.f32 %v3089, %v3290
        %3292 = vmatprep.mubr.f32.mxu0 0.0
        %3293 = vmatmul.mubr.f32.gmra.mrb[0].mxu0 %v3113
        %v3294 = vpop.f32.mrb[0].mxu0
        %v3295 = vadd.f32 %v3094, %v3294
        %v3296 = vpop.f32.mrb[0].mxu0
        %v3297 = vadd.f32 %v3094, %v3296
        %3298 = vmatprep.mubr.f32.mxu0 0.0
        %3299 = vmatmul.mubr.f32.gmra.mrb[0].mxu0 %v3116
        %v3300 = vpop.f32.mrb[0].mxu0
        %v3301 = vadd.f32 %v3099, %v3300
        %v3302 = vpop.f32.mrb[0].mxu0
        %v3303 = vadd.f32 %v3099, %v3302
        %3304 = vmatprep.mubr.f32.mxu0 0.0
        %3305 = vmatmul.mubr.f32.gmra.mrb[0].mxu0 %v3119
        %v3306 = vpop.f32.mrb[0].mxu0
        %v3307 = vadd.f32 %v3104, %v3306
        %v3308 = vpop.f32.mrb[0].mxu0
        %v3309 = vadd.f32 %v3104, %v3308
        %3310 = vdwg.mxu0
        %3311 = vmatprep.subr.mxu0 %v3040
        %3312 = vmatpush1.msra.mxu0 %v3039
        %3313 = vmatprep.subr.mxu0 %v3048
        %3314 = vmatpush1.msra.mxu0 %v3047
        %3315 = vmatprep.subr.mxu0 %v3056
        %3316 = vmatpush1.msra.mxu0 %v3055
        %3317 = vmatprep.subr.mxu0 %v3064
        %3318 = vmatpush1.msra.mxu0 %v3063
        %3319 = vmatprep.subr.mxu0 %v3072
        %3320 = vmatpush1.msra.mxu0 %v3071
        %3321 = vmatprep.subr.mxu0 0.0
        %3322 = vmatpush1.msra.mxu0 0.0
        %3323 = vmatprep.subr.mxu0 0.0
        %3324 = vmatpush1.msra.mxu0 0.0
        %3325 = vmatprep.subr.mxu0 0.0
        %3326 = vmatpush1.msra.mxu0 0.0
        %3327 = vmatprep.subr.mxu0 0.0
        %3328 = vmatpush1.msra.mxu0 0.0
        %3329 = vmatprep.subr.mxu0 0.0
        %3330 = vmatpush1.msra.mxu0 0.0
        %3331 = vmatprep.subr.mxu0 0.0
        %3332 = vmatpush1.msra.mxu0 0.0
        %3333 = vmatprep.subr.mxu0 0.0
        %3334 = vmatpush1.msra.mxu0 0.0
        %3335 = vmatprep.subr.mxu0 0.0
        %3336 = vmatpush1.msra.mxu0 0.0
        %3337 = vmatprep.subr.mxu0 0.0
        %3338 = vmatpush1.msra.mxu0 0.0
        %3339 = vmatprep.subr.mxu0 0.0
        %3340 = vmatpush1.msra.mxu0 0.0
        %3341 = vmatprep.subr.mxu0 0.0
        %3342 = vmatpush1.msra.mxu0 0.0
        %3343 = vmatprep.subr.mxu0 0.0
        %3344 = vmatpush1.msra.mxu0 0.0
        %3345 = vmatprep.subr.mxu0 0.0
        %3346 = vmatpush1.msra.mxu0 0.0
        %3347 = vmatprep.subr.mxu0 0.0
        %3348 = vmatpush1.msra.mxu0 0.0
        %3349 = vmatprep.subr.mxu0 0.0
        %3350 = vmatpush1.msra.mxu0 0.0
        %3351 = vmatprep.subr.mxu0 0.0
        %3352 = vmatpush1.msra.mxu0 0.0
        %3353 = vmatprep.subr.mxu0 0.0
        %3354 = vmatpush1.msra.mxu0 0.0
        %3355 = vmatprep.subr.mxu0 0.0
        %3356 = vmatpush1.msra.mxu0 0.0
        %3357 = vmatprep.subr.mxu0 0.0
        %3358 = vmatpush1.msra.mxu0 0.0
        %3359 = vmatprep.subr.mxu0 0.0
        %3360 = vmatpush1.msra.mxu0 0.0
        %3361 = vmatprep.subr.mxu0 0.0
        %3362 = vmatpush1.msra.mxu0 0.0
        %3363 = vmatprep.subr.mxu0 0.0
        %3364 = vmatpush1.msra.mxu0 0.0
        %3365 = vmatprep.subr.mxu0 0.0
        %3366 = vmatpush1.msra.mxu0 0.0
        %3367 = vmatprep.subr.mxu0 0.0
        %3368 = vmatpush1.msra.mxu0 0.0
        %3369 = vmatprep.subr.mxu0 0.0
        %3370 = vmatpush1.msra.mxu0 0.0
        %3371 = vmatprep.subr.mxu0 0.0
        %3372 = vmatpush1.msra.mxu0 0.0
        %3373 = vmatprep.subr.mxu0 0.0
        %3374 = vmatpush1.msra.mxu0 0.0
        %3375 = vmatprep.mubr.f32.mxu0 0.0
        %3376 = vmatmul.mubr.f32.gmra.mrb[0].mxu0 %v3107
        %v3377 = vpop.f32.mrb[0].mxu0
        %v3378 = vadd.f32 %v3084, %v3377
        %v3379 = vpop.f32.mrb[0].mxu0
        %v3380 = vadd.f32 %v3084, %v3379
        %3381 = vmatprep.mubr.f32.mxu0 0.0
        %3382 = vmatmul.mubr.f32.gmra.mrb[0].mxu0 %v3110
        %v3383 = vpop.f32.mrb[0].mxu0
        %v3384 = vadd.f32 %v3089, %v3383
        %v3385 = vpop.f32.mrb[0].mxu0
        %v3386 = vadd.f32 %v3089, %v3385
        %3387 = vmatprep.mubr.f32.mxu0 0.0
        %3388 = vmatmul.mubr.f32.gmra.mrb[0].mxu0 %v3113
        %v3389 = vpop.f32.mrb[0].mxu0
        %v3390 = vadd.f32 %v3094, %v3389
        %v3391 = vpop.f32.mrb[0].mxu0
        %v3392 = vadd.f32 %v3094, %v3391
        %3393 = vmatprep.mubr.f32.mxu0 0.0
        %3394 = vmatmul.mubr.f32.gmra.mrb[0].mxu0 %v3116
        %v3395 = vpop.f32.mrb[0].mxu0
        %v3396 = vadd.f32 %v3099, %v3395
        %v3397 = vpop.f32.mrb[0].mxu0
        %v3398 = vadd.f32 %v3099, %v3397
        %3399 = vmatprep.mubr.f32.mxu0 0.0
        %3400 = vmatmul.mubr.f32.gmra.mrb[0].mxu0 %v3119
        %v3401 = vpop.f32.mrb[0].mxu0
        %v3402 = vadd.f32 %v3104, %v3401
        %v3403 = vpop.f32.mrb[0].mxu0
        %v3404 = vadd.f32 %v3104, %v3403
        %3405 = vdwg.mxu0
        %3406 = vmatprep.subr.mxu0 %v3042
        %3407 = vmatpush1.msra.mxu0 %v3041
        %3408 = vmatprep.subr.mxu0 %v3050
        %3409 = vmatpush1.msra.mxu0 %v3049
        %3410 = vmatprep.subr.mxu0 %v3058
        %3411 = vmatpush1.msra.mxu0 %v3057
        %3412 = vmatprep.subr.mxu0 %v3066
        %3413 = vmatpush1.msra.mxu0 %v3065
        %3414 = vmatprep.subr.mxu0 %v3074
        %3415 = vmatpush1.msra.mxu0 %v3073
        %3416 = vmatprep.subr.mxu0 0.0
        %3417 = vmatpush1.msra.mxu0 0.0
        %3418 = vmatprep.subr.mxu0 0.0
        %3419 = vmatpush1.msra.mxu0 0.0
        %3420 = vmatprep.subr.mxu0 0.0
        %3421 = vmatpush1.msra.mxu0 0.0
        %3422 = vmatprep.subr.mxu0 0.0
        %3423 = vmatpush1.msra.mxu0 0.0
        %3424 = vmatprep.subr.mxu0 0.0
        %3425 = vmatpush1.msra.mxu0 0.0
        %3426 = vmatprep.subr.mxu0 0.0
        %3427 = vmatpush1.msra.mxu0 0.0
        %3428 = vmatprep.subr.mxu0 0.0
        %3429 = vmatpush1.msra.mxu0 0.0
        %3430 = vmatprep.subr.mxu0 0.0
        %3431 = vmatpush1.msra.mxu0 0.0
        %3432 = vmatprep.subr.mxu0 0.0
        %3433 = vmatpush1.msra.mxu0 0.0
        %3434 = vmatprep.subr.mxu0 0.0
        %3435 = vmatpush1.msra.mxu0 0.0
        %3436 = vmatprep.subr.mxu0 0.0
        %3437 = vmatpush1.msra.mxu0 0.0
        %3438 = vmatprep.subr.mxu0 0.0
        %3439 = vmatpush1.msra.mxu0 0.0
        %3440 = vmatprep.subr.mxu0 0.0
        %3441 = vmatpush1.msra.mxu0 0.0
        %3442 = vmatprep.subr.mxu0 0.0
        %3443 = vmatpush1.msra.mxu0 0.0
        %3444 = vmatprep.subr.mxu0 0.0
        %3445 = vmatpush1.msra.mxu0 0.0
        %3446 = vmatprep.subr.mxu0 0.0
        %3447 = vmatpush1.msra.mxu0 0.0
        %3448 = vmatprep.subr.mxu0 0.0
        %3449 = vmatpush1.msra.mxu0 0.0
        %3450 = vmatprep.subr.mxu0 0.0
        %3451 = vmatpush1.msra.mxu0 0.0
        %3452 = vmatprep.subr.mxu0 0.0
        %3453 = vmatpush1.msra.mxu0 0.0
        %3454 = vmatprep.subr.mxu0 0.0
        %3455 = vmatpush1.msra.mxu0 0.0
        %3456 = vmatprep.subr.mxu0 0.0
        %3457 = vmatpush1.msra.mxu0 0.0
        %3458 = vmatprep.subr.mxu0 0.0
        %3459 = vmatpush1.msra.mxu0 0.0
        %3460 = vmatprep.subr.mxu0 0.0
        %3461 = vmatpush1.msra.mxu0 0.0
        %3462 = vmatprep.subr.mxu0 0.0
        %3463 = vmatpush1.msra.mxu0 0.0
        %3464 = vmatprep.subr.mxu0 0.0
        %3465 = vmatpush1.msra.mxu0 0.0
        %3466 = vmatprep.subr.mxu0 0.0
        %3467 = vmatpush1.msra.mxu0 0.0
        %3468 = vmatprep.subr.mxu0 0.0
        %3469 = vmatpush1.msra.mxu0 0.0
        %3470 = vmatprep.mubr.f32.mxu0 0.0
        %3471 = vmatmul.mubr.f32.gmra.mrb[0].mxu0 %v3107
        %v3472 = vpop.f32.mrb[0].mxu0
        %v3473 = vadd.f32 %v3084, %v3472
        %v3474 = vpop.f32.mrb[0].mxu0
        %v3475 = vadd.f32 %v3084, %v3474
        %3476 = vmatprep.mubr.f32.mxu0 0.0
        %3477 = vmatmul.mubr.f32.gmra.mrb[0].mxu0 %v3110
        %v3478 = vpop.f32.mrb[0].mxu0
        %v3479 = vadd.f32 %v3089, %v3478
        %v3480 = vpop.f32.mrb[0].mxu0
        %v3481 = vadd.f32 %v3089, %v3480
        %3482 = vmatprep.mubr.f32.mxu0 0.0
        %3483 = vmatmul.mubr.f32.gmra.mrb[0].mxu0 %v3113
        %v3484 = vpop.f32.mrb[0].mxu0
        %v3485 = vadd.f32 %v3094, %v3484
        %v3486 = vpop.f32.mrb[0].mxu0
        %v3487 = vadd.f32 %v3094, %v3486
        %3488 = vmatprep.mubr.f32.mxu0 0.0
        %3489 = vmatmul.mubr.f32.gmra.mrb[0].mxu0 %v3116
        %v3490 = vpop.f32.mrb[0].mxu0
        %v3491 = vadd.f32 %v3099, %v3490
        %v3492 = vpop.f32.mrb[0].mxu0
        %v3493 = vadd.f32 %v3099, %v3492
        %3494 = vmatprep.mubr.f32.mxu0 0.0
        %3495 = vmatmul.mubr.f32.gmra.mrb[0].mxu0 %v3119
        %v3496 = vpop.f32.mrb[0].mxu0
        %v3497 = vadd.f32 %v3104, %v3496
        %v3498 = vpop.f32.mrb[0].mxu0
        %v3499 = vadd.f32 %v3104, %v3498
        %3500 = vdwg.mxu0
        %v3501 = vtanh.pop %v3188
        %v3502 = vtanh.pop %v3190
        %v3503 = vtanh.pop %v3283
        %v3504 = vtanh.pop %v3285
        %v3505 = vtanh.pop %v3378
        %v3506 = vtanh.pop %v3380
        %v3507 = vtanh.pop %v3473
        %v3508 = vtanh.pop %v3475
        %v3509 = vtanh.pop %v3194
        %v3510 = vtanh.pop %v3196
        %v3511 = vtanh.pop %v3289
        %v3512 = vtanh.pop %v3291
        %v3513 = vtanh.pop %v3384
        %v3514 = vtanh.pop %v3386
        %v3515 = vtanh.pop %v3479
        %v3516 = vtanh.pop %v3481
        %v3517 = vtanh.pop %v3200
        %v3518 = vtanh.pop %v3202
        %v3519 = vtanh.pop %v3295
        %v3520 = vtanh.pop %v3297
        %v3521 = vtanh.pop %v3390
        %v3522 = vtanh.pop %v3392
        %v3523 = vtanh.pop %v3485
        %v3524 = vtanh.pop %v3487
        %v3525 = vtanh.pop %v3206
        %v3526 = vtanh.pop %v3208
        %v3527 = vtanh.pop %v3301
        %v3528 = vtanh.pop %v3303
        %v3529 = vtanh.pop %v3396
        %v3530 = vtanh.pop %v3398
        %v3531 = vtanh.pop %v3491
        %v3532 = vtanh.pop %v3493
        %v3533 = vtanh.pop %v3212
        %v3534 = vtanh.pop %v3214
        %v3535 = vtanh.pop %v3307
        %v3536 = vtanh.pop %v3309
        %v3537 = vtanh.pop %v3402
        %v3538 = vtanh.pop %v3404
        %v3539 = vtanh.pop %v3497
        %v3540 = vtanh.pop %v3499
        %s3541 = scalar_lea.vmem %s4, 240
        %v3542 = vld [vmem:[%s3541] sm:$0xff]
        %v3543 = vld [vmem:[%s3541 + $0x8] sm:$0xff]
        %v3544 = vld [vmem:[%s3541 + $0x10] sm:$0xff]
        %v3545 = vld [vmem:[%s3541 + $0x18] sm:$0xff]
        %v3546 = vld [vmem:[%s3541 + $0x20] sm:$0xff]
        %3548 = vset.pattern.permute.xlu0 0
        %3549 = vperm.xlu0 %3548, %v3542
        %v3550 = vpop.permute.xlu0 %3549
        %3553 = vset.pattern.permute.xlu0 0
        %3554 = vperm.xlu0 %3553, %v3543
        %v3555 = vpop.permute.xlu0 %3554
        %3558 = vset.pattern.permute.xlu0 0
        %3559 = vperm.xlu0 %3558, %v3544
        %v3560 = vpop.permute.xlu0 %3559
        %3563 = vset.pattern.permute.xlu0 0
        %3564 = vperm.xlu0 %3563, %v3545
        %v3565 = vpop.permute.xlu0 %3564
        %3568 = vset.pattern.permute.xlu0 0
        %3569 = vperm.xlu0 %3568, %v3546
        %v3570 = vpop.permute.xlu0 %3569
        %v3573 = vsel %vm775, %v740, 0
        %v3576 = vsel %vm775, %v741, 0
        %v3579 = vsel %vm775, %v742, 0
        %v3582 = vsel %vm775, %v743, 0
        %v3585 = vsel %vm775, %v744, 0
        %3587 = vmatprep.subr.mxu0 %v3502
        %3588 = vmatpush1.msra.mxu0 %v3501
        %3589 = vmatprep.subr.mxu0 %v3510
        %3590 = vmatpush1.msra.mxu0 %v3509
        %3591 = vmatprep.subr.mxu0 %v3518
        %3592 = vmatpush1.msra.mxu0 %v3517
        %3593 = vmatprep.subr.mxu0 %v3526
        %3594 = vmatpush1.msra.mxu0 %v3525
        %3595 = vmatprep.subr.mxu0 %v3534
        %3596 = vmatpush1.msra.mxu0 %v3533
        %3597 = vmatprep.subr.mxu0 0.0
        %3598 = vmatpush1.msra.mxu0 0.0
        %3599 = vmatprep.subr.mxu0 0.0
        %3600 = vmatpush1.msra.mxu0 0.0
        %3601 = vmatprep.subr.mxu0 0.0
        %3602 = vmatpush1.msra.mxu0 0.0
        %3603 = vmatprep.subr.mxu0 0.0
        %3604 = vmatpush1.msra.mxu0 0.0
        %3605 = vmatprep.subr.mxu0 0.0
        %3606 = vmatpush1.msra.mxu0 0.0
        %3607 = vmatprep.subr.mxu0 0.0
        %3608 = vmatpush1.msra.mxu0 0.0
        %3609 = vmatprep.subr.mxu0 0.0
        %3610 = vmatpush1.msra.mxu0 0.0
        %3611 = vmatprep.subr.mxu0 0.0
        %3612 = vmatpush1.msra.mxu0 0.0
        %3613 = vmatprep.subr.mxu0 0.0
        %3614 = vmatpush1.msra.mxu0 0.0
        %3615 = vmatprep.subr.mxu0 0.0
        %3616 = vmatpush1.msra.mxu0 0.0
        %3617 = vmatprep.subr.mxu0 0.0
        %3618 = vmatpush1.msra.mxu0 0.0
        %3619 = vmatprep.subr.mxu0 0.0
        %3620 = vmatpush1.msra.mxu0 0.0
        %3621 = vmatprep.subr.mxu0 0.0
        %3622 = vmatpush1.msra.mxu0 0.0
        %3623 = vmatprep.subr.mxu0 0.0
        %3624 = vmatpush1.msra.mxu0 0.0
        %3625 = vmatprep.subr.mxu0 0.0
        %3626 = vmatpush1.msra.mxu0 0.0
        %3627 = vmatprep.subr.mxu0 0.0
        %3628 = vmatpush1.msra.mxu0 0.0
        %3629 = vmatprep.subr.mxu0 0.0
        %3630 = vmatpush1.msra.mxu0 0.0
        %3631 = vmatprep.subr.mxu0 0.0
        %3632 = vmatpush1.msra.mxu0 0.0
        %3633 = vmatprep.subr.mxu0 0.0
        %3634 = vmatpush1.msra.mxu0 0.0
        %3635 = vmatprep.subr.mxu0 0.0
        %3636 = vmatpush1.msra.mxu0 0.0
        %3637 = vmatprep.subr.mxu0 0.0
        %3638 = vmatpush1.msra.mxu0 0.0
        %3639 = vmatprep.subr.mxu0 0.0
        %3640 = vmatpush1.msra.mxu0 0.0
        %3641 = vmatprep.subr.mxu0 0.0
        %3642 = vmatpush1.msra.mxu0 0.0
        %3643 = vmatprep.subr.mxu0 0.0
        %3644 = vmatpush1.msra.mxu0 0.0
        %3645 = vmatprep.subr.mxu0 0.0
        %3646 = vmatpush1.msra.mxu0 0.0
        %3647 = vmatprep.subr.mxu0 0.0
        %3648 = vmatpush1.msra.mxu0 0.0
        %3649 = vmatprep.subr.mxu0 0.0
        %3650 = vmatpush1.msra.mxu0 0.0
        %3651 = vmatprep.mubr.f32.mxu0 0.0
        %3652 = vmatmul.mubr.f32.gmra.mrb[0].mxu0 %v3573
        %v3653 = vpop.f32.mrb[0].mxu0
        %v3654 = vadd.f32 %v3550, %v3653
        %v3655 = vpop.f32.mrb[0].mxu0
        %v3656 = vadd.f32 %v3550, %v3655
        %3657 = vmatprep.mubr.f32.mxu0 0.0
        %3658 = vmatmul.mubr.f32.gmra.mrb[0].mxu0 %v3576
        %v3659 = vpop.f32.mrb[0].mxu0
        %v3660 = vadd.f32 %v3555, %v3659
        %v3661 = vpop.f32.mrb[0].mxu0
        %v3662 = vadd.f32 %v3555, %v3661
        %3663 = vmatprep.mubr.f32.mxu0 0.0
        %3664 = vmatmul.mubr.f32.gmra.mrb[0].mxu0 %v3579
        %v3665 = vpop.f32.mrb[0].mxu0
        %v3666 = vadd.f32 %v3560, %v3665
        %v3667 = vpop.f32.mrb[0].mxu0
        %v3668 = vadd.f32 %v3560, %v3667
        %3669 = vmatprep.mubr.f32.mxu0 0.0
        %3670 = vmatmul.mubr.f32.gmra.mrb[0].mxu0 %v3582
        %v3671 = vpop.f32.mrb[0].mxu0
        %v3672 = vadd.f32 %v3565, %v3671
        %v3673 = vpop.f32.mrb[0].mxu0
        %v3674 = vadd.f32 %v3565, %v3673
        %3675 = vmatprep.mubr.f32.mxu0 0.0
        %3676 = vmatmul.mubr.f32.gmra.mrb[0].mxu0 %v3585
        %v3677 = vpop.f32.mrb[0].mxu0
        %v3678 = vadd.f32 %v3570, %v3677
        %v3679 = vpop.f32.mrb[0].mxu0
        %v3680 = vadd.f32 %v3570, %v3679
        %3681 = vdwg.mxu0
        %3682 = vmatprep.subr.mxu0 %v3504
        %3683 = vmatpush1.msra.mxu0 %v3503
        %3684 = vmatprep.subr.mxu0 %v3512
        %3685 = vmatpush1.msra.mxu0 %v3511
        %3686 = vmatprep.subr.mxu0 %v3520
        %3687 = vmatpush1.msra.mxu0 %v3519
        %3688 = vmatprep.subr.mxu0 %v3528
        %3689 = vmatpush1.msra.mxu0 %v3527
        %3690 = vmatprep.subr.mxu0 %v3536
        %3691 = vmatpush1.msra.mxu0 %v3535
        %3692 = vmatprep.subr.mxu0 0.0
        %3693 = vmatpush1.msra.mxu0 0.0
        %3694 = vmatprep.subr.mxu0 0.0
        %3695 = vmatpush1.msra.mxu0 0.0
        %3696 = vmatprep.subr.mxu0 0.0
        %3697 = vmatpush1.msra.mxu0 0.0
        %3698 = vmatprep.subr.mxu0 0.0
        %3699 = vmatpush1.msra.mxu0 0.0
        %3700 = vmatprep.subr.mxu0 0.0
        %3701 = vmatpush1.msra.mxu0 0.0
        %3702 = vmatprep.subr.mxu0 0.0
        %3703 = vmatpush1.msra.mxu0 0.0
        %3704 = vmatprep.subr.mxu0 0.0
        %3705 = vmatpush1.msra.mxu0 0.0
        %3706 = vmatprep.subr.mxu0 0.0
        %3707 = vmatpush1.msra.mxu0 0.0
        %3708 = vmatprep.subr.mxu0 0.0
        %3709 = vmatpush1.msra.mxu0 0.0
        %3710 = vmatprep.subr.mxu0 0.0
        %3711 = vmatpush1.msra.mxu0 0.0
        %3712 = vmatprep.subr.mxu0 0.0
        %3713 = vmatpush1.msra.mxu0 0.0
        %3714 = vmatprep.subr.mxu0 0.0
        %3715 = vmatpush1.msra.mxu0 0.0
        %3716 = vmatprep.subr.mxu0 0.0
        %3717 = vmatpush1.msra.mxu0 0.0
        %3718 = vmatprep.subr.mxu0 0.0
        %3719 = vmatpush1.msra.mxu0 0.0
        %3720 = vmatprep.subr.mxu0 0.0
        %3721 = vmatpush1.msra.mxu0 0.0
        %3722 = vmatprep.subr.mxu0 0.0
        %3723 = vmatpush1.msra.mxu0 0.0
        %3724 = vmatprep.subr.mxu0 0.0
        %3725 = vmatpush1.msra.mxu0 0.0
        %3726 = vmatprep.subr.mxu0 0.0
        %3727 = vmatpush1.msra.mxu0 0.0
        %3728 = vmatprep.subr.mxu0 0.0
        %3729 = vmatpush1.msra.mxu0 0.0
        %3730 = vmatprep.subr.mxu0 0.0
        %3731 = vmatpush1.msra.mxu0 0.0
        %3732 = vmatprep.subr.mxu0 0.0
        %3733 = vmatpush1.msra.mxu0 0.0
        %3734 = vmatprep.subr.mxu0 0.0
        %3735 = vmatpush1.msra.mxu0 0.0
        %3736 = vmatprep.subr.mxu0 0.0
        %3737 = vmatpush1.msra.mxu0 0.0
        %3738 = vmatprep.subr.mxu0 0.0
        %3739 = vmatpush1.msra.mxu0 0.0
        %3740 = vmatprep.subr.mxu0 0.0
        %3741 = vmatpush1.msra.mxu0 0.0
        %3742 = vmatprep.subr.mxu0 0.0
        %3743 = vmatpush1.msra.mxu0 0.0
        %3744 = vmatprep.subr.mxu0 0.0
        %3745 = vmatpush1.msra.mxu0 0.0
        %3746 = vmatprep.mubr.f32.mxu0 0.0
        %3747 = vmatmul.mubr.f32.gmra.mrb[0].mxu0 %v3573
        %v3748 = vpop.f32.mrb[0].mxu0
        %v3749 = vadd.f32 %v3550, %v3748
        %v3750 = vpop.f32.mrb[0].mxu0
        %v3751 = vadd.f32 %v3550, %v3750
        %3752 = vmatprep.mubr.f32.mxu0 0.0
        %3753 = vmatmul.mubr.f32.gmra.mrb[0].mxu0 %v3576
        %v3754 = vpop.f32.mrb[0].mxu0
        %v3755 = vadd.f32 %v3555, %v3754
        %v3756 = vpop.f32.mrb[0].mxu0
        %v3757 = vadd.f32 %v3555, %v3756
        %3758 = vmatprep.mubr.f32.mxu0 0.0
        %3759 = vmatmul.mubr.f32.gmra.mrb[0].mxu0 %v3579
        %v3760 = vpop.f32.mrb[0].mxu0
        %v3761 = vadd.f32 %v3560, %v3760
        %v3762 = vpop.f32.mrb[0].mxu0
        %v3763 = vadd.f32 %v3560, %v3762
        %3764 = vmatprep.mubr.f32.mxu0 0.0
        %3765 = vmatmul.mubr.f32.gmra.mrb[0].mxu0 %v3582
        %v3766 = vpop.f32.mrb[0].mxu0
        %v3767 = vadd.f32 %v3565, %v3766
        %v3768 = vpop.f32.mrb[0].mxu0
        %v3769 = vadd.f32 %v3565, %v3768
        %3770 = vmatprep.mubr.f32.mxu0 0.0
        %3771 = vmatmul.mubr.f32.gmra.mrb[0].mxu0 %v3585
        %v3772 = vpop.f32.mrb[0].mxu0
        %v3773 = vadd.f32 %v3570, %v3772
        %v3774 = vpop.f32.mrb[0].mxu0
        %v3775 = vadd.f32 %v3570, %v3774
        %3776 = vdwg.mxu0
        %3777 = vmatprep.subr.mxu0 %v3506
        %3778 = vmatpush1.msra.mxu0 %v3505
        %3779 = vmatprep.subr.mxu0 %v3514
        %3780 = vmatpush1.msra.mxu0 %v3513
        %3781 = vmatprep.subr.mxu0 %v3522
        %3782 = vmatpush1.msra.mxu0 %v3521
        %3783 = vmatprep.subr.mxu0 %v3530
        %3784 = vmatpush1.msra.mxu0 %v3529
        %3785 = vmatprep.subr.mxu0 %v3538
        %3786 = vmatpush1.msra.mxu0 %v3537
        %3787 = vmatprep.subr.mxu0 0.0
        %3788 = vmatpush1.msra.mxu0 0.0
        %3789 = vmatprep.subr.mxu0 0.0
        %3790 = vmatpush1.msra.mxu0 0.0
        %3791 = vmatprep.subr.mxu0 0.0
        %3792 = vmatpush1.msra.mxu0 0.0
        %3793 = vmatprep.subr.mxu0 0.0
        %3794 = vmatpush1.msra.mxu0 0.0
        %3795 = vmatprep.subr.mxu0 0.0
        %3796 = vmatpush1.msra.mxu0 0.0
        %3797 = vmatprep.subr.mxu0 0.0
        %3798 = vmatpush1.msra.mxu0 0.0
        %3799 = vmatprep.subr.mxu0 0.0
        %3800 = vmatpush1.msra.mxu0 0.0
        %3801 = vmatprep.subr.mxu0 0.0
        %3802 = vmatpush1.msra.mxu0 0.0
        %3803 = vmatprep.subr.mxu0 0.0
        %3804 = vmatpush1.msra.mxu0 0.0
        %3805 = vmatprep.subr.mxu0 0.0
        %3806 = vmatpush1.msra.mxu0 0.0
        %3807 = vmatprep.subr.mxu0 0.0
        %3808 = vmatpush1.msra.mxu0 0.0
        %3809 = vmatprep.subr.mxu0 0.0
        %3810 = vmatpush1.msra.mxu0 0.0
        %3811 = vmatprep.subr.mxu0 0.0
        %3812 = vmatpush1.msra.mxu0 0.0
        %3813 = vmatprep.subr.mxu0 0.0
        %3814 = vmatpush1.msra.mxu0 0.0
        %3815 = vmatprep.subr.mxu0 0.0
        %3816 = vmatpush1.msra.mxu0 0.0
        %3817 = vmatprep.subr.mxu0 0.0
        %3818 = vmatpush1.msra.mxu0 0.0
        %3819 = vmatprep.subr.mxu0 0.0
        %3820 = vmatpush1.msra.mxu0 0.0
        %3821 = vmatprep.subr.mxu0 0.0
        %3822 = vmatpush1.msra.mxu0 0.0
        %3823 = vmatprep.subr.mxu0 0.0
        %3824 = vmatpush1.msra.mxu0 0.0
        %3825 = vmatprep.subr.mxu0 0.0
        %3826 = vmatpush1.msra.mxu0 0.0
        %3827 = vmatprep.subr.mxu0 0.0
        %3828 = vmatpush1.msra.mxu0 0.0
        %3829 = vmatprep.subr.mxu0 0.0
        %3830 = vmatpush1.msra.mxu0 0.0
        %3831 = vmatprep.subr.mxu0 0.0
        %3832 = vmatpush1.msra.mxu0 0.0
        %3833 = vmatprep.subr.mxu0 0.0
        %3834 = vmatpush1.msra.mxu0 0.0
        %3835 = vmatprep.subr.mxu0 0.0
        %3836 = vmatpush1.msra.mxu0 0.0
        %3837 = vmatprep.subr.mxu0 0.0
        %3838 = vmatpush1.msra.mxu0 0.0
        %3839 = vmatprep.subr.mxu0 0.0
        %3840 = vmatpush1.msra.mxu0 0.0
        %3841 = vmatprep.mubr.f32.mxu0 0.0
        %3842 = vmatmul.mubr.f32.gmra.mrb[0].mxu0 %v3573
        %v3843 = vpop.f32.mrb[0].mxu0
        %v3844 = vadd.f32 %v3550, %v3843
        %v3845 = vpop.f32.mrb[0].mxu0
        %v3846 = vadd.f32 %v3550, %v3845
        %3847 = vmatprep.mubr.f32.mxu0 0.0
        %3848 = vmatmul.mubr.f32.gmra.mrb[0].mxu0 %v3576
        %v3849 = vpop.f32.mrb[0].mxu0
        %v3850 = vadd.f32 %v3555, %v3849
        %v3851 = vpop.f32.mrb[0].mxu0
        %v3852 = vadd.f32 %v3555, %v3851
        %3853 = vmatprep.mubr.f32.mxu0 0.0
        %3854 = vmatmul.mubr.f32.gmra.mrb[0].mxu0 %v3579
        %v3855 = vpop.f32.mrb[0].mxu0
        %v3856 = vadd.f32 %v3560, %v3855
        %v3857 = vpop.f32.mrb[0].mxu0
        %v3858 = vadd.f32 %v3560, %v3857
        %3859 = vmatprep.mubr.f32.mxu0 0.0
        %3860 = vmatmul.mubr.f32.gmra.mrb[0].mxu0 %v3582
        %v3861 = vpop.f32.mrb[0].mxu0
        %v3862 = vadd.f32 %v3565, %v3861
        %v3863 = vpop.f32.mrb[0].mxu0
        %v3864 = vadd.f32 %v3565, %v3863
        %3865 = vmatprep.mubr.f32.mxu0 0.0
        %3866 = vmatmul.mubr.f32.gmra.mrb[0].mxu0 %v3585
        %v3867 = vpop.f32.mrb[0].mxu0
        %v3868 = vadd.f32 %v3570, %v3867
        %v3869 = vpop.f32.mrb[0].mxu0
        %v3870 = vadd.f32 %v3570, %v3869
        %3871 = vdwg.mxu0
        %3872 = vmatprep.subr.mxu0 %v3508
        %3873 = vmatpush1.msra.mxu0 %v3507
        %3874 = vmatprep.subr.mxu0 %v3516
        %3875 = vmatpush1.msra.mxu0 %v3515
        %3876 = vmatprep.subr.mxu0 %v3524
        %3877 = vmatpush1.msra.mxu0 %v3523
        %3878 = vmatprep.subr.mxu0 %v3532
        %3879 = vmatpush1.msra.mxu0 %v3531
        %3880 = vmatprep.subr.mxu0 %v3540
        %3881 = vmatpush1.msra.mxu0 %v3539
        %3882 = vmatprep.subr.mxu0 0.0
        %3883 = vmatpush1.msra.mxu0 0.0
        %3884 = vmatprep.subr.mxu0 0.0
        %3885 = vmatpush1.msra.mxu0 0.0
        %3886 = vmatprep.subr.mxu0 0.0
        %3887 = vmatpush1.msra.mxu0 0.0
        %3888 = vmatprep.subr.mxu0 0.0
        %3889 = vmatpush1.msra.mxu0 0.0
        %3890 = vmatprep.subr.mxu0 0.0
        %3891 = vmatpush1.msra.mxu0 0.0
        %3892 = vmatprep.subr.mxu0 0.0
        %3893 = vmatpush1.msra.mxu0 0.0
        %3894 = vmatprep.subr.mxu0 0.0
        %3895 = vmatpush1.msra.mxu0 0.0
        %3896 = vmatprep.subr.mxu0 0.0
        %3897 = vmatpush1.msra.mxu0 0.0
        %3898 = vmatprep.subr.mxu0 0.0
        %3899 = vmatpush1.msra.mxu0 0.0
        %3900 = vmatprep.subr.mxu0 0.0
        %3901 = vmatpush1.msra.mxu0 0.0
        %3902 = vmatprep.subr.mxu0 0.0
        %3903 = vmatpush1.msra.mxu0 0.0
        %3904 = vmatprep.subr.mxu0 0.0
        %3905 = vmatpush1.msra.mxu0 0.0
        %3906 = vmatprep.subr.mxu0 0.0
        %3907 = vmatpush1.msra.mxu0 0.0
        %3908 = vmatprep.subr.mxu0 0.0
        %3909 = vmatpush1.msra.mxu0 0.0
        %3910 = vmatprep.subr.mxu0 0.0
        %3911 = vmatpush1.msra.mxu0 0.0
        %3912 = vmatprep.subr.mxu0 0.0
        %3913 = vmatpush1.msra.mxu0 0.0
        %3914 = vmatprep.subr.mxu0 0.0
        %3915 = vmatpush1.msra.mxu0 0.0
        %3916 = vmatprep.subr.mxu0 0.0
        %3917 = vmatpush1.msra.mxu0 0.0
        %3918 = vmatprep.subr.mxu0 0.0
        %3919 = vmatpush1.msra.mxu0 0.0
        %3920 = vmatprep.subr.mxu0 0.0
        %3921 = vmatpush1.msra.mxu0 0.0
        %3922 = vmatprep.subr.mxu0 0.0
        %3923 = vmatpush1.msra.mxu0 0.0
        %3924 = vmatprep.subr.mxu0 0.0
        %3925 = vmatpush1.msra.mxu0 0.0
        %3926 = vmatprep.subr.mxu0 0.0
        %3927 = vmatpush1.msra.mxu0 0.0
        %3928 = vmatprep.subr.mxu0 0.0
        %3929 = vmatpush1.msra.mxu0 0.0
        %3930 = vmatprep.subr.mxu0 0.0
        %3931 = vmatpush1.msra.mxu0 0.0
        %3932 = vmatprep.subr.mxu0 0.0
        %3933 = vmatpush1.msra.mxu0 0.0
        %3934 = vmatprep.subr.mxu0 0.0
        %3935 = vmatpush1.msra.mxu0 0.0
        %3936 = vmatprep.mubr.f32.mxu0 0.0
        %3937 = vmatmul.mubr.f32.gmra.mrb[0].mxu0 %v3573
        %v3938 = vpop.f32.mrb[0].mxu0
        %v3939 = vadd.f32 %v3550, %v3938
        %v3940 = vpop.f32.mrb[0].mxu0
        %v3941 = vadd.f32 %v3550, %v3940
        %3942 = vmatprep.mubr.f32.mxu0 0.0
        %3943 = vmatmul.mubr.f32.gmra.mrb[0].mxu0 %v3576
        %v3944 = vpop.f32.mrb[0].mxu0
        %v3945 = vadd.f32 %v3555, %v3944
        %v3946 = vpop.f32.mrb[0].mxu0
        %v3947 = vadd.f32 %v3555, %v3946
        %3948 = vmatprep.mubr.f32.mxu0 0.0
        %3949 = vmatmul.mubr.f32.gmra.mrb[0].mxu0 %v3579
        %v3950 = vpop.f32.mrb[0].mxu0
        %v3951 = vadd.f32 %v3560, %v3950
        %v3952 = vpop.f32.mrb[0].mxu0
        %v3953 = vadd.f32 %v3560, %v3952
        %3954 = vmatprep.mubr.f32.mxu0 0.0
        %3955 = vmatmul.mubr.f32.gmra.mrb[0].mxu0 %v3582
        %v3956 = vpop.f32.mrb[0].mxu0
        %v3957 = vadd.f32 %v3565, %v3956
        %v3958 = vpop.f32.mrb[0].mxu0
        %v3959 = vadd.f32 %v3565, %v3958
        %3960 = vmatprep.mubr.f32.mxu0 0.0
        %3961 = vmatmul.mubr.f32.gmra.mrb[0].mxu0 %v3585
        %v3962 = vpop.f32.mrb[0].mxu0
        %v3963 = vadd.f32 %v3570, %v3962
        %v3964 = vpop.f32.mrb[0].mxu0
        %v3965 = vadd.f32 %v3570, %v3964
        %3966 = vdwg.mxu0
        %v3967 = vtanh.pop %v3654
        %v3968 = vtanh.pop %v3656
        %v3969 = vtanh.pop %v3749
        %v3970 = vtanh.pop %v3751
        %v3971 = vtanh.pop %v3844
        %v3972 = vtanh.pop %v3846
        %v3973 = vtanh.pop %v3939
        %v3974 = vtanh.pop %v3941
        %v3975 = vtanh.pop %v3660
        %v3976 = vtanh.pop %v3662
        %v3977 = vtanh.pop %v3755
        %v3978 = vtanh.pop %v3757
        %v3979 = vtanh.pop %v3850
        %v3980 = vtanh.pop %v3852
        %v3981 = vtanh.pop %v3945
        %v3982 = vtanh.pop %v3947
        %v3983 = vtanh.pop %v3666
        %v3984 = vtanh.pop %v3668
        %v3985 = vtanh.pop %v3761
        %v3986 = vtanh.pop %v3763
        %v3987 = vtanh.pop %v3856
        %v3988 = vtanh.pop %v3858
        %v3989 = vtanh.pop %v3951
        %v3990 = vtanh.pop %v3953
        %v3991 = vtanh.pop %v3672
        %v3992 = vtanh.pop %v3674
        %v3993 = vtanh.pop %v3767
        %v3994 = vtanh.pop %v3769
        %v3995 = vtanh.pop %v3862
        %v3996 = vtanh.pop %v3864
        %v3997 = vtanh.pop %v3957
        %v3998 = vtanh.pop %v3959
        %v3999 = vtanh.pop %v3678
        %v4000 = vtanh.pop %v3680
        %v4001 = vtanh.pop %v3773
        %v4002 = vtanh.pop %v3775
        %v4003 = vtanh.pop %v3868
        %v4004 = vtanh.pop %v3870
        %v4005 = vtanh.pop %v3963
        %v4006 = vtanh.pop %v3965
        %v4007 = vld [vmem:[%s5] sm:$0x1]
        %v4008 = vld [vmem:[#allocation2] sm:$0x1]
        %4010 = vset.pattern.permute.xlu0 0
        %4011 = vperm.xlu0 %4010, %v4008
        %v4012 = vpop.permute.xlu0 %4011
        %v4014 = vlaneseq
        %v4015 = vshrl.u32 %v4014, 7
        %v4016 = vsub.s32 0, %v4015
        %v4017 = vrot.slane %v4012, %v4016
        %v4019 = vsel %vm775, %v4007, 0
        %4021 = vmatprep.subr.mxu0 %v3968
        %4022 = vmatpush1.msra.mxu0 %v3967
        %4023 = vmatprep.subr.mxu0 %v3976
        %4024 = vmatpush1.msra.mxu0 %v3975
        %4025 = vmatprep.subr.mxu0 %v3984
        %4026 = vmatpush1.msra.mxu0 %v3983
        %4027 = vmatprep.subr.mxu0 %v3992
        %4028 = vmatpush1.msra.mxu0 %v3991
        %4029 = vmatprep.subr.mxu0 %v4000
        %4030 = vmatpush1.msra.mxu0 %v3999
        %4031 = vmatprep.subr.mxu0 0.0
        %4032 = vmatpush1.msra.mxu0 0.0
        %4033 = vmatprep.subr.mxu0 0.0
        %4034 = vmatpush1.msra.mxu0 0.0
        %4035 = vmatprep.subr.mxu0 0.0
        %4036 = vmatpush1.msra.mxu0 0.0
        %4037 = vmatprep.subr.mxu0 0.0
        %4038 = vmatpush1.msra.mxu0 0.0
        %4039 = vmatprep.subr.mxu0 0.0
        %4040 = vmatpush1.msra.mxu0 0.0
        %4041 = vmatprep.subr.mxu0 0.0
        %4042 = vmatpush1.msra.mxu0 0.0
        %4043 = vmatprep.subr.mxu0 0.0
        %4044 = vmatpush1.msra.mxu0 0.0
        %4045 = vmatprep.subr.mxu0 0.0
        %4046 = vmatpush1.msra.mxu0 0.0
        %4047 = vmatprep.subr.mxu0 0.0
        %4048 = vmatpush1.msra.mxu0 0.0
        %4049 = vmatprep.subr.mxu0 0.0
        %4050 = vmatpush1.msra.mxu0 0.0
        %4051 = vmatprep.subr.mxu0 0.0
        %4052 = vmatpush1.msra.mxu0 0.0
        %4053 = vmatprep.subr.mxu0 0.0
        %4054 = vmatpush1.msra.mxu0 0.0
        %4055 = vmatprep.subr.mxu0 0.0
        %4056 = vmatpush1.msra.mxu0 0.0
        %4057 = vmatprep.subr.mxu0 0.0
        %4058 = vmatpush1.msra.mxu0 0.0
        %4059 = vmatprep.subr.mxu0 0.0
        %4060 = vmatpush1.msra.mxu0 0.0
        %4061 = vmatprep.subr.mxu0 0.0
        %4062 = vmatpush1.msra.mxu0 0.0
        %4063 = vmatprep.subr.mxu0 0.0
        %4064 = vmatpush1.msra.mxu0 0.0
        %4065 = vmatprep.subr.mxu0 0.0
        %4066 = vmatpush1.msra.mxu0 0.0
        %4067 = vmatprep.subr.mxu0 0.0
        %4068 = vmatpush1.msra.mxu0 0.0
        %4069 = vmatprep.subr.mxu0 0.0
        %4070 = vmatpush1.msra.mxu0 0.0
        %4071 = vmatprep.subr.mxu0 0.0
        %4072 = vmatpush1.msra.mxu0 0.0
        %4073 = vmatprep.subr.mxu0 0.0
        %4074 = vmatpush1.msra.mxu0 0.0
        %4075 = vmatprep.subr.mxu0 0.0
        %4076 = vmatpush1.msra.mxu0 0.0
        %4077 = vmatprep.subr.mxu0 0.0
        %4078 = vmatpush1.msra.mxu0 0.0
        %4079 = vmatprep.subr.mxu0 0.0
        %4080 = vmatpush1.msra.mxu0 0.0
        %4081 = vmatprep.subr.mxu0 0.0
        %4082 = vmatpush1.msra.mxu0 0.0
        %4083 = vmatprep.subr.mxu0 0.0
        %4084 = vmatpush1.msra.mxu0 0.0
        %4085 = vmatprep.mubr.f32.mxu0 0.0
        %4086 = vmatmul.mubr.f32.gmra.mrb[0].mxu0 %v4019
        %v4087 = vpop.f32.mrb[0].mxu0
        %v4088 = vadd.f32 %v4017, %v4087
        %v4089 = vpop.f32.mrb[0].mxu0
        %v4090 = vadd.f32 %v4017, %v4089
        %4091 = vdwg.mxu0
        %4092 = vmatprep.subr.mxu0 %v3970
        %4093 = vmatpush1.msra.mxu0 %v3969
        %4094 = vmatprep.subr.mxu0 %v3978
        %4095 = vmatpush1.msra.mxu0 %v3977
        %4096 = vmatprep.subr.mxu0 %v3986
        %4097 = vmatpush1.msra.mxu0 %v3985
        %4098 = vmatprep.subr.mxu0 %v3994
        %4099 = vmatpush1.msra.mxu0 %v3993
        %4100 = vmatprep.subr.mxu0 %v4002
        %4101 = vmatpush1.msra.mxu0 %v4001
        %4102 = vmatprep.subr.mxu0 0.0
        %4103 = vmatpush1.msra.mxu0 0.0
        %4104 = vmatprep.subr.mxu0 0.0
        %4105 = vmatpush1.msra.mxu0 0.0
        %4106 = vmatprep.subr.mxu0 0.0
        %4107 = vmatpush1.msra.mxu0 0.0
        %4108 = vmatprep.subr.mxu0 0.0
        %4109 = vmatpush1.msra.mxu0 0.0
        %4110 = vmatprep.subr.mxu0 0.0
        %4111 = vmatpush1.msra.mxu0 0.0
        %4112 = vmatprep.subr.mxu0 0.0
        %4113 = vmatpush1.msra.mxu0 0.0
        %4114 = vmatprep.subr.mxu0 0.0
        %4115 = vmatpush1.msra.mxu0 0.0
        %4116 = vmatprep.subr.mxu0 0.0
        %4117 = vmatpush1.msra.mxu0 0.0
        %4118 = vmatprep.subr.mxu0 0.0
        %4119 = vmatpush1.msra.mxu0 0.0
        %4120 = vmatprep.subr.mxu0 0.0
        %4121 = vmatpush1.msra.mxu0 0.0
        %4122 = vmatprep.subr.mxu0 0.0
        %4123 = vmatpush1.msra.mxu0 0.0
        %4124 = vmatprep.subr.mxu0 0.0
        %4125 = vmatpush1.msra.mxu0 0.0
        %4126 = vmatprep.subr.mxu0 0.0
        %4127 = vmatpush1.msra.mxu0 0.0
        %4128 = vmatprep.subr.mxu0 0.0
        %4129 = vmatpush1.msra.mxu0 0.0
        %4130 = vmatprep.subr.mxu0 0.0
        %4131 = vmatpush1.msra.mxu0 0.0
        %4132 = vmatprep.subr.mxu0 0.0
        %4133 = vmatpush1.msra.mxu0 0.0
        %4134 = vmatprep.subr.mxu0 0.0
        %4135 = vmatpush1.msra.mxu0 0.0
        %4136 = vmatprep.subr.mxu0 0.0
        %4137 = vmatpush1.msra.mxu0 0.0
        %4138 = vmatprep.subr.mxu0 0.0
        %4139 = vmatpush1.msra.mxu0 0.0
        %4140 = vmatprep.subr.mxu0 0.0
        %4141 = vmatpush1.msra.mxu0 0.0
        %4142 = vmatprep.subr.mxu0 0.0
        %4143 = vmatpush1.msra.mxu0 0.0
        %4144 = vmatprep.subr.mxu0 0.0
        %4145 = vmatpush1.msra.mxu0 0.0
        %4146 = vmatprep.subr.mxu0 0.0
        %4147 = vmatpush1.msra.mxu0 0.0
        %4148 = vmatprep.subr.mxu0 0.0
        %4149 = vmatpush1.msra.mxu0 0.0
        %4150 = vmatprep.subr.mxu0 0.0
        %4151 = vmatpush1.msra.mxu0 0.0
        %4152 = vmatprep.subr.mxu0 0.0
        %4153 = vmatpush1.msra.mxu0 0.0
        %4154 = vmatprep.subr.mxu0 0.0
        %4155 = vmatpush1.msra.mxu0 0.0
        %4156 = vmatprep.mubr.f32.mxu0 0.0
        %4157 = vmatmul.mubr.f32.gmra.mrb[0].mxu0 %v4019
        %v4158 = vpop.f32.mrb[0].mxu0
        %v4159 = vadd.f32 %v4017, %v4158
        %v4160 = vpop.f32.mrb[0].mxu0
        %v4161 = vadd.f32 %v4017, %v4160
        %4162 = vdwg.mxu0
        %4163 = vmatprep.subr.mxu0 %v3972
        %4164 = vmatpush1.msra.mxu0 %v3971
        %4165 = vmatprep.subr.mxu0 %v3980
        %4166 = vmatpush1.msra.mxu0 %v3979
        %4167 = vmatprep.subr.mxu0 %v3988
        %4168 = vmatpush1.msra.mxu0 %v3987
        %4169 = vmatprep.subr.mxu0 %v3996
        %4170 = vmatpush1.msra.mxu0 %v3995
        %4171 = vmatprep.subr.mxu0 %v4004
        %4172 = vmatpush1.msra.mxu0 %v4003
        %4173 = vmatprep.subr.mxu0 0.0
        %4174 = vmatpush1.msra.mxu0 0.0
        %4175 = vmatprep.subr.mxu0 0.0
        %4176 = vmatpush1.msra.mxu0 0.0
        %4177 = vmatprep.subr.mxu0 0.0
        %4178 = vmatpush1.msra.mxu0 0.0
        %4179 = vmatprep.subr.mxu0 0.0
        %4180 = vmatpush1.msra.mxu0 0.0
        %4181 = vmatprep.subr.mxu0 0.0
        %4182 = vmatpush1.msra.mxu0 0.0
        %4183 = vmatprep.subr.mxu0 0.0
        %4184 = vmatpush1.msra.mxu0 0.0
        %4185 = vmatprep.subr.mxu0 0.0
        %4186 = vmatpush1.msra.mxu0 0.0
        %4187 = vmatprep.subr.mxu0 0.0
        %4188 = vmatpush1.msra.mxu0 0.0
        %4189 = vmatprep.subr.mxu0 0.0
        %4190 = vmatpush1.msra.mxu0 0.0
        %4191 = vmatprep.subr.mxu0 0.0
        %4192 = vmatpush1.msra.mxu0 0.0
        %4193 = vmatprep.subr.mxu0 0.0
        %4194 = vmatpush1.msra.mxu0 0.0
        %4195 = vmatprep.subr.mxu0 0.0
        %4196 = vmatpush1.msra.mxu0 0.0
        %4197 = vmatprep.subr.mxu0 0.0
        %4198 = vmatpush1.msra.mxu0 0.0
        %4199 = vmatprep.subr.mxu0 0.0
        %4200 = vmatpush1.msra.mxu0 0.0
        %4201 = vmatprep.subr.mxu0 0.0
        %4202 = vmatpush1.msra.mxu0 0.0
        %4203 = vmatprep.subr.mxu0 0.0
        %4204 = vmatpush1.msra.mxu0 0.0
        %4205 = vmatprep.subr.mxu0 0.0
        %4206 = vmatpush1.msra.mxu0 0.0
        %4207 = vmatprep.subr.mxu0 0.0
        %4208 = vmatpush1.msra.mxu0 0.0
        %4209 = vmatprep.subr.mxu0 0.0
        %4210 = vmatpush1.msra.mxu0 0.0
        %4211 = vmatprep.subr.mxu0 0.0
        %4212 = vmatpush1.msra.mxu0 0.0
        %4213 = vmatprep.subr.mxu0 0.0
        %4214 = vmatpush1.msra.mxu0 0.0
        %4215 = vmatprep.subr.mxu0 0.0
        %4216 = vmatpush1.msra.mxu0 0.0
        %4217 = vmatprep.subr.mxu0 0.0
        %4218 = vmatpush1.msra.mxu0 0.0
        %4219 = vmatprep.subr.mxu0 0.0
        %4220 = vmatpush1.msra.mxu0 0.0
        %4221 = vmatprep.subr.mxu0 0.0
        %4222 = vmatpush1.msra.mxu0 0.0
        %4223 = vmatprep.subr.mxu0 0.0
        %4224 = vmatpush1.msra.mxu0 0.0
        %4225 = vmatprep.subr.mxu0 0.0
        %4226 = vmatpush1.msra.mxu0 0.0
        %4227 = vmatprep.mubr.f32.mxu0 0.0
        %4228 = vmatmul.mubr.f32.gmra.mrb[0].mxu0 %v4019
        %v4229 = vpop.f32.mrb[0].mxu0
        %v4230 = vadd.f32 %v4017, %v4229
        %v4231 = vpop.f32.mrb[0].mxu0
        %v4232 = vadd.f32 %v4017, %v4231
        %4233 = vdwg.mxu0
        %4234 = vmatprep.subr.mxu0 %v3974
        %4235 = vmatpush1.msra.mxu0 %v3973
        %4236 = vmatprep.subr.mxu0 %v3982
        %4237 = vmatpush1.msra.mxu0 %v3981
        %4238 = vmatprep.subr.mxu0 %v3990
        %4239 = vmatpush1.msra.mxu0 %v3989
        %4240 = vmatprep.subr.mxu0 %v3998
        %4241 = vmatpush1.msra.mxu0 %v3997
        %4242 = vmatprep.subr.mxu0 %v4006
        %4243 = vmatpush1.msra.mxu0 %v4005
        %4244 = vmatprep.subr.mxu0 0.0
        %4245 = vmatpush1.msra.mxu0 0.0
        %4246 = vmatprep.subr.mxu0 0.0
        %4247 = vmatpush1.msra.mxu0 0.0
        %4248 = vmatprep.subr.mxu0 0.0
        %4249 = vmatpush1.msra.mxu0 0.0
        %4250 = vmatprep.subr.mxu0 0.0
        %4251 = vmatpush1.msra.mxu0 0.0
        %4252 = vmatprep.subr.mxu0 0.0
        %4253 = vmatpush1.msra.mxu0 0.0
        %4254 = vmatprep.subr.mxu0 0.0
        %4255 = vmatpush1.msra.mxu0 0.0
        %4256 = vmatprep.subr.mxu0 0.0
        %4257 = vmatpush1.msra.mxu0 0.0
        %4258 = vmatprep.subr.mxu0 0.0
        %4259 = vmatpush1.msra.mxu0 0.0
        %4260 = vmatprep.subr.mxu0 0.0
        %4261 = vmatpush1.msra.mxu0 0.0
        %4262 = vmatprep.subr.mxu0 0.0
        %4263 = vmatpush1.msra.mxu0 0.0
        %4264 = vmatprep.subr.mxu0 0.0
        %4265 = vmatpush1.msra.mxu0 0.0
        %4266 = vmatprep.subr.mxu0 0.0
        %4267 = vmatpush1.msra.mxu0 0.0
        %4268 = vmatprep.subr.mxu0 0.0
        %4269 = vmatpush1.msra.mxu0 0.0
        %4270 = vmatprep.subr.mxu0 0.0
        %4271 = vmatpush1.msra.mxu0 0.0
        %4272 = vmatprep.subr.mxu0 0.0
        %4273 = vmatpush1.msra.mxu0 0.0
        %4274 = vmatprep.subr.mxu0 0.0
        %4275 = vmatpush1.msra.mxu0 0.0
        %4276 = vmatprep.subr.mxu0 0.0
        %4277 = vmatpush1.msra.mxu0 0.0
        %4278 = vmatprep.subr.mxu0 0.0
        %4279 = vmatpush1.msra.mxu0 0.0
        %4280 = vmatprep.subr.mxu0 0.0
        %4281 = vmatpush1.msra.mxu0 0.0
        %4282 = vmatprep.subr.mxu0 0.0
        %4283 = vmatpush1.msra.mxu0 0.0
        %4284 = vmatprep.subr.mxu0 0.0
        %4285 = vmatpush1.msra.mxu0 0.0
        %4286 = vmatprep.subr.mxu0 0.0
        %4287 = vmatpush1.msra.mxu0 0.0
        %4288 = vmatprep.subr.mxu0 0.0
        %4289 = vmatpush1.msra.mxu0 0.0
        %4290 = vmatprep.subr.mxu0 0.0
        %4291 = vmatpush1.msra.mxu0 0.0
        %4292 = vmatprep.subr.mxu0 0.0
        %4293 = vmatpush1.msra.mxu0 0.0
        %4294 = vmatprep.subr.mxu0 0.0
        %4295 = vmatpush1.msra.mxu0 0.0
        %4296 = vmatprep.subr.mxu0 0.0
        %4297 = vmatpush1.msra.mxu0 0.0
        %4298 = vmatprep.mubr.f32.mxu0 0.0
        %4299 = vmatmul.mubr.f32.gmra.mrb[0].mxu0 %v4019
        %v4300 = vpop.f32.mrb[0].mxu0
        %v4301 = vadd.f32 %v4017, %v4300
        %v4302 = vpop.f32.mrb[0].mxu0
        %v4303 = vadd.f32 %v4017, %v4302
        %4304 = vdwg.mxu0
        %v4313 = vcombine.low %v4088, %v4090
        %v4314 = vcombine.low %v4159, %v4161
        %v4315 = vcombine.low %v4230, %v4232
        %v4316 = vcombine.low %v4301, %v4303
        %v4318 = vunpack.c.l.s4 1966171168
        %v4319 = vunpack.c.0.s8 %v4318
        %v4320 = vlaneseq
        %v4321 = vshrl.u32 %v4320, 7
        %v4322 = vsub.s32 %v4319, %v4321
        %v4323 = vrot.slane %v4313, %v4322
        %v4325 = vunpack.c.l.s4 1966171168
        %v4326 = vunpack.c.0.s8 %v4325
        %v4327 = vlaneseq
        %v4328 = vshrl.u32 %v4327, 7
        %v4329 = vsub.s32 %v4326, %v4328
        %v4330 = vrot.slane %v4314, %v4329
        %v4332 = vunpack.c.l.s4 1966171168
        %v4333 = vunpack.c.0.s8 %v4332
        %v4334 = vlaneseq
        %v4335 = vshrl.u32 %v4334, 7
        %v4336 = vsub.s32 %v4333, %v4335
        %v4337 = vrot.slane %v4315, %v4336
        %v4339 = vunpack.c.l.s4 1966171168
        %v4340 = vunpack.c.0.s8 %v4339
        %v4341 = vlaneseq
        %v4342 = vshrl.u32 %v4341, 7
        %v4343 = vsub.s32 %v4340, %v4342
        %v4344 = vrot.slane %v4316, %v4343
        %v4345 = vcombine.low %v4323, %v4330
        %v4346 = vcombine.low %v4337, %v4344
        %v4348 = vunpack.c.l.s4 1966171168
        %v4349 = vunpack.c.0.s8 %v4348
        %v4350 = vlaneseq
        %v4351 = vshrl.u32 %v4350, 7
        %v4352 = vsub.s32 %v4349, %v4351
        %v4353 = vrot.slane %v4345, %v4352
        %v4355 = vunpack.c.l.s4 1966171168
        %v4356 = vunpack.c.0.s8 %v4355
        %v4357 = vlaneseq
        %v4358 = vshrl.u32 %v4357, 7
        %v4359 = vsub.s32 %v4356, %v4358
        %v4360 = vrot.slane %v4346, %v4359
        %v4361 = vcombine.low %v4353, %v4360
        %4363 = vst [vmem:[%s274] sm:$0xff] %v4361
        %s4364 = sand.u32 %s183, 1
        %s4365 = scalar_lea.sflag [#allocation4], %s4364
        %s4366 = sand.u32 %s183, 1
        %s4367 = smul.addr %s4366, 8
        %s4368 = scalar_lea.vmem [#allocation3], %s4367
        // Predicated region
        $region49: #{dnn_forward_t.1} parent=47 // pred_check
          %p4369 = pneg %p193
        $region50: #{dnn_forward_t.1} parent=47 // pred_check_branch
          %4371 = sbr.rel (%p4369) target = $region52
        $region51: #{dnn_forward_t.1} parent=47 // pred_region
          %s4372 = smul.u32 8, %s23
          %s4374 = ssub.s32 128, 128
          %4375 = vsyncadd %s4365, %s4374
          %s4376 = smul.addr %s4372, 16
          %s4377 = scalar_lea.hbm %s7, %s4376
          %s4379 = sshll.u32 %s4368, 4
          %s4380 = int_to_ptr.vmem [resolvable:$true] %s4379
          %4382 = dma.vmem_to_hbm [thread:$0]  %s4380, 128, %s4377, %s4365
        $region52: #{dnn_forward_t.1} parent=47 // pred_fallthru
          _
      $region48: #{dnn_forward_t.1} parent=5 // pred_fallthru
        _
      %p4383 = scmp.le.s32.totalorder 2, %s18
      // Predicated region
      $region53: #{dnn_forward_t.1} parent=5 // pred_check
        %p4384 = pneg %p4383
      $region54: #{dnn_forward_t.1} parent=5 // pred_check_branch
        %4386 = sbr.rel (%p4384) target = $region56
      $region55: #{dnn_forward_t.1} parent=5 // pred_region
        %s4387 = ssub.s32 %s18, 2
        // Predicated region
        $region57: #{dnn_forward_t.1} parent=55 // pred_check
          %p4388 = pneg %p199
        $region58: #{dnn_forward_t.1} parent=55 // pred_check_branch
          %4390 = sbr.rel (%p4388) target = $region60
        $region59: #{dnn_forward_t.1} parent=55 // pred_region
          %s4391 = sand.u32 %s184, 1
          %s4392 = scalar_lea.sflag [#allocation4], %s4391
          %s4393 = sand.u32 %s184, 1
          %s4394 = smul.addr %s4393, 8
          %s4395 = scalar_lea.vmem [#allocation3], %s4394
          %4396 = dma.done %s4392, 128
        $region60: #{dnn_forward_t.1} parent=55 // pred_fallthru
          _
      $region56: #{dnn_forward_t.1} parent=5 // pred_fallthru
        _
    $region6: #{dnn_forward_t.1} parent=1 // loop_footer
      %s22 = sadd.s32 1, %s18
    $region7: #{dnn_forward_t.1} parent=1 // loop_footer_branch
      %17 = sbr.rel target = $region3
    $region8: #{dnn_forward_t.1} parent=1 // loop_exit
      _
    %4397 = vsyncpa [#allocation4], 1
    %s4398 = scalar_lea.sflag [#allocation4], 1
    %4399 = vsyncpa %s4398, 1

</llo_original>
